<compile_context>
chip_gen: v7x
topology: tpu7x:2x2x1
jax: 0.10.0
libtpu: 0.0.40
codegen_flags: <defaults>
</compile_context>

<pallas_src>
import functools

import jax
import jax.numpy as jnp
from jax.experimental import pallas as pl
from jax.experimental.pallas import tpu as pltpu


# ----------------------------------------------------------------------------
# Fused kernel: grid = (4 layers, N // row_tile adjacency row tiles)
# ----------------------------------------------------------------------------
def _fused_graph_encoder_kernel(
    # inputs
    adj_ref, x_ref,
    w1_ref, b1_ref, w2_ref, b2_ref, bn1_ref,
    w3_ref, b3_ref, w4_ref, b4_ref, bn2_ref,
    vit_ref, wp_ref, bp_ref, wlv_ref, wlg_ref, bl_ref,
    # output
    o_ref,
    # scratch (VMEM-resident across the whole grid)
    h1, h2, h3, h4, xw1, xw2, xw3, xw4,
):
    l = pl.program_id(0)            # layer index (0..3)
    i = pl.program_id(1)            # adjacency row-tile index
    n_rt = pl.num_programs(1)
    tm = adj_ref.shape[0]

    def _bn(h, bn_ref):
        # training-mode batch statistics, biased variance, eps = 1e-5,
        # learnable affine: gamma = bn_ref[0], beta = bn_ref[1].
        gb = bn_ref[...]
        mean = jnp.mean(h, axis=0, keepdims=True)
        var = jnp.mean((h - mean) ** 2, axis=0, keepdims=True)
        return (h - mean) * jax.lax.rsqrt(var + 1e-5) * gb[0:1, :] + gb[1:2, :]

    # ---- per-layer prologue (row tile 0): build XW_l into VMEM scratch ------
    @pl.when(i == 0)
    def _prologue():
        @pl.when(l == 0)
        def _():
            # conv1 input = raw node features (dropout == identity in eval)
            xw1[...] = jnp.dot(
                x_ref[...], w1_ref[...],
                preferred_element_type=jnp.float32).astype(xw1.dtype)

        @pl.when(l == 1)
        def _():
            act = jnp.maximum(h1[...], 0.0)                    # relu(conv1)
            xw2[...] = jnp.dot(
                act, w2_ref[...],
                preferred_element_type=jnp.float32).astype(xw2.dtype)

        @pl.when(l == 2)
        def _():
            act = jnp.maximum(_bn(h2[...], bn1_ref), 0.0)      # relu(bn1(conv2))
            xw3[...] = jnp.dot(
                act, w3_ref[...],
                preferred_element_type=jnp.float32).astype(xw3.dtype)

        @pl.when(l == 3)
        def _():
            act = jnp.maximum(h3[...], 0.0)                    # relu(conv3)
            xw4[...] = jnp.dot(
                act, w4_ref[...],
                preferred_element_type=jnp.float32).astype(xw4.dtype)

    # ---- aggregation for this row tile: rows = A_hat[tile] @ XW_l + b_l -----
    row0 = pl.multiple_of(i * tm, tm)
    adj_t = adj_ref[...]                                       # [tm, N] bf16

    @pl.when(l == 0)
    def _():
        h1[pl.ds(row0, tm), :] = (
            jnp.dot(adj_t, xw1[...], preferred_element_type=jnp.float32)
            + b1_ref[...])

    @pl.when(l == 1)
    def _():
        h2[pl.ds(row0, tm), :] = (
            jnp.dot(adj_t, xw2[...], preferred_element_type=jnp.float32)
            + b2_ref[...])

    @pl.when(l == 2)
    def _():
        h3[pl.ds(row0, tm), :] = (
            jnp.dot(adj_t, xw3[...], preferred_element_type=jnp.float32)
            + b3_ref[...])

    @pl.when(l == 3)
    def _():
        h4[pl.ds(row0, tm), :] = (
            jnp.dot(adj_t, xw4[...], preferred_element_type=jnp.float32)
            + b4_ref[...])

    # ---- last grid step: bn2 + relu + pixel2patch + concat + linear ---------
    @pl.when((l == 3) & (i == n_rt - 1))
    def _head():
        h8 = jnp.maximum(_bn(h4[...], bn2_ref), 0.0)           # [N, c4] f32
        bsz = o_ref.shape[0]
        n_pixels = wp_ref.shape[1]
        for b in range(bsz):                                   # static unroll
            xg = h8[b * n_pixels:(b + 1) * n_pixels, :]        # [n_pixels, c4]
            # pixel2patch on the permuted layout == Wp @ xg + bp[:, None]
            y = jnp.dot(wp_ref[...], xg,
                        preferred_element_type=jnp.float32) + bp_ref[...]
            # concat(vit, y) @ Wl.T == vit @ Wl[:, :D].T + y @ Wl[:, D:].T
            out_b = (jnp.dot(vit_ref[b], wlv_ref[...],
                             preferred_element_type=jnp.float32)
                     + jnp.dot(y, wlg_ref[...],
                               preferred_element_type=jnp.float32)
                     + bl_ref[...])
            o_ref[b] = out_b.astype(o_ref.dtype)


# ----------------------------------------------------------------------------
# Glue: dense GCN normalized adjacency (plain JAX, not the hot path)
# ----------------------------------------------------------------------------
def build_norm_adj(edge_index, num_nodes):
    src, dst = edge_index[0], edge_index[1]
    a = jnp.zeros((num_nodes, num_nodes), jnp.float32)
    a = a.at[src, dst].set(1.0)
    a = a.at[dst, src].set(1.0)                       # undirected
    a = a + jnp.eye(num_nodes, dtype=jnp.float32)     # self-loops
    deg = jnp.sum(a, axis=1)
    dinv = jax.lax.rsqrt(deg)
    return a * dinv[:, None] * dinv[None, :]


def _pick_row_tile(n, target=512):
    """Largest multiple-of-8 divisor of n that is <= target (else n itself)."""
    if n <= target:
        return n
    t = (target // 8) * 8
    while t >= 8:
        if n % t == 0:
            return t
        t -= 8
    return n


def prepare_params(params, vit_embed_dim):
    """One-time reshapes / splits so the kernel sees launch-ready operands."""
    d = vit_embed_dim
    return {
        "w1": params["w1"], "b1": params["b1"].reshape(1, -1),
        "w2": params["w2"], "b2": params["b2"].reshape(1, -1),
        "w3": params["w3"], "b3": params["b3"].reshape(1, -1),
        "w4": params["w4"], "b4": params["b4"].reshape(1, -1),
        "bn1": jnp.stack([params["g1"], params["beta1"]], axis=0),
        "bn2": jnp.stack([params["g2"], params["beta2"]], axis=0),
        "wp": params["wp"], "bp": params["bp"].reshape(-1, 1),
        "wlv": jnp.transpose(params["wl"][:, :d]),    # [D, D]
        "wlg": jnp.transpose(params["wl"][:, d:]),    # [C8, D]
        "bl": params["bl"].reshape(1, -1),
    }


# ----------------------------------------------------------------------------
# Full forward (single fused pallas_call)
# ----------------------------------------------------------------------------
@functools.partial(jax.jit, static_argnames=("row_tile",))
def graph_encoder_forward(prep, x, edge_index, vit_output, row_tile=None):
    n, c_in = x.shape
    bsz, n_patches, d = vit_output.shape
    n_pixels = n // bsz

    adj = build_norm_adj(edge_index, n).astype(jnp.bfloat16)   # bf16 N^2 operand

    if row_tile is None:
        row_tile = _pick_row_tile(n)
    n_rt = n // row_tile

    c1 = prep["w1"].shape[1]
    c2 = prep["w2"].shape[1]
    c3 = prep["w3"].shape[1]
    c4 = prep["w4"].shape[1]

    def full(shape):
        nd = len(shape)
        return pl.BlockSpec(tuple(shape), lambda l, i, _nd=nd: (0,) * _nd)

    grid_spec = pltpu.PrefetchScalarGridSpec(
        num_scalar_prefetch=0,
        grid=(4, n_rt),
        in_specs=[
            # streamed bf16 adjacency row tile (re-streamed once per layer)
            pl.BlockSpec((row_tile, n), lambda l, i: (i, 0)),
            full((n, c_in)),                                   # x
            full(prep["w1"].shape), full(prep["b1"].shape),
            full(prep["w2"].shape), full(prep["b2"].shape), full(prep["bn1"].shape),
            full(prep["w3"].shape), full(prep["b3"].shape),
            full(prep["w4"].shape), full(prep["b4"].shape), full(prep["bn2"].shape),
            full((bsz, n_patches, d)),                         # vit_output
            full(prep["wp"].shape), full(prep["bp"].shape),
            full(prep["wlv"].shape), full(prep["wlg"].shape), full(prep["bl"].shape),
        ],
        out_specs=pl.BlockSpec((bsz, n_patches, d), lambda l, i: (0, 0, 0)),
        scratch_shapes=[
            pltpu.VMEM((n, c1), jnp.float32),                  # H1 (conv1 out)
            pltpu.VMEM((n, c2), jnp.float32),                  # H2
            pltpu.VMEM((n, c3), jnp.float32),                  # H3
            pltpu.VMEM((n, c4), jnp.float32),                  # H4
            pltpu.VMEM((n, c1), jnp.bfloat16),                 # XW1
            pltpu.VMEM((n, c2), jnp.bfloat16),                 # XW2
            pltpu.VMEM((n, c3), jnp.bfloat16),                 # XW3
            pltpu.VMEM((n, c4), jnp.bfloat16),                 # XW4
        ],
    )

    kernel = pl.pallas_call(
        _fused_graph_encoder_kernel,
        out_shape=jax.ShapeDtypeStruct((bsz, n_patches, d), jnp.float32),
        grid_spec=grid_spec,
        compiler_params=pltpu.CompilerParams(
            # both axes carry state through VMEM scratch -> must stay sequential
            dimension_semantics=("arbitrary", "arbitrary"),
            vmem_limit_bytes=32 * 1024 * 1024,
        ),
    )

    return kernel(
        adj, x,
        prep["w1"], prep["b1"], prep["w2"], prep["b2"], prep["bn1"],
        prep["w3"], prep["b3"], prep["w4"], prep["b4"], prep["bn2"],
        vit_output, prep["wp"], prep["bp"],
        prep["wlv"], prep["wlg"], prep["bl"],
    )


def init_params(key, in_channels, hidden, vit_embed_dim, n_patches, n_pixels):
    c1, c2, c3, c4 = hidden, hidden * 2, hidden * 4, hidden * 8
    keys = jax.random.split(key, 8)
    return {
        # GCNConv weights (stored as [C_in, C_out]), normal(0, 0.1), zero bias
        "w1": 0.1 * jax.random.normal(keys[0], (in_channels, c1), jnp.float32),
        "b1": jnp.zeros((c1,), jnp.float32),
        "w2": 0.1 * jax.random.normal(keys[1], (c1, c2), jnp.float32),
        "b2": jnp.zeros((c2,), jnp.float32),
        "w3": 0.1 * jax.random.normal(keys[2], (c2, c3), jnp.float32),
        "b3": jnp.zeros((c3,), jnp.float32),
        "w4": 0.1 * jax.random.normal(keys[3], (c3, c4), jnp.float32),
        "b4": jnp.zeros((c4,), jnp.float32),
        # BatchNorm affine params (module init: gamma=1, beta=0)
        "g1": jnp.ones((c2,), jnp.float32), "beta1": jnp.zeros((c2,), jnp.float32),
        "g2": jnp.ones((c4,), jnp.float32), "beta2": jnp.zeros((c4,), jnp.float32),
        # pixel2patch: Linear(n_pixels -> n_patches), torch layout [out, in]
        "wp": 0.1 * jax.random.normal(keys[4], (n_patches, n_pixels), jnp.float32),
        "bp": 0.01 * jax.random.normal(keys[5], (n_patches,), jnp.float32),
        # final linear: Linear(vit_embed_dim + c4 -> vit_embed_dim), [out, in]
        "wl": 0.1 * jax.random.normal(keys[6], (vit_embed_dim, vit_embed_dim + c4),
                                      jnp.float32),
        "bl": 0.01 * jax.random.normal(keys[7], (vit_embed_dim,), jnp.float32),
    }


if __name__ == "__main__":
    # small deterministic config (lane-dense output: vit_embed_dim % 128 == 0)
    B = 2
    in_channels = 4
    hidden = 8                 # -> hidden*8 = 64
    vit_embed_dim = 128
    n_patches = 8
    n_pixels = 128
    N = B * n_pixels           # 256 total graph nodes

    key = jax.random.PRNGKey(0)
    k_x, k_vit, k_p = jax.random.split(key, 3)

    x = jax.random.normal(k_x, (N, in_channels), jnp.float32)
    vit_output = jax.random.normal(k_vit, (B, n_patches, vit_embed_dim), jnp.float32)
    # simple ring graph over the N nodes
    src = jnp.arange(N, dtype=jnp.int32)
    dst = (src + 1) % N
    edge_index = jnp.stack([src, dst], axis=0)     # [2, N]

    params = init_params(k_p, in_channels, hidden, vit_embed_dim, n_patches, n_pixels)
    prep = prepare_params(params, vit_embed_dim)   # one-time param prep (hoisted)

    # row_tile=128 -> grid = (4 layers, 2 row tiles): exercises the tiled path
    out = graph_encoder_forward(prep, x, edge_index, vit_output, row_tile=128)
    out = jax.block_until_ready(out)
    assert out.shape == (B, n_patches, vit_embed_dim), out.shape
    assert out.dtype == jnp.float32
    print("KERNEL_OK")
</pallas_src>

<mosaic_0001>
module attributes {stable_mosaic.version = 11 : i64} {
  func.func @_fused_graph_encoder_kernel(%arg0: i32, %arg1: i32, %arg2: memref<128x256xbf16, #tpu.memory_space<vmem>>, %arg3: memref<256x4xf32, #tpu.memory_space<vmem>>, %arg4: memref<4x8xf32, #tpu.memory_space<vmem>>, %arg5: memref<1x8xf32, #tpu.memory_space<vmem>>, %arg6: memref<8x16xf32, #tpu.memory_space<vmem>>, %arg7: memref<1x16xf32, #tpu.memory_space<vmem>>, %arg8: memref<2x16xf32, #tpu.memory_space<vmem>>, %arg9: memref<16x32xf32, #tpu.memory_space<vmem>>, %arg10: memref<1x32xf32, #tpu.memory_space<vmem>>, %arg11: memref<32x64xf32, #tpu.memory_space<vmem>>, %arg12: memref<1x64xf32, #tpu.memory_space<vmem>>, %arg13: memref<2x64xf32, #tpu.memory_space<vmem>>, %arg14: memref<2x8x128xf32, #tpu.memory_space<vmem>>, %arg15: memref<8x128xf32, #tpu.memory_space<vmem>>, %arg16: memref<8x1xf32, #tpu.memory_space<vmem>>, %arg17: memref<128x128xf32, #tpu.memory_space<vmem>>, %arg18: memref<64x128xf32, #tpu.memory_space<vmem>>, %arg19: memref<1x128xf32, #tpu.memory_space<vmem>>, %arg20: memref<2x8x128xf32, #tpu.memory_space<vmem>>, %arg21: memref<256x8xf32, #tpu.memory_space<vmem>>, %arg22: memref<256x16xf32, #tpu.memory_space<vmem>>, %arg23: memref<256x32xf32, #tpu.memory_space<vmem>>, %arg24: memref<256x64xf32, #tpu.memory_space<vmem>>, %arg25: memref<256x8xbf16, #tpu.memory_space<vmem>>, %arg26: memref<256x16xbf16, #tpu.memory_space<vmem>>, %arg27: memref<256x32xbf16, #tpu.memory_space<vmem>>, %arg28: memref<256x64xbf16, #tpu.memory_space<vmem>>) attributes {dimension_semantics = [#tpu.dimension_semantics<arbitrary>, #tpu.dimension_semantics<arbitrary>], iteration_bounds = array<i64: 4, 2>, scalar_prefetch = 0 : i64, scratch_operands = 8 : i64, tpu.core_type = #tpu.core_type<tc>, window_params = [{transform_indices = @transform_0, window_bounds = array<i64: 128, 256>}, {pipeline_mode = #tpu.pipeline_mode<synchronous>, transform_indices = @transform_1, window_bounds = array<i64: 256, 4>}, {pipeline_mode = #tpu.pipeline_mode<synchronous>, transform_indices = @transform_2, window_bounds = array<i64: 4, 8>}, {pipeline_mode = #tpu.pipeline_mode<synchronous>, transform_indices = @transform_3, window_bounds = array<i64: 1, 8>}, {pipeline_mode = #tpu.pipeline_mode<synchronous>, transform_indices = @transform_4, window_bounds = array<i64: 8, 16>}, {pipeline_mode = #tpu.pipeline_mode<synchronous>, transform_indices = @transform_5, window_bounds = array<i64: 1, 16>}, {pipeline_mode = #tpu.pipeline_mode<synchronous>, transform_indices = @transform_6, window_bounds = array<i64: 2, 16>}, {pipeline_mode = #tpu.pipeline_mode<synchronous>, transform_indices = @transform_7, window_bounds = array<i64: 16, 32>}, {pipeline_mode = #tpu.pipeline_mode<synchronous>, transform_indices = @transform_8, window_bounds = array<i64: 1, 32>}, {pipeline_mode = #tpu.pipeline_mode<synchronous>, transform_indices = @transform_9, window_bounds = array<i64: 32, 64>}, {pipeline_mode = #tpu.pipeline_mode<synchronous>, transform_indices = @transform_10, window_bounds = array<i64: 1, 64>}, {pipeline_mode = #tpu.pipeline_mode<synchronous>, transform_indices = @transform_11, window_bounds = array<i64: 2, 64>}, {pipeline_mode = #tpu.pipeline_mode<synchronous>, transform_indices = @transform_12, window_bounds = array<i64: 2, 8, 128>}, {pipeline_mode = #tpu.pipeline_mode<synchronous>, transform_indices = @transform_13, window_bounds = array<i64: 8, 128>}, {pipeline_mode = #tpu.pipeline_mode<synchronous>, transform_indices = @transform_14, window_bounds = array<i64: 8, 1>}, {pipeline_mode = #tpu.pipeline_mode<synchronous>, transform_indices = @transform_15, window_bounds = array<i64: 128, 128>}, {pipeline_mode = #tpu.pipeline_mode<synchronous>, transform_indices = @transform_16, window_bounds = array<i64: 64, 128>}, {pipeline_mode = #tpu.pipeline_mode<synchronous>, transform_indices = @transform_17, window_bounds = array<i64: 1, 128>}, {pipeline_mode = #tpu.pipeline_mode<synchronous>, transform_indices = @transform_18, window_bounds = array<i64: 2, 8, 128>}]} {
    %c0_i32 = arith.constant 0 : i32
    %0 = arith.cmpi eq, %arg1, %c0_i32 : i32
    %1 = arith.extui %0 : i1 to i32
    %c0_i32_0 = arith.constant 0 : i32
    %2 = arith.cmpi ne, %1, %c0_i32_0 : i32
    scf.if %2 {
      %c0_i32_10 = arith.constant 0 : i32
      %23 = arith.cmpi eq, %arg0, %c0_i32_10 : i32
      %24 = arith.extui %23 : i1 to i32
      %c0_i32_11 = arith.constant 0 : i32
      %25 = arith.cmpi ne, %24, %c0_i32_11 : i32
      scf.if %25 {
        %c0_18 = arith.constant 0 : index
        %c0_19 = arith.constant 0 : index
        %35 = vector.load %arg3[%c0_18, %c0_19] : memref<256x4xf32, #tpu.memory_space<vmem>>, vector<256x4xf32>
        %c0_20 = arith.constant 0 : index
        %c0_21 = arith.constant 0 : index
        %36 = vector.load %arg4[%c0_20, %c0_21] : memref<4x8xf32, #tpu.memory_space<vmem>>, vector<4x8xf32>
        %cst = arith.constant dense<0.000000e+00> : vector<256x8xf32>
        %37 = tpu.matmul %35, %36, %cst {dimension_numbers = #tpu.dot_dimension_numbers<[1], [0], [0], [1], [0, 0, 1, 1], [], []>} : vector<256x4xf32>, vector<4x8xf32>, vector<256x8xf32> -> vector<256x8xf32>
        %38 = arith.truncf %37 : vector<256x8xf32> to vector<256x8xbf16>
        %c0_22 = arith.constant 0 : index
        %c0_23 = arith.constant 0 : index
        %39 = vector.load %arg25[%c0_22, %c0_23] : memref<256x8xbf16, #tpu.memory_space<vmem>>, vector<256x8xbf16>
        tpu.vector_store %arg25[%c0_22, %c0_23], %38 {strides = array<i32>} : memref<256x8xbf16, #tpu.memory_space<vmem>>, vector<256x8xbf16>,
      } else {
      }
      %c1_i32_12 = arith.constant 1 : i32
      %26 = arith.cmpi eq, %arg0, %c1_i32_12 : i32
      %27 = arith.extui %26 : i1 to i32
      %c0_i32_13 = arith.constant 0 : i32
      %28 = arith.cmpi ne, %27, %c0_i32_13 : i32
      scf.if %28 {
        %c0_18 = arith.constant 0 : index
        %c0_19 = arith.constant 0 : index
        %35 = vector.load %arg21[%c0_18, %c0_19] : memref<256x8xf32, #tpu.memory_space<vmem>>, vector<256x8xf32>
        %cst = arith.constant 0.000000e+00 : f32
        %36 = vector.broadcast %cst : f32 to vector<256x8xf32>
        %37 = arith.maximumf %35, %36 : vector<256x8xf32>
        %c0_20 = arith.constant 0 : index
        %c0_21 = arith.constant 0 : index
        %38 = vector.load %arg6[%c0_20, %c0_21] : memref<8x16xf32, #tpu.memory_space<vmem>>, vector<8x16xf32>
        %cst_22 = arith.constant dense<0.000000e+00> : vector<256x16xf32>
        %39 = tpu.matmul %37, %38, %cst_22 {dimension_numbers = #tpu.dot_dimension_numbers<[1], [0], [0], [1], [0, 0, 1, 1], [], []>} : vector<256x8xf32>, vector<8x16xf32>, vector<256x16xf32> -> vector<256x16xf32>
        %40 = arith.truncf %39 : vector<256x16xf32> to vector<256x16xbf16>
        %c0_23 = arith.constant 0 : index
        %c0_24 = arith.constant 0 : index
        %41 = vector.load %arg26[%c0_23, %c0_24] : memref<256x16xbf16, #tpu.memory_space<vmem>>, vector<256x16xbf16>
        tpu.vector_store %arg26[%c0_23, %c0_24], %40 {strides = array<i32>} : memref<256x16xbf16, #tpu.memory_space<vmem>>, vector<256x16xbf16>,
      } else {
      }
      %c2_i32_14 = arith.constant 2 : i32
      %29 = arith.cmpi eq, %arg0, %c2_i32_14 : i32
      %30 = arith.extui %29 : i1 to i32
      %c0_i32_15 = arith.constant 0 : i32
      %31 = arith.cmpi ne, %30, %c0_i32_15 : i32
      scf.if %31 {
        %c0_18 = arith.constant 0 : index
        %c0_19 = arith.constant 0 : index
        %35 = vector.load %arg22[%c0_18, %c0_19] : memref<256x16xf32, #tpu.memory_space<vmem>>, vector<256x16xf32>
        %c0_20 = arith.constant 0 : index
        %c0_21 = arith.constant 0 : index
        %36 = vector.load %arg8[%c0_20, %c0_21] : memref<2x16xf32, #tpu.memory_space<vmem>>, vector<2x16xf32>
        %cst = arith.constant dense<0.000000e+00> : vector<16xf32>
        %37 = vector.multi_reduction <add>, %35, %cst [0] : vector<256x16xf32> to vector<16xf32>
        %38 = vector.shape_cast %37 : vector<16xf32> to vector<1x16xf32>
        %cst_22 = arith.constant 2.560000e+02 : f32
        %39 = vector.broadcast %cst_22 : f32 to vector<1x16xf32>
        %40 = arith.divf %38, %39 : vector<1x16xf32>
        %41 = vector.broadcast %40 : vector<1x16xf32> to vector<256x16xf32>
        %42 = arith.subf %35, %41 : vector<256x16xf32>
        %43 = arith.mulf %42, %42 : vector<256x16xf32>
        %cst_23 = arith.constant dense<0.000000e+00> : vector<16xf32>
        %44 = vector.multi_reduction <add>, %43, %cst_23 [0] : vector<256x16xf32> to vector<16xf32>
        %45 = vector.shape_cast %44 : vector<16xf32> to vector<1x16xf32>
        %cst_24 = arith.constant 2.560000e+02 : f32
        %46 = vector.broadcast %cst_24 : f32 to vector<1x16xf32>
        %47 = arith.divf %45, %46 : vector<1x16xf32>
        %48 = vector.broadcast %40 : vector<1x16xf32> to vector<256x16xf32>
        %49 = arith.subf %35, %48 : vector<256x16xf32>
        %cst_25 = arith.constant 9.99999974E-6 : f32
        %50 = vector.broadcast %cst_25 : f32 to vector<1x16xf32>
        %51 = arith.addf %47, %50 : vector<1x16xf32>
        %52 = math.rsqrt %51 : vector<1x16xf32>
        %53 = vector.broadcast %52 : vector<1x16xf32> to vector<256x16xf32>
        %54 = arith.mulf %49, %53 : vector<256x16xf32>
        %55 = vector.extract_strided_slice %36 {offsets = [0, 0], sizes = [1, 16], strides = [1, 1]} : vector<2x16xf32> to vector<1x16xf32>
        %56 = vector.broadcast %55 : vector<1x16xf32> to vector<256x16xf32>
        %57 = arith.mulf %54, %56 : vector<256x16xf32>
        %58 = vector.extract_strided_slice %36 {offsets = [1, 0], sizes = [1, 16], strides = [1, 1]} : vector<2x16xf32> to vector<1x16xf32>
        %59 = vector.broadcast %58 : vector<1x16xf32> to vector<256x16xf32>
        %60 = arith.addf %57, %59 : vector<256x16xf32>
        %cst_26 = arith.constant 0.000000e+00 : f32
        %61 = vector.broadcast %cst_26 : f32 to vector<256x16xf32>
        %62 = arith.maximumf %60, %61 : vector<256x16xf32>
        %c0_27 = arith.constant 0 : index
        %c0_28 = arith.constant 0 : index
        %63 = vector.load %arg9[%c0_27, %c0_28] : memref<16x32xf32, #tpu.memory_space<vmem>>, vector<16x32xf32>
        %cst_29 = arith.constant dense<0.000000e+00> : vector<256x32xf32>
        %64 = tpu.matmul %62, %63, %cst_29 {dimension_numbers = #tpu.dot_dimension_numbers<[1], [0], [0], [1], [0, 0, 1, 1], [], []>} : vector<256x16xf32>, vector<16x32xf32>, vector<256x32xf32> -> vector<256x32xf32>
        %65 = arith.truncf %64 : vector<256x32xf32> to vector<256x32xbf16>
        %c0_30 = arith.constant 0 : index
        %c0_31 = arith.constant 0 : index
        %66 = vector.load %arg27[%c0_30, %c0_31] : memref<256x32xbf16, #tpu.memory_space<vmem>>, vector<256x32xbf16>
        tpu.vector_store %arg27[%c0_30, %c0_31], %65 {strides = array<i32>} : memref<256x32xbf16, #tpu.memory_space<vmem>>, vector<256x32xbf16>,
      } else {
      }
      %c3_i32_16 = arith.constant 3 : i32
      %32 = arith.cmpi eq, %arg0, %c3_i32_16 : i32
      %33 = arith.extui %32 : i1 to i32
      %c0_i32_17 = arith.constant 0 : i32
      %34 = arith.cmpi ne, %33, %c0_i32_17 : i32
      scf.if %34 {
        %c0_18 = arith.constant 0 : index
        %c0_19 = arith.constant 0 : index
        %35 = vector.load %arg23[%c0_18, %c0_19] : memref<256x32xf32, #tpu.memory_space<vmem>>, vector<256x32xf32>
        %cst = arith.constant 0.000000e+00 : f32
        %36 = vector.broadcast %cst : f32 to vector<256x32xf32>
        %37 = arith.maximumf %35, %36 : vector<256x32xf32>
        %c0_20 = arith.constant 0 : index
        %c0_21 = arith.constant 0 : index
        %38 = vector.load %arg11[%c0_20, %c0_21] : memref<32x64xf32, #tpu.memory_space<vmem>>, vector<32x64xf32>
        %cst_22 = arith.constant dense<0.000000e+00> : vector<256x64xf32>
        %39 = tpu.matmul %37, %38, %cst_22 {dimension_numbers = #tpu.dot_dimension_numbers<[1], [0], [0], [1], [0, 0, 1, 1], [], []>} : vector<256x32xf32>, vector<32x64xf32>, vector<256x64xf32> -> vector<256x64xf32>
        %40 = arith.truncf %39 : vector<256x64xf32> to vector<256x64xbf16>
        %c0_23 = arith.constant 0 : index
        %c0_24 = arith.constant 0 : index
        %41 = vector.load %arg28[%c0_23, %c0_24] : memref<256x64xbf16, #tpu.memory_space<vmem>>, vector<256x64xbf16>
        tpu.vector_store %arg28[%c0_23, %c0_24], %40 {strides = array<i32>} : memref<256x64xbf16, #tpu.memory_space<vmem>>, vector<256x64xbf16>,
      } else {
      }
    } else {
    }
    %c128_i32 = arith.constant 128 : i32
    %3 = arith.muli %arg1, %c128_i32 : i32
    %4 = tpu.assume_multiple %3, 128 : i32
    %c0 = arith.constant 0 : index
    %c0_1 = arith.constant 0 : index
    %5 = vector.load %arg2[%c0, %c0_1] : memref<128x256xbf16, #tpu.memory_space<vmem>>, vector<128x256xbf16>
    %c0_i32_2 = arith.constant 0 : i32
    %6 = arith.cmpi eq, %arg0, %c0_i32_2 : i32
    %7 = arith.extui %6 : i1 to i32
    %c0_i32_3 = arith.constant 0 : i32
    %8 = arith.cmpi ne, %7, %c0_i32_3 : i32
    scf.if %8 {
      %c0_10 = arith.constant 0 : index
      %c0_11 = arith.constant 0 : index
      %23 = vector.load %arg25[%c0_10, %c0_11] : memref<256x8xbf16, #tpu.memory_space<vmem>>, vector<256x8xbf16>
      %cst = arith.constant dense<0.000000e+00> : vector<128x8xf32>
      %24 = tpu.matmul %5, %23, %cst {dimension_numbers = #tpu.dot_dimension_numbers<[1], [0], [0], [1], [0, 0, 1, 1], [], []>} : vector<128x256xbf16>, vector<256x8xbf16>, vector<128x8xf32> -> vector<128x8xf32>
      %c0_12 = arith.constant 0 : index
      %c0_13 = arith.constant 0 : index
      %25 = vector.load %arg5[%c0_12, %c0_13] : memref<1x8xf32, #tpu.memory_space<vmem>>, vector<1x8xf32>
      %26 = vector.broadcast %25 : vector<1x8xf32> to vector<128x8xf32>
      %27 = arith.addf %24, %26 : vector<128x8xf32>
      %28 = arith.index_cast %4 : i32 to index
      %c0_14 = arith.constant 0 : index
      %29 = vector.load %arg21[%28, %c0_14] : memref<256x8xf32, #tpu.memory_space<vmem>>, vector<128x8xf32>
      tpu.vector_store %arg21[%28, %c0_14], %27 {strides = array<i32>} : memref<256x8xf32, #tpu.memory_space<vmem>>, vector<128x8xf32>,
    } else {
    }
    %c1_i32 = arith.constant 1 : i32
    %9 = arith.cmpi eq, %arg0, %c1_i32 : i32
    %10 = arith.extui %9 : i1 to i32
    %c0_i32_4 = arith.constant 0 : i32
    %11 = arith.cmpi ne, %10, %c0_i32_4 : i32
    scf.if %11 {
      %c0_10 = arith.constant 0 : index
      %c0_11 = arith.constant 0 : index
      %23 = vector.load %arg26[%c0_10, %c0_11] : memref<256x16xbf16, #tpu.memory_space<vmem>>, vector<256x16xbf16>
      %cst = arith.constant dense<0.000000e+00> : vector<128x16xf32>
      %24 = tpu.matmul %5, %23, %cst {dimension_numbers = #tpu.dot_dimension_numbers<[1], [0], [0], [1], [0, 0, 1, 1], [], []>} : vector<128x256xbf16>, vector<256x16xbf16>, vector<128x16xf32> -> vector<128x16xf32>
      %c0_12 = arith.constant 0 : index
      %c0_13 = arith.constant 0 : index
      %25 = vector.load %arg7[%c0_12, %c0_13] : memref<1x16xf32, #tpu.memory_space<vmem>>, vector<1x16xf32>
      %26 = vector.broadcast %25 : vector<1x16xf32> to vector<128x16xf32>
      %27 = arith.addf %24, %26 : vector<128x16xf32>
      %28 = arith.index_cast %4 : i32 to index
      %c0_14 = arith.constant 0 : index
      %29 = vector.load %arg22[%28, %c0_14] : memref<256x16xf32, #tpu.memory_space<vmem>>, vector<128x16xf32>
      tpu.vector_store %arg22[%28, %c0_14], %27 {strides = array<i32>} : memref<256x16xf32, #tpu.memory_space<vmem>>, vector<128x16xf32>,
    } else {
    }
    %c2_i32 = arith.constant 2 : i32
    %12 = arith.cmpi eq, %arg0, %c2_i32 : i32
    %13 = arith.extui %12 : i1 to i32
    %c0_i32_5 = arith.constant 0 : i32
    %14 = arith.cmpi ne, %13, %c0_i32_5 : i32
    scf.if %14 {
      %c0_10 = arith.constant 0 : index
      %c0_11 = arith.constant 0 : index
      %23 = vector.load %arg27[%c0_10, %c0_11] : memref<256x32xbf16, #tpu.memory_space<vmem>>, vector<256x32xbf16>
      %cst = arith.constant dense<0.000000e+00> : vector<128x32xf32>
      %24 = tpu.matmul %5, %23, %cst {dimension_numbers = #tpu.dot_dimension_numbers<[1], [0], [0], [1], [0, 0, 1, 1], [], []>} : vector<128x256xbf16>, vector<256x32xbf16>, vector<128x32xf32> -> vector<128x32xf32>
      %c0_12 = arith.constant 0 : index
      %c0_13 = arith.constant 0 : index
      %25 = vector.load %arg10[%c0_12, %c0_13] : memref<1x32xf32, #tpu.memory_space<vmem>>, vector<1x32xf32>
      %26 = vector.broadcast %25 : vector<1x32xf32> to vector<128x32xf32>
      %27 = arith.addf %24, %26 : vector<128x32xf32>
      %28 = arith.index_cast %4 : i32 to index
      %c0_14 = arith.constant 0 : index
      %29 = vector.load %arg23[%28, %c0_14] : memref<256x32xf32, #tpu.memory_space<vmem>>, vector<128x32xf32>
      tpu.vector_store %arg23[%28, %c0_14], %27 {strides = array<i32>} : memref<256x32xf32, #tpu.memory_space<vmem>>, vector<128x32xf32>,
    } else {
    }
    %c3_i32 = arith.constant 3 : i32
    %15 = arith.cmpi eq, %arg0, %c3_i32 : i32
    %16 = arith.extui %15 : i1 to i32
    %c0_i32_6 = arith.constant 0 : i32
    %17 = arith.cmpi ne, %16, %c0_i32_6 : i32
    scf.if %17 {
      %c0_10 = arith.constant 0 : index
      %c0_11 = arith.constant 0 : index
      %23 = vector.load %arg28[%c0_10, %c0_11] : memref<256x64xbf16, #tpu.memory_space<vmem>>, vector<256x64xbf16>
      %cst = arith.constant dense<0.000000e+00> : vector<128x64xf32>
      %24 = tpu.matmul %5, %23, %cst {dimension_numbers = #tpu.dot_dimension_numbers<[1], [0], [0], [1], [0, 0, 1, 1], [], []>} : vector<128x256xbf16>, vector<256x64xbf16>, vector<128x64xf32> -> vector<128x64xf32>
      %c0_12 = arith.constant 0 : index
      %c0_13 = arith.constant 0 : index
      %25 = vector.load %arg12[%c0_12, %c0_13] : memref<1x64xf32, #tpu.memory_space<vmem>>, vector<1x64xf32>
      %26 = vector.broadcast %25 : vector<1x64xf32> to vector<128x64xf32>
      %27 = arith.addf %24, %26 : vector<128x64xf32>
      %28 = arith.index_cast %4 : i32 to index
      %c0_14 = arith.constant 0 : index
      %29 = vector.load %arg24[%28, %c0_14] : memref<256x64xf32, #tpu.memory_space<vmem>>, vector<128x64xf32>
      tpu.vector_store %arg24[%28, %c0_14], %27 {strides = array<i32>} : memref<256x64xf32, #tpu.memory_space<vmem>>, vector<128x64xf32>,
    } else {
    }
    %c3_i32_7 = arith.constant 3 : i32
    %18 = arith.cmpi eq, %arg0, %c3_i32_7 : i32
    %c1_i32_8 = arith.constant 1 : i32
    %19 = arith.cmpi eq, %arg1, %c1_i32_8 : i32
    %20 = arith.andi %18, %19 : i1
    %21 = arith.extui %20 : i1 to i32
    %c0_i32_9 = arith.constant 0 : i32
    %22 = arith.cmpi ne, %21, %c0_i32_9 : i32
    scf.if %22 {
      %c0_10 = arith.constant 0 : index
      %c0_11 = arith.constant 0 : index
      %23 = vector.load %arg24[%c0_10, %c0_11] : memref<256x64xf32, #tpu.memory_space<vmem>>, vector<256x64xf32>
      %c0_12 = arith.constant 0 : index
      %c0_13 = arith.constant 0 : index
      %24 = vector.load %arg13[%c0_12, %c0_13] : memref<2x64xf32, #tpu.memory_space<vmem>>, vector<2x64xf32>
      %cst = arith.constant dense<0.000000e+00> : vector<64xf32>
      %25 = vector.multi_reduction <add>, %23, %cst [0] : vector<256x64xf32> to vector<64xf32>
      %26 = vector.shape_cast %25 : vector<64xf32> to vector<1x64xf32>
      %cst_14 = arith.constant 2.560000e+02 : f32
      %27 = vector.broadcast %cst_14 : f32 to vector<1x64xf32>
      %28 = arith.divf %26, %27 : vector<1x64xf32>
      %29 = vector.broadcast %28 : vector<1x64xf32> to vector<256x64xf32>
      %30 = arith.subf %23, %29 : vector<256x64xf32>
      %31 = arith.mulf %30, %30 : vector<256x64xf32>
      %cst_15 = arith.constant dense<0.000000e+00> : vector<64xf32>
      %32 = vector.multi_reduction <add>, %31, %cst_15 [0] : vector<256x64xf32> to vector<64xf32>
      %33 = vector.shape_cast %32 : vector<64xf32> to vector<1x64xf32>
      %cst_16 = arith.constant 2.560000e+02 : f32
      %34 = vector.broadcast %cst_16 : f32 to vector<1x64xf32>
      %35 = arith.divf %33, %34 : vector<1x64xf32>
      %36 = vector.broadcast %28 : vector<1x64xf32> to vector<256x64xf32>
      %37 = arith.subf %23, %36 : vector<256x64xf32>
      %cst_17 = arith.constant 9.99999974E-6 : f32
      %38 = vector.broadcast %cst_17 : f32 to vector<1x64xf32>
      %39 = arith.addf %35, %38 : vector<1x64xf32>
      %40 = math.rsqrt %39 : vector<1x64xf32>
      %41 = vector.broadcast %40 : vector<1x64xf32> to vector<256x64xf32>
      %42 = arith.mulf %37, %41 : vector<256x64xf32>
      %43 = vector.extract_strided_slice %24 {offsets = [0, 0], sizes = [1, 64], strides = [1, 1]} : vector<2x64xf32> to vector<1x64xf32>
      %44 = vector.broadcast %43 : vector<1x64xf32> to vector<256x64xf32>
      %45 = arith.mulf %42, %44 : vector<256x64xf32>
      %46 = vector.extract_strided_slice %24 {offsets = [1, 0], sizes = [1, 64], strides = [1, 1]} : vector<2x64xf32> to vector<1x64xf32>
      %47 = vector.broadcast %46 : vector<1x64xf32> to vector<256x64xf32>
      %48 = arith.addf %45, %47 : vector<256x64xf32>
      %cst_18 = arith.constant 0.000000e+00 : f32
      %49 = vector.broadcast %cst_18 : f32 to vector<256x64xf32>
      %50 = arith.maximumf %48, %49 : vector<256x64xf32>
      %51 = vector.extract_strided_slice %50 {offsets = [0, 0], sizes = [128, 64], strides = [1, 1]} : vector<256x64xf32> to vector<128x64xf32>
      %c0_19 = arith.constant 0 : index
      %c0_20 = arith.constant 0 : index
      %52 = vector.load %arg15[%c0_19, %c0_20] : memref<8x128xf32, #tpu.memory_space<vmem>>, vector<8x128xf32>
      %cst_21 = arith.constant dense<0.000000e+00> : vector<8x64xf32>
      %53 = tpu.matmul %52, %51, %cst_21 {dimension_numbers = #tpu.dot_dimension_numbers<[1], [0], [0], [1], [0, 0, 1, 1], [], []>} : vector<8x128xf32>, vector<128x64xf32>, vector<8x64xf32> -> vector<8x64xf32>
      %c0_22 = arith.constant 0 : index
      %c0_23 = arith.constant 0 : index
      %54 = vector.load %arg16[%c0_22, %c0_23] : memref<8x1xf32, #tpu.memory_space<vmem>>, vector<8x1xf32>
      %55 = vector.broadcast %54 : vector<8x1xf32> to vector<8x64xf32>
      %56 = arith.addf %53, %55 : vector<8x64xf32>
      %c0_24 = arith.constant 0 : index
      %c0_25 = arith.constant 0 : index
      %c0_26 = arith.constant 0 : index
      %57 = vector.load %arg14[%c0_24, %c0_25, %c0_26] : memref<2x8x128xf32, #tpu.memory_space<vmem>>, vector<1x8x128xf32>
      %58 = vector.shape_cast %57 : vector<1x8x128xf32> to vector<8x128xf32>
      %c0_27 = arith.constant 0 : index
      %c0_28 = arith.constant 0 : index
      %59 = vector.load %arg17[%c0_27, %c0_28] : memref<128x128xf32, #tpu.memory_space<vmem>>, vector<128x128xf32>
      %cst_29 = arith.constant dense<0.000000e+00> : vector<8x128xf32>
      %60 = tpu.matmul %58, %59, %cst_29 {dimension_numbers = #tpu.dot_dimension_numbers<[1], [0], [0], [1], [0, 0, 1, 1], [], []>} : vector<8x128xf32>, vector<128x128xf32>, vector<8x128xf32> -> vector<8x128xf32>
      %c0_30 = arith.constant 0 : index
      %c0_31 = arith.constant 0 : index
      %61 = vector.load %arg18[%c0_30, %c0_31] : memref<64x128xf32, #tpu.memory_space<vmem>>, vector<64x128xf32>
      %cst_32 = arith.constant dense<0.000000e+00> : vector<8x128xf32>
      %62 = tpu.matmul %56, %61, %cst_32 {dimension_numbers = #tpu.dot_dimension_numbers<[1], [0], [0], [1], [0, 0, 1, 1], [], []>} : vector<8x64xf32>, vector<64x128xf32>, vector<8x128xf32> -> vector<8x128xf32>
      %63 = arith.addf %60, %62 : vector<8x128xf32>
      %c0_33 = arith.constant 0 : index
      %c0_34 = arith.constant 0 : index
      %64 = vector.load %arg19[%c0_33, %c0_34] : memref<1x128xf32, #tpu.memory_space<vmem>>, vector<1x128xf32>
      %65 = vector.broadcast %64 : vector<1x128xf32> to vector<8x128xf32>
      %66 = arith.addf %63, %65 : vector<8x128xf32>
      %c0_35 = arith.constant 0 : index
      %c0_36 = arith.constant 0 : index
      %c0_37 = arith.constant 0 : index
      %67 = vector.load %arg20[%c0_35, %c0_36, %c0_37] : memref<2x8x128xf32, #tpu.memory_space<vmem>>, vector<1x8x128xf32>
      %68 = vector.shape_cast %67 : vector<1x8x128xf32> to vector<8x128xf32>
      %69 = vector.shape_cast %66 : vector<8x128xf32> to vector<1x8x128xf32>
      tpu.vector_store %arg20[%c0_35, %c0_36, %c0_37], %69 {strides = array<i32>} : memref<2x8x128xf32, #tpu.memory_space<vmem>>, vector<1x8x128xf32>,
      %70 = vector.extract_strided_slice %50 {offsets = [128, 0], sizes = [128, 64], strides = [1, 1]} : vector<256x64xf32> to vector<128x64xf32>
      %c0_38 = arith.constant 0 : index
      %c0_39 = arith.constant 0 : index
      %71 = vector.load %arg15[%c0_38, %c0_39] : memref<8x128xf32, #tpu.memory_space<vmem>>, vector<8x128xf32>
      %cst_40 = arith.constant dense<0.000000e+00> : vector<8x64xf32>
      %72 = tpu.matmul %71, %70, %cst_40 {dimension_numbers = #tpu.dot_dimension_numbers<[1], [0], [0], [1], [0, 0, 1, 1], [], []>} : vector<8x128xf32>, vector<128x64xf32>, vector<8x64xf32> -> vector<8x64xf32>
      %c0_41 = arith.constant 0 : index
      %c0_42 = arith.constant 0 : index
      %73 = vector.load %arg16[%c0_41, %c0_42] : memref<8x1xf32, #tpu.memory_space<vmem>>, vector<8x1xf32>
      %74 = vector.broadcast %73 : vector<8x1xf32> to vector<8x64xf32>
      %75 = arith.addf %72, %74 : vector<8x64xf32>
      %c1 = arith.constant 1 : index
      %c0_43 = arith.constant 0 : index
      %c0_44 = arith.constant 0 : index
      %76 = vector.load %arg14[%c1, %c0_43, %c0_44] : memref<2x8x128xf32, #tpu.memory_space<vmem>>, vector<1x8x128xf32>
      %77 = vector.shape_cast %76 : vector<1x8x128xf32> to vector<8x128xf32>
      %c0_45 = arith.constant 0 : index
      %c0_46 = arith.constant 0 : index
      %78 = vector.load %arg17[%c0_45, %c0_46] : memref<128x128xf32, #tpu.memory_space<vmem>>, vector<128x128xf32>
      %cst_47 = arith.constant dense<0.000000e+00> : vector<8x128xf32>
      %79 = tpu.matmul %77, %78, %cst_47 {dimension_numbers = #tpu.dot_dimension_numbers<[1], [0], [0], [1], [0, 0, 1, 1], [], []>} : vector<8x128xf32>, vector<128x128xf32>, vector<8x128xf32> -> vector<8x128xf32>
      %c0_48 = arith.constant 0 : index
      %c0_49 = arith.constant 0 : index
      %80 = vector.load %arg18[%c0_48, %c0_49] : memref<64x128xf32, #tpu.memory_space<vmem>>, vector<64x128xf32>
      %cst_50 = arith.constant dense<0.000000e+00> : vector<8x128xf32>
      %81 = tpu.matmul %75, %80, %cst_50 {dimension_numbers = #tpu.dot_dimension_numbers<[1], [0], [0], [1], [0, 0, 1, 1], [], []>} : vector<8x64xf32>, vector<64x128xf32>, vector<8x128xf32> -> vector<8x128xf32>
      %82 = arith.addf %79, %81 : vector<8x128xf32>
      %c0_51 = arith.constant 0 : index
      %c0_52 = arith.constant 0 : index
      %83 = vector.load %arg19[%c0_51, %c0_52] : memref<1x128xf32, #tpu.memory_space<vmem>>, vector<1x128xf32>
      %84 = vector.broadcast %83 : vector<1x128xf32> to vector<8x128xf32>
      %85 = arith.addf %82, %84 : vector<8x128xf32>
      %c1_53 = arith.constant 1 : index
      %c0_54 = arith.constant 0 : index
      %c0_55 = arith.constant 0 : index
      %86 = vector.load %arg20[%c1_53, %c0_54, %c0_55] : memref<2x8x128xf32, #tpu.memory_space<vmem>>, vector<1x8x128xf32>
      %87 = vector.shape_cast %86 : vector<1x8x128xf32> to vector<8x128xf32>
      %88 = vector.shape_cast %85 : vector<8x128xf32> to vector<1x8x128xf32>
      tpu.vector_store %arg20[%c1_53, %c0_54, %c0_55], %88 {strides = array<i32>} : memref<2x8x128xf32, #tpu.memory_space<vmem>>, vector<1x8x128xf32>,
    } else {
    }
    return
  }
  func.func @transform_0(%arg0: i32, %arg1: i32) -> (i32, i32) {
    %c0_i32 = arith.constant 0 : i32
    %c0_i32_0 = arith.constant 0 : i32
    return %arg1, %c0_i32 : i32, i32
  }
  func.func @transform_1(%arg0: i32, %arg1: i32) -> (i32, i32) {
    %c0_i32 = arith.constant 0 : i32
    %c0_i32_0 = arith.constant 0 : i32
    %c0_i32_1 = arith.constant 0 : i32
    return %c0_i32, %c0_i32_0 : i32, i32
  }
  func.func @transform_2(%arg0: i32, %arg1: i32) -> (i32, i32) {
    %c0_i32 = arith.constant 0 : i32
    %c0_i32_0 = arith.constant 0 : i32
    %c0_i32_1 = arith.constant 0 : i32
    return %c0_i32, %c0_i32_0 : i32, i32
  }
  func.func @transform_3(%arg0: i32, %arg1: i32) -> (i32, i32) {
    %c0_i32 = arith.constant 0 : i32
    %c0_i32_0 = arith.constant 0 : i32
    %c0_i32_1 = arith.constant 0 : i32
    return %c0_i32, %c0_i32_0 : i32, i32
  }
  func.func @transform_4(%arg0: i32, %arg1: i32) -> (i32, i32) {
    %c0_i32 = arith.constant 0 : i32
    %c0_i32_0 = arith.constant 0 : i32
    %c0_i32_1 = arith.constant 0 : i32
    return %c0_i32, %c0_i32_0 : i32, i32
  }
  func.func @transform_5(%arg0: i32, %arg1: i32) -> (i32, i32) {
    %c0_i32 = arith.constant 0 : i32
    %c0_i32_0 = arith.constant 0 : i32
    %c0_i32_1 = arith.constant 0 : i32
    return %c0_i32, %c0_i32_0 : i32, i32
  }
  func.func @transform_6(%arg0: i32, %arg1: i32) -> (i32, i32) {
    %c0_i32 = arith.constant 0 : i32
    %c0_i32_0 = arith.constant 0 : i32
    %c0_i32_1 = arith.constant 0 : i32
    return %c0_i32, %c0_i32_0 : i32, i32
  }
  func.func @transform_7(%arg0: i32, %arg1: i32) -> (i32, i32) {
    %c0_i32 = arith.constant 0 : i32
    %c0_i32_0 = arith.constant 0 : i32
    %c0_i32_1 = arith.constant 0 : i32
    return %c0_i32, %c0_i32_0 : i32, i32
  }
  func.func @transform_8(%arg0: i32, %arg1: i32) -> (i32, i32) {
    %c0_i32 = arith.constant 0 : i32
    %c0_i32_0 = arith.constant 0 : i32
    %c0_i32_1 = arith.constant 0 : i32
    return %c0_i32, %c0_i32_0 : i32, i32
  }
  func.func @transform_9(%arg0: i32, %arg1: i32) -> (i32, i32) {
    %c0_i32 = arith.constant 0 : i32
    %c0_i32_0 = arith.constant 0 : i32
    %c0_i32_1 = arith.constant 0 : i32
    return %c0_i32, %c0_i32_0 : i32, i32
  }
  func.func @transform_10(%arg0: i32, %arg1: i32) -> (i32, i32) {
    %c0_i32 = arith.constant 0 : i32
    %c0_i32_0 = arith.constant 0 : i32
    %c0_i32_1 = arith.constant 0 : i32
    return %c0_i32, %c0_i32_0 : i32, i32
  }
  func.func @transform_11(%arg0: i32, %arg1: i32) -> (i32, i32) {
    %c0_i32 = arith.constant 0 : i32
    %c0_i32_0 = arith.constant 0 : i32
    %c0_i32_1 = arith.constant 0 : i32
    return %c0_i32, %c0_i32_0 : i32, i32
  }
  func.func @transform_12(%arg0: i32, %arg1: i32) -> (i32, i32, i32) {
    %c0_i32 = arith.constant 0 : i32
    %c0_i32_0 = arith.constant 0 : i32
    %c0_i32_1 = arith.constant 0 : i32
    %c0_i32_2 = arith.constant 0 : i32
    return %c0_i32, %c0_i32_0, %c0_i32_1 : i32, i32, i32
  }
  func.func @transform_13(%arg0: i32, %arg1: i32) -> (i32, i32) {
    %c0_i32 = arith.constant 0 : i32
    %c0_i32_0 = arith.constant 0 : i32
    %c0_i32_1 = arith.constant 0 : i32
    return %c0_i32, %c0_i32_0 : i32, i32
  }
  func.func @transform_14(%arg0: i32, %arg1: i32) -> (i32, i32) {
    %c0_i32 = arith.constant 0 : i32
    %c0_i32_0 = arith.constant 0 : i32
    %c0_i32_1 = arith.constant 0 : i32
    return %c0_i32, %c0_i32_0 : i32, i32
  }
  func.func @transform_15(%arg0: i32, %arg1: i32) -> (i32, i32) {
    %c0_i32 = arith.constant 0 : i32
    %c0_i32_0 = arith.constant 0 : i32
    %c0_i32_1 = arith.constant 0 : i32
    return %c0_i32, %c0_i32_0 : i32, i32
  }
  func.func @transform_16(%arg0: i32, %arg1: i32) -> (i32, i32) {
    %c0_i32 = arith.constant 0 : i32
    %c0_i32_0 = arith.constant 0 : i32
    %c0_i32_1 = arith.constant 0 : i32
    return %c0_i32, %c0_i32_0 : i32, i32
  }
  func.func @transform_17(%arg0: i32, %arg1: i32) -> (i32, i32) {
    %c0_i32 = arith.constant 0 : i32
    %c0_i32_0 = arith.constant 0 : i32
    %c0_i32_1 = arith.constant 0 : i32
    return %c0_i32, %c0_i32_0 : i32, i32
  }
  func.func @transform_18(%arg0: i32, %arg1: i32) -> (i32, i32, i32) {
    %c0_i32 = arith.constant 0 : i32
    %c0_i32_0 = arith.constant 0 : i32
    %c0_i32_1 = arith.constant 0 : i32
    %c0_i32_2 = arith.constant 0 : i32
    return %c0_i32, %c0_i32_0, %c0_i32_1 : i32, i32, i32
  }
}

</mosaic_0001>

<llo_original>
// kernel: graph_encoder_forward.1
$region0: #{graph_encoder_forward.1}
  #allocation0 [shape = 'u32[]', space=smem, size = 0x4, offset = 0x4, fixed_abs, tag = 'smem constant byte address 0x4 - core index']
  #allocation1 [shape = 'u32[144,128]{1,0:T(1,128)}', space=vmem, size = 0x12000, scoped, tag = 'internal scratch']
  #allocation2 [shape = 'f32[256,8]{1,0:T(8,128)}', space=vmem, size = 0x20000, scoped, tag = 'scratch operand']
  #allocation3 [shape = 'f32[256,16]{1,0:T(8,128)}', space=vmem, size = 0x20000, scoped, tag = 'scratch operand']
  #allocation4 [shape = 'f32[256,32]{1,0:T(8,128)}', space=vmem, size = 0x20000, scoped, tag = 'scratch operand']
  #allocation5 [shape = 'f32[256,64]{1,0:T(8,128)}', space=vmem, size = 0x20000, scoped, tag = 'scratch operand']
  #allocation6 [shape = 'bf16[256,8]{1,0:T(16,128)(2,1)}', space=vmem, size = 0x10000, scoped, tag = 'scratch operand']
  #allocation7 [shape = 'bf16[256,16]{1,0:T(16,128)(2,1)}', space=vmem, size = 0x10000, scoped, tag = 'scratch operand']
  #allocation8 [shape = 'bf16[256,32]{1,0:T(16,128)(2,1)}', space=vmem, size = 0x10000, scoped, tag = 'scratch operand']
  #allocation9 [shape = 'bf16[256,64]{1,0:T(16,128)(2,1)}', space=vmem, size = 0x10000, scoped, tag = 'scratch operand']
  %s0 = inlined_call_operand.vmem [shape: bf16[256,256], index: 0, kind: input, shape index: {}]
  %s1 = inlined_call_operand.vmem [shape: f32[256,4], index: 1, kind: input, shape index: {}]
  %s2 = inlined_call_operand.vmem [shape: f32[4,8], index: 2, kind: input, shape index: {}]
  %s3 = inlined_call_operand.vmem [shape: f32[1,8], index: 3, kind: input, shape index: {}]
  %s4 = inlined_call_operand.vmem [shape: f32[8,16], index: 4, kind: input, shape index: {}]
  %s5 = inlined_call_operand.vmem [shape: f32[1,16], index: 5, kind: input, shape index: {}]
  %s6 = inlined_call_operand.vmem [shape: f32[2,16], index: 6, kind: input, shape index: {}]
  %s7 = inlined_call_operand.vmem [shape: f32[16,32], index: 7, kind: input, shape index: {}]
  %s8 = inlined_call_operand.vmem [shape: f32[1,32], index: 8, kind: input, shape index: {}]
  %s9 = inlined_call_operand.vmem [shape: f32[32,64], index: 9, kind: input, shape index: {}]
  %s10 = inlined_call_operand.vmem [shape: f32[1,64], index: 10, kind: input, shape index: {}]
  %s11 = inlined_call_operand.vmem [shape: f32[2,64], index: 11, kind: input, shape index: {}]
  %s12 = inlined_call_operand.vmem [shape: f32[2,8,128], index: 12, kind: input, shape index: {}]
  %s13 = inlined_call_operand.vmem [shape: f32[8,128], index: 13, kind: input, shape index: {}]
  %s14 = inlined_call_operand.vmem [shape: f32[8,1], index: 14, kind: input, shape index: {}]
  %s15 = inlined_call_operand.vmem [shape: f32[128,128], index: 15, kind: input, shape index: {}]
  %s16 = inlined_call_operand.vmem [shape: f32[64,128], index: 16, kind: input, shape index: {}]
  %s17 = inlined_call_operand.vmem [shape: f32[1,128], index: 17, kind: input, shape index: {}]
  %s18 = inlined_call_operand.hbm [shape: f32[2,8,128], index: 18, kind: output, shape index: {}]
  %s19 = sld [smem:[#allocation0]]
  $region145: #{graph_encoder_forward.1} parent=0
    _
  %s21 = ssub.s32 1, %s19
  %s22 = scalar_select 0, %s21, %s19
  $region1: #{graph_encoder_forward.1} parent=0
    #allocation10 [shape = 'u8[8192]{0}', space=vmem, size = 0x2000, scoped, tag = 'output window, operand 0, single buffered']
    #allocation11 [shape = 's32[2]{0}', space=sflag, size = 0x8, scoped, tag = 'scoped memory for graph_encoder_forward.1']
    %23 = vsyncpa [#allocation11], 0
    loop: start=0, step=1, limit=10
    $region2: #{graph_encoder_forward.1} parent=1 // loop_pre_header
      _
    $region3: #{graph_encoder_forward.1} parent=1 // loop_header
      %s25 = sphi 0, %s29
      %p26 = scmp.ge.s32.totalorder %s25, 10
      %s32 = sphi 0, %s44
      %s33 = sphi 0, %s40
      %s34 = sphi 0, %s32
      %s35 = sphi 0, %s33
      %s36 = sphi 0, %s34
      %s37 = sphi 0, %s35
      %s47 = sphi 0, %s49
      %s50 = sphi 0, %s47
      %s51 = sphi 0, %s50
      %s67 = sphi 0, %s51
      %s71 = sphi 0, %s71
      %s73 = sphi 0, %s71
      %s74 = sphi 0, %s73
      %s88 = sphi 0, %s74
      %s92 = sphi 0, %s92
      %s94 = sphi 0, %s92
      %s95 = sphi 0, %s94
      %s109 = sphi 0, %s95
      %s113 = sphi 0, %s113
      %s115 = sphi 0, %s113
      %s116 = sphi 0, %s115
      %s130 = sphi 0, %s116
      %s134 = sphi 0, %s134
      %s136 = sphi 0, %s134
      %s137 = sphi 0, %s136
      %s151 = sphi 0, %s137
      %s155 = sphi 0, %s155
      %s157 = sphi 0, %s155
      %s158 = sphi 0, %s157
      %s172 = sphi 0, %s158
      %s176 = sphi 0, %s176
      %s178 = sphi 0, %s176
      %s179 = sphi 0, %s178
      %s193 = sphi 0, %s179
      %s197 = sphi 0, %s197
      %s199 = sphi 0, %s197
      %s200 = sphi 0, %s199
      %s214 = sphi 0, %s200
      %s218 = sphi 0, %s218
      %s220 = sphi 0, %s218
      %s221 = sphi 0, %s220
      %s235 = sphi 0, %s221
      %s239 = sphi 0, %s239
      %s241 = sphi 0, %s239
      %s242 = sphi 0, %s241
      %s256 = sphi 0, %s242
      %s260 = sphi 0, %s260
      %s262 = sphi 0, %s260
      %s263 = sphi 0, %s262
      %s277 = sphi 0, %s263
      %s281 = sphi 0, %s281
      %s283 = sphi 0, %s281
      %s284 = sphi 0, %s283
      %s298 = sphi 0, %s284
      %s302 = sphi 0, %s302
      %s304 = sphi 0, %s302
      %s305 = sphi 0, %s304
      %s319 = sphi 0, %s305
      %s323 = sphi 0, %s323
      %s325 = sphi 0, %s323
      %s326 = sphi 0, %s325
      %s340 = sphi 0, %s326
      %s344 = sphi 0, %s344
      %s346 = sphi 0, %s344
      %s347 = sphi 0, %s346
      %s361 = sphi 0, %s347
      %s365 = sphi 0, %s365
      %s367 = sphi 0, %s365
      %s368 = sphi 0, %s367
      %s382 = sphi 0, %s368
      %s386 = sphi 0, %s386
      %s388 = sphi 0, %s386
      %s389 = sphi 0, %s388
      %s403 = sphi 0, %s389
      %s407 = sphi 0, %s407
      %s409 = sphi 0, %s407
      %s410 = sphi 0, %s409
      %s424 = sphi 0, %s410
      %s428 = sphi 0, %s428
      %s430 = sphi 0, %s428
      %s431 = sphi 0, %s430
      %s445 = sphi 0, %s431
    $region4: #{graph_encoder_forward.1} parent=1 // loop_header_branch
      %28 = sbr.rel (%p26) target = $region8
    $region5: #{graph_encoder_forward.1} parent=1 // loop_body
      %s30 = ssub.s32 %s25, 1
      %s31 = ssub.s32 %s25, 2
      %s38 = sadd.s32 1, %s33
      %p39 = scmp.ge.s32.totalorder %s38, 2
      %s40 = scalar_select %p39, 0, %s38
      %s41 = sadd.s32 1, %s32
      %s42 = scalar_select %p39, %s41, %s32
      %p43 = scmp.ge.s32.totalorder %s42, 4
      %s44 = scalar_select %p43, 0, %s42
      %s45 = ssub.s32 %s33, %s40
      %p46 = scmp.eq.s32.totalorder %s45, 0
      %s48 = sadd.s32 %s47, 1
      %s49 = scalar_select %p46, %s47, %s48
      %p52 = pneg %p46
      %p53 = scmp.eq.s32.totalorder %s25, 7
      %p54 = por %p52, %p53
      %p55 = scmp.ne.s32.totalorder %s47, %s50
      %p56 = scmp.eq.s32.totalorder %s25, 0
      %p57 = por %p55, %p56
      %p58 = scmp.ne.s32.totalorder %s47, %s50
      %p59 = scmp.eq.s32.totalorder %s30, 7
      %p60 = por %p58, %p59
      %p61 = scmp.ne.s32.totalorder %s50, %s51
      %p62 = scmp.eq.s32.totalorder %s30, 0
      %p63 = por %p61, %p62
      %p64 = scmp.ne.s32.totalorder %s50, %s51
      %p65 = scmp.eq.s32.totalorder %s31, 7
      %p66 = por %p64, %p65
      %p68 = scmp.ne.s32.totalorder %s51, %s67
      %p69 = scmp.eq.s32.totalorder %s31, 0
      %p70 = por %p68, %p69
      %s72 = sadd.s32 %s71, 1
      %p75 = scmp.eq.s32.totalorder %s25, 7
      %p76 = scmp.ne.s32.totalorder %s71, %s73
      %p77 = scmp.eq.s32.totalorder %s25, 0
      %p78 = por %p76, %p77
      %p79 = scmp.ne.s32.totalorder %s71, %s73
      %p80 = scmp.eq.s32.totalorder %s30, 7
      %p81 = por %p79, %p80
      %p82 = scmp.ne.s32.totalorder %s73, %s74
      %p83 = scmp.eq.s32.totalorder %s30, 0
      %p84 = por %p82, %p83
      %p85 = scmp.ne.s32.totalorder %s73, %s74
      %p86 = scmp.eq.s32.totalorder %s31, 7
      %p87 = por %p85, %p86
      %p89 = scmp.ne.s32.totalorder %s74, %s88
      %p90 = scmp.eq.s32.totalorder %s31, 0
      %p91 = por %p89, %p90
      %s93 = sadd.s32 %s92, 1
      %p96 = scmp.eq.s32.totalorder %s25, 7
      %p97 = scmp.ne.s32.totalorder %s92, %s94
      %p98 = scmp.eq.s32.totalorder %s25, 0
      %p99 = por %p97, %p98
      %p100 = scmp.ne.s32.totalorder %s92, %s94
      %p101 = scmp.eq.s32.totalorder %s30, 7
      %p102 = por %p100, %p101
      %p103 = scmp.ne.s32.totalorder %s94, %s95
      %p104 = scmp.eq.s32.totalorder %s30, 0
      %p105 = por %p103, %p104
      %p106 = scmp.ne.s32.totalorder %s94, %s95
      %p107 = scmp.eq.s32.totalorder %s31, 7
      %p108 = por %p106, %p107
      %p110 = scmp.ne.s32.totalorder %s95, %s109
      %p111 = scmp.eq.s32.totalorder %s31, 0
      %p112 = por %p110, %p111
      %s114 = sadd.s32 %s113, 1
      %p117 = scmp.eq.s32.totalorder %s25, 7
      %p118 = scmp.ne.s32.totalorder %s113, %s115
      %p119 = scmp.eq.s32.totalorder %s25, 0
      %p120 = por %p118, %p119
      %p121 = scmp.ne.s32.totalorder %s113, %s115
      %p122 = scmp.eq.s32.totalorder %s30, 7
      %p123 = por %p121, %p122
      %p124 = scmp.ne.s32.totalorder %s115, %s116
      %p125 = scmp.eq.s32.totalorder %s30, 0
      %p126 = por %p124, %p125
      %p127 = scmp.ne.s32.totalorder %s115, %s116
      %p128 = scmp.eq.s32.totalorder %s31, 7
      %p129 = por %p127, %p128
      %p131 = scmp.ne.s32.totalorder %s116, %s130
      %p132 = scmp.eq.s32.totalorder %s31, 0
      %p133 = por %p131, %p132
      %s135 = sadd.s32 %s134, 1
      %p138 = scmp.eq.s32.totalorder %s25, 7
      %p139 = scmp.ne.s32.totalorder %s134, %s136
      %p140 = scmp.eq.s32.totalorder %s25, 0
      %p141 = por %p139, %p140
      %p142 = scmp.ne.s32.totalorder %s134, %s136
      %p143 = scmp.eq.s32.totalorder %s30, 7
      %p144 = por %p142, %p143
      %p145 = scmp.ne.s32.totalorder %s136, %s137
      %p146 = scmp.eq.s32.totalorder %s30, 0
      %p147 = por %p145, %p146
      %p148 = scmp.ne.s32.totalorder %s136, %s137
      %p149 = scmp.eq.s32.totalorder %s31, 7
      %p150 = por %p148, %p149
      %p152 = scmp.ne.s32.totalorder %s137, %s151
      %p153 = scmp.eq.s32.totalorder %s31, 0
      %p154 = por %p152, %p153
      %s156 = sadd.s32 %s155, 1
      %p159 = scmp.eq.s32.totalorder %s25, 7
      %p160 = scmp.ne.s32.totalorder %s155, %s157
      %p161 = scmp.eq.s32.totalorder %s25, 0
      %p162 = por %p160, %p161
      %p163 = scmp.ne.s32.totalorder %s155, %s157
      %p164 = scmp.eq.s32.totalorder %s30, 7
      %p165 = por %p163, %p164
      %p166 = scmp.ne.s32.totalorder %s157, %s158
      %p167 = scmp.eq.s32.totalorder %s30, 0
      %p168 = por %p166, %p167
      %p169 = scmp.ne.s32.totalorder %s157, %s158
      %p170 = scmp.eq.s32.totalorder %s31, 7
      %p171 = por %p169, %p170
      %p173 = scmp.ne.s32.totalorder %s158, %s172
      %p174 = scmp.eq.s32.totalorder %s31, 0
      %p175 = por %p173, %p174
      %s177 = sadd.s32 %s176, 1
      %p180 = scmp.eq.s32.totalorder %s25, 7
      %p181 = scmp.ne.s32.totalorder %s176, %s178
      %p182 = scmp.eq.s32.totalorder %s25, 0
      %p183 = por %p181, %p182
      %p184 = scmp.ne.s32.totalorder %s176, %s178
      %p185 = scmp.eq.s32.totalorder %s30, 7
      %p186 = por %p184, %p185
      %p187 = scmp.ne.s32.totalorder %s178, %s179
      %p188 = scmp.eq.s32.totalorder %s30, 0
      %p189 = por %p187, %p188
      %p190 = scmp.ne.s32.totalorder %s178, %s179
      %p191 = scmp.eq.s32.totalorder %s31, 7
      %p192 = por %p190, %p191
      %p194 = scmp.ne.s32.totalorder %s179, %s193
      %p195 = scmp.eq.s32.totalorder %s31, 0
      %p196 = por %p194, %p195
      %s198 = sadd.s32 %s197, 1
      %p201 = scmp.eq.s32.totalorder %s25, 7
      %p202 = scmp.ne.s32.totalorder %s197, %s199
      %p203 = scmp.eq.s32.totalorder %s25, 0
      %p204 = por %p202, %p203
      %p205 = scmp.ne.s32.totalorder %s197, %s199
      %p206 = scmp.eq.s32.totalorder %s30, 7
      %p207 = por %p205, %p206
      %p208 = scmp.ne.s32.totalorder %s199, %s200
      %p209 = scmp.eq.s32.totalorder %s30, 0
      %p210 = por %p208, %p209
      %p211 = scmp.ne.s32.totalorder %s199, %s200
      %p212 = scmp.eq.s32.totalorder %s31, 7
      %p213 = por %p211, %p212
      %p215 = scmp.ne.s32.totalorder %s200, %s214
      %p216 = scmp.eq.s32.totalorder %s31, 0
      %p217 = por %p215, %p216
      %s219 = sadd.s32 %s218, 1
      %p222 = scmp.eq.s32.totalorder %s25, 7
      %p223 = scmp.ne.s32.totalorder %s218, %s220
      %p224 = scmp.eq.s32.totalorder %s25, 0
      %p225 = por %p223, %p224
      %p226 = scmp.ne.s32.totalorder %s218, %s220
      %p227 = scmp.eq.s32.totalorder %s30, 7
      %p228 = por %p226, %p227
      %p229 = scmp.ne.s32.totalorder %s220, %s221
      %p230 = scmp.eq.s32.totalorder %s30, 0
      %p231 = por %p229, %p230
      %p232 = scmp.ne.s32.totalorder %s220, %s221
      %p233 = scmp.eq.s32.totalorder %s31, 7
      %p234 = por %p232, %p233
      %p236 = scmp.ne.s32.totalorder %s221, %s235
      %p237 = scmp.eq.s32.totalorder %s31, 0
      %p238 = por %p236, %p237
      %s240 = sadd.s32 %s239, 1
      %p243 = scmp.eq.s32.totalorder %s25, 7
      %p244 = scmp.ne.s32.totalorder %s239, %s241
      %p245 = scmp.eq.s32.totalorder %s25, 0
      %p246 = por %p244, %p245
      %p247 = scmp.ne.s32.totalorder %s239, %s241
      %p248 = scmp.eq.s32.totalorder %s30, 7
      %p249 = por %p247, %p248
      %p250 = scmp.ne.s32.totalorder %s241, %s242
      %p251 = scmp.eq.s32.totalorder %s30, 0
      %p252 = por %p250, %p251
      %p253 = scmp.ne.s32.totalorder %s241, %s242
      %p254 = scmp.eq.s32.totalorder %s31, 7
      %p255 = por %p253, %p254
      %p257 = scmp.ne.s32.totalorder %s242, %s256
      %p258 = scmp.eq.s32.totalorder %s31, 0
      %p259 = por %p257, %p258
      %s261 = sadd.s32 %s260, 1
      %p264 = scmp.eq.s32.totalorder %s25, 7
      %p265 = scmp.ne.s32.totalorder %s260, %s262
      %p266 = scmp.eq.s32.totalorder %s25, 0
      %p267 = por %p265, %p266
      %p268 = scmp.ne.s32.totalorder %s260, %s262
      %p269 = scmp.eq.s32.totalorder %s30, 7
      %p270 = por %p268, %p269
      %p271 = scmp.ne.s32.totalorder %s262, %s263
      %p272 = scmp.eq.s32.totalorder %s30, 0
      %p273 = por %p271, %p272
      %p274 = scmp.ne.s32.totalorder %s262, %s263
      %p275 = scmp.eq.s32.totalorder %s31, 7
      %p276 = por %p274, %p275
      %p278 = scmp.ne.s32.totalorder %s263, %s277
      %p279 = scmp.eq.s32.totalorder %s31, 0
      %p280 = por %p278, %p279
      %s282 = sadd.s32 %s281, 1
      %p285 = scmp.eq.s32.totalorder %s25, 7
      %p286 = scmp.ne.s32.totalorder %s281, %s283
      %p287 = scmp.eq.s32.totalorder %s25, 0
      %p288 = por %p286, %p287
      %p289 = scmp.ne.s32.totalorder %s281, %s283
      %p290 = scmp.eq.s32.totalorder %s30, 7
      %p291 = por %p289, %p290
      %p292 = scmp.ne.s32.totalorder %s283, %s284
      %p293 = scmp.eq.s32.totalorder %s30, 0
      %p294 = por %p292, %p293
      %p295 = scmp.ne.s32.totalorder %s283, %s284
      %p296 = scmp.eq.s32.totalorder %s31, 7
      %p297 = por %p295, %p296
      %p299 = scmp.ne.s32.totalorder %s284, %s298
      %p300 = scmp.eq.s32.totalorder %s31, 0
      %p301 = por %p299, %p300
      %s303 = sadd.s32 %s302, 1
      %p306 = scmp.eq.s32.totalorder %s25, 7
      %p307 = scmp.ne.s32.totalorder %s302, %s304
      %p308 = scmp.eq.s32.totalorder %s25, 0
      %p309 = por %p307, %p308
      %p310 = scmp.ne.s32.totalorder %s302, %s304
      %p311 = scmp.eq.s32.totalorder %s30, 7
      %p312 = por %p310, %p311
      %p313 = scmp.ne.s32.totalorder %s304, %s305
      %p314 = scmp.eq.s32.totalorder %s30, 0
      %p315 = por %p313, %p314
      %p316 = scmp.ne.s32.totalorder %s304, %s305
      %p317 = scmp.eq.s32.totalorder %s31, 7
      %p318 = por %p316, %p317
      %p320 = scmp.ne.s32.totalorder %s305, %s319
      %p321 = scmp.eq.s32.totalorder %s31, 0
      %p322 = por %p320, %p321
      %s324 = sadd.s32 %s323, 1
      %p327 = scmp.eq.s32.totalorder %s25, 7
      %p328 = scmp.ne.s32.totalorder %s323, %s325
      %p329 = scmp.eq.s32.totalorder %s25, 0
      %p330 = por %p328, %p329
      %p331 = scmp.ne.s32.totalorder %s323, %s325
      %p332 = scmp.eq.s32.totalorder %s30, 7
      %p333 = por %p331, %p332
      %p334 = scmp.ne.s32.totalorder %s325, %s326
      %p335 = scmp.eq.s32.totalorder %s30, 0
      %p336 = por %p334, %p335
      %p337 = scmp.ne.s32.totalorder %s325, %s326
      %p338 = scmp.eq.s32.totalorder %s31, 7
      %p339 = por %p337, %p338
      %p341 = scmp.ne.s32.totalorder %s326, %s340
      %p342 = scmp.eq.s32.totalorder %s31, 0
      %p343 = por %p341, %p342
      %s345 = sadd.s32 %s344, 1
      %p348 = scmp.eq.s32.totalorder %s25, 7
      %p349 = scmp.ne.s32.totalorder %s344, %s346
      %p350 = scmp.eq.s32.totalorder %s25, 0
      %p351 = por %p349, %p350
      %p352 = scmp.ne.s32.totalorder %s344, %s346
      %p353 = scmp.eq.s32.totalorder %s30, 7
      %p354 = por %p352, %p353
      %p355 = scmp.ne.s32.totalorder %s346, %s347
      %p356 = scmp.eq.s32.totalorder %s30, 0
      %p357 = por %p355, %p356
      %p358 = scmp.ne.s32.totalorder %s346, %s347
      %p359 = scmp.eq.s32.totalorder %s31, 7
      %p360 = por %p358, %p359
      %p362 = scmp.ne.s32.totalorder %s347, %s361
      %p363 = scmp.eq.s32.totalorder %s31, 0
      %p364 = por %p362, %p363
      %s366 = sadd.s32 %s365, 1
      %p369 = scmp.eq.s32.totalorder %s25, 7
      %p370 = scmp.ne.s32.totalorder %s365, %s367
      %p371 = scmp.eq.s32.totalorder %s25, 0
      %p372 = por %p370, %p371
      %p373 = scmp.ne.s32.totalorder %s365, %s367
      %p374 = scmp.eq.s32.totalorder %s30, 7
      %p375 = por %p373, %p374
      %p376 = scmp.ne.s32.totalorder %s367, %s368
      %p377 = scmp.eq.s32.totalorder %s30, 0
      %p378 = por %p376, %p377
      %p379 = scmp.ne.s32.totalorder %s367, %s368
      %p380 = scmp.eq.s32.totalorder %s31, 7
      %p381 = por %p379, %p380
      %p383 = scmp.ne.s32.totalorder %s368, %s382
      %p384 = scmp.eq.s32.totalorder %s31, 0
      %p385 = por %p383, %p384
      %s387 = sadd.s32 %s386, 1
      %p390 = scmp.eq.s32.totalorder %s25, 7
      %p391 = scmp.ne.s32.totalorder %s386, %s388
      %p392 = scmp.eq.s32.totalorder %s25, 0
      %p393 = por %p391, %p392
      %p394 = scmp.ne.s32.totalorder %s386, %s388
      %p395 = scmp.eq.s32.totalorder %s30, 7
      %p396 = por %p394, %p395
      %p397 = scmp.ne.s32.totalorder %s388, %s389
      %p398 = scmp.eq.s32.totalorder %s30, 0
      %p399 = por %p397, %p398
      %p400 = scmp.ne.s32.totalorder %s388, %s389
      %p401 = scmp.eq.s32.totalorder %s31, 7
      %p402 = por %p400, %p401
      %p404 = scmp.ne.s32.totalorder %s389, %s403
      %p405 = scmp.eq.s32.totalorder %s31, 0
      %p406 = por %p404, %p405
      %s408 = sadd.s32 %s407, 1
      %p411 = scmp.eq.s32.totalorder %s25, 7
      %p412 = scmp.ne.s32.totalorder %s407, %s409
      %p413 = scmp.eq.s32.totalorder %s25, 0
      %p414 = por %p412, %p413
      %p415 = scmp.ne.s32.totalorder %s407, %s409
      %p416 = scmp.eq.s32.totalorder %s30, 7
      %p417 = por %p415, %p416
      %p418 = scmp.ne.s32.totalorder %s409, %s410
      %p419 = scmp.eq.s32.totalorder %s30, 0
      %p420 = por %p418, %p419
      %p421 = scmp.ne.s32.totalorder %s409, %s410
      %p422 = scmp.eq.s32.totalorder %s31, 7
      %p423 = por %p421, %p422
      %p425 = scmp.ne.s32.totalorder %s410, %s424
      %p426 = scmp.eq.s32.totalorder %s31, 0
      %p427 = por %p425, %p426
      %s429 = sadd.s32 %s428, 1
      %p432 = scmp.eq.s32.totalorder %s25, 7
      %p433 = scmp.ne.s32.totalorder %s428, %s430
      %p434 = scmp.eq.s32.totalorder %s25, 0
      %p435 = por %p433, %p434
      %p436 = scmp.ne.s32.totalorder %s428, %s430
      %p437 = scmp.eq.s32.totalorder %s30, 7
      %p438 = por %p436, %p437
      %p439 = scmp.ne.s32.totalorder %s430, %s431
      %p440 = scmp.eq.s32.totalorder %s30, 0
      %p441 = por %p439, %p440
      %p442 = scmp.ne.s32.totalorder %s430, %s431
      %p443 = scmp.eq.s32.totalorder %s31, 7
      %p444 = por %p442, %p443
      %p446 = scmp.ne.s32.totalorder %s431, %s445
      %p447 = scmp.eq.s32.totalorder %s31, 0
      %p448 = por %p446, %p447
      %p449 = scmp.le.s32.totalorder 1, %s25
      %p450 = scmp.lt.s32.totalorder %s25, 9
      %p451 = pnand %p449, %p450
      %p452 = pneg %p451
      // Predicated region
      $region9: #{graph_encoder_forward.1} parent=5 // pred_check
        _
      $region10: #{graph_encoder_forward.1} parent=5 // pred_check_branch
        %454 = sbr.rel (%p451) target = $region12
      $region11: #{graph_encoder_forward.1} parent=5 // pred_region
        %s455 = ssub.s32 %s25, 1
        // Predicated region
        $region13: #{graph_encoder_forward.1} parent=11 // pred_check
          %p456 = pneg %p84
        $region14: #{graph_encoder_forward.1} parent=11 // pred_check_branch
          %458 = sbr.rel (%p456) target = $region16
        $region15: #{graph_encoder_forward.1} parent=11 // pred_region
          _
        $region16: #{graph_encoder_forward.1} parent=11 // pred_fallthru
          _
        // Predicated region
        $region17: #{graph_encoder_forward.1} parent=11 // pred_check
          %p459 = pneg %p105
        $region18: #{graph_encoder_forward.1} parent=11 // pred_check_branch
          %461 = sbr.rel (%p459) target = $region20
        $region19: #{graph_encoder_forward.1} parent=11 // pred_region
          _
        $region20: #{graph_encoder_forward.1} parent=11 // pred_fallthru
          _
        // Predicated region
        $region21: #{graph_encoder_forward.1} parent=11 // pred_check
          %p462 = pneg %p126
        $region22: #{graph_encoder_forward.1} parent=11 // pred_check_branch
          %464 = sbr.rel (%p462) target = $region24
        $region23: #{graph_encoder_forward.1} parent=11 // pred_region
          _
        $region24: #{graph_encoder_forward.1} parent=11 // pred_fallthru
          _
        // Predicated region
        $region25: #{graph_encoder_forward.1} parent=11 // pred_check
          %p465 = pneg %p147
        $region26: #{graph_encoder_forward.1} parent=11 // pred_check_branch
          %467 = sbr.rel (%p465) target = $region28
        $region27: #{graph_encoder_forward.1} parent=11 // pred_region
          _
        $region28: #{graph_encoder_forward.1} parent=11 // pred_fallthru
          _
        // Predicated region
        $region29: #{graph_encoder_forward.1} parent=11 // pred_check
          %p468 = pneg %p168
        $region30: #{graph_encoder_forward.1} parent=11 // pred_check_branch
          %470 = sbr.rel (%p468) target = $region32
        $region31: #{graph_encoder_forward.1} parent=11 // pred_region
          _
        $region32: #{graph_encoder_forward.1} parent=11 // pred_fallthru
          _
        // Predicated region
        $region33: #{graph_encoder_forward.1} parent=11 // pred_check
          %p471 = pneg %p189
        $region34: #{graph_encoder_forward.1} parent=11 // pred_check_branch
          %473 = sbr.rel (%p471) target = $region36
        $region35: #{graph_encoder_forward.1} parent=11 // pred_region
          _
        $region36: #{graph_encoder_forward.1} parent=11 // pred_fallthru
          _
        // Predicated region
        $region37: #{graph_encoder_forward.1} parent=11 // pred_check
          %p474 = pneg %p210
        $region38: #{graph_encoder_forward.1} parent=11 // pred_check_branch
          %476 = sbr.rel (%p474) target = $region40
        $region39: #{graph_encoder_forward.1} parent=11 // pred_region
          _
        $region40: #{graph_encoder_forward.1} parent=11 // pred_fallthru
          _
        // Predicated region
        $region41: #{graph_encoder_forward.1} parent=11 // pred_check
          %p477 = pneg %p231
        $region42: #{graph_encoder_forward.1} parent=11 // pred_check_branch
          %479 = sbr.rel (%p477) target = $region44
        $region43: #{graph_encoder_forward.1} parent=11 // pred_region
          _
        $region44: #{graph_encoder_forward.1} parent=11 // pred_fallthru
          _
        // Predicated region
        $region45: #{graph_encoder_forward.1} parent=11 // pred_check
          %p480 = pneg %p252
        $region46: #{graph_encoder_forward.1} parent=11 // pred_check_branch
          %482 = sbr.rel (%p480) target = $region48
        $region47: #{graph_encoder_forward.1} parent=11 // pred_region
          _
        $region48: #{graph_encoder_forward.1} parent=11 // pred_fallthru
          _
        // Predicated region
        $region49: #{graph_encoder_forward.1} parent=11 // pred_check
          %p483 = pneg %p273
        $region50: #{graph_encoder_forward.1} parent=11 // pred_check_branch
          %485 = sbr.rel (%p483) target = $region52
        $region51: #{graph_encoder_forward.1} parent=11 // pred_region
          _
        $region52: #{graph_encoder_forward.1} parent=11 // pred_fallthru
          _
        // Predicated region
        $region53: #{graph_encoder_forward.1} parent=11 // pred_check
          %p486 = pneg %p294
        $region54: #{graph_encoder_forward.1} parent=11 // pred_check_branch
          %488 = sbr.rel (%p486) target = $region56
        $region55: #{graph_encoder_forward.1} parent=11 // pred_region
          _
        $region56: #{graph_encoder_forward.1} parent=11 // pred_fallthru
          _
        // Predicated region
        $region57: #{graph_encoder_forward.1} parent=11 // pred_check
          %p489 = pneg %p315
        $region58: #{graph_encoder_forward.1} parent=11 // pred_check_branch
          %491 = sbr.rel (%p489) target = $region60
        $region59: #{graph_encoder_forward.1} parent=11 // pred_region
          _
        $region60: #{graph_encoder_forward.1} parent=11 // pred_fallthru
          _
        // Predicated region
        $region61: #{graph_encoder_forward.1} parent=11 // pred_check
          %p492 = pneg %p336
        $region62: #{graph_encoder_forward.1} parent=11 // pred_check_branch
          %494 = sbr.rel (%p492) target = $region64
        $region63: #{graph_encoder_forward.1} parent=11 // pred_region
          _
        $region64: #{graph_encoder_forward.1} parent=11 // pred_fallthru
          _
        // Predicated region
        $region65: #{graph_encoder_forward.1} parent=11 // pred_check
          %p495 = pneg %p357
        $region66: #{graph_encoder_forward.1} parent=11 // pred_check_branch
          %497 = sbr.rel (%p495) target = $region68
        $region67: #{graph_encoder_forward.1} parent=11 // pred_region
          _
        $region68: #{graph_encoder_forward.1} parent=11 // pred_fallthru
          _
        // Predicated region
        $region69: #{graph_encoder_forward.1} parent=11 // pred_check
          %p498 = pneg %p378
        $region70: #{graph_encoder_forward.1} parent=11 // pred_check_branch
          %500 = sbr.rel (%p498) target = $region72
        $region71: #{graph_encoder_forward.1} parent=11 // pred_region
          _
        $region72: #{graph_encoder_forward.1} parent=11 // pred_fallthru
          _
        // Predicated region
        $region73: #{graph_encoder_forward.1} parent=11 // pred_check
          %p501 = pneg %p399
        $region74: #{graph_encoder_forward.1} parent=11 // pred_check_branch
          %503 = sbr.rel (%p501) target = $region76
        $region75: #{graph_encoder_forward.1} parent=11 // pred_region
          _
        $region76: #{graph_encoder_forward.1} parent=11 // pred_fallthru
          _
        // Predicated region
        $region77: #{graph_encoder_forward.1} parent=11 // pred_check
          %p504 = pneg %p420
        $region78: #{graph_encoder_forward.1} parent=11 // pred_check_branch
          %506 = sbr.rel (%p504) target = $region80
        $region79: #{graph_encoder_forward.1} parent=11 // pred_region
          _
        $region80: #{graph_encoder_forward.1} parent=11 // pred_fallthru
          _
      $region12: #{graph_encoder_forward.1} parent=5 // pred_fallthru
        _
      %p507 = scmp.lt.s32.totalorder %s25, 8
      // Predicated region
      $region81: #{graph_encoder_forward.1} parent=5 // pred_check
        %p508 = pneg %p507
      $region82: #{graph_encoder_forward.1} parent=5 // pred_check_branch
        %510 = sbr.rel (%p508) target = $region84
      $region83: #{graph_encoder_forward.1} parent=5 // pred_region
        // Predicated region
        $region85: #{graph_encoder_forward.1} parent=83 // pred_check
          %p511 = pneg %p57
        $region86: #{graph_encoder_forward.1} parent=83 // pred_check_branch
          %513 = sbr.rel (%p511) target = $region88
        $region87: #{graph_encoder_forward.1} parent=83 // pred_region
          %s514 = smul.u32 16, %s33
          %p515 = scmp.lt.s32.totalorder %s514, 31
          %s516 = scalar_select %p515, %s514, 31
          %s517 = smul.addr %s516, 2
          %s518 = smul.addr %s517, 4
          %s519 = scalar_lea.vmem %s0, %s518
          %s520 = smul.u32 16, %s33
        $region88: #{graph_encoder_forward.1} parent=83 // pred_fallthru
          _
      $region84: #{graph_encoder_forward.1} parent=5 // pred_fallthru
        _
      %p521 = scmp.le.s32.totalorder 1, %s25
      %p522 = scmp.lt.s32.totalorder %s25, 9
      %p523 = pnand %p521, %p522
      %p524 = pneg %p523
      // Predicated region
      $region89: #{graph_encoder_forward.1} parent=5 // pred_check
        _
      $region90: #{graph_encoder_forward.1} parent=5 // pred_check_branch
        %526 = sbr.rel (%p523) target = $region92
      $region91: #{graph_encoder_forward.1} parent=5 // pred_region
        %s527 = ssub.s32 %s25, 1
        %s528 = smul.u32 16, %s35
        %p529 = scmp.lt.s32.totalorder %s528, 31
        %s530 = scalar_select %p529, %s528, 31
        %s531 = smul.addr %s530, 2
        %s532 = smul.addr %s531, 4
        %s533 = scalar_lea.vmem %s0, %s532
        %p534 = pneg %p63
        %p535 = pneg %p60
        %p536 = pneg %p84
        %p537 = pneg %p81
        %p538 = pneg %p105
        %p539 = pneg %p102
        %p540 = pneg %p126
        %p541 = pneg %p123
        %p542 = pneg %p147
        %p543 = pneg %p144
        %p544 = pneg %p168
        %p545 = pneg %p165
        %p546 = pneg %p189
        %p547 = pneg %p186
        %p548 = pneg %p210
        %p549 = pneg %p207
        %p550 = pneg %p231
        %p551 = pneg %p228
        %p552 = pneg %p252
        %p553 = pneg %p249
        %p554 = pneg %p273
        %p555 = pneg %p270
        %p556 = pneg %p294
        %p557 = pneg %p291
        %p558 = pneg %p315
        %p559 = pneg %p312
        %p560 = pneg %p336
        %p561 = pneg %p333
        %p562 = pneg %p357
        %p563 = pneg %p354
        %p564 = pneg %p378
        %p565 = pneg %p375
        %p566 = pneg %p399
        %p567 = pneg %p396
        %p568 = pneg %p420
        %p569 = pneg %p417
        %p570 = pneg %p441
        %p571 = pneg %p438
        %s572 = smul.u32 16, %s35
        %p573 = scmp.lt.s32.totalorder %s572, 31
        %s574 = scalar_select %p573, %s572, 31
        %s575 = smul.addr %s574, 2
        %s576 = smul.addr %s575, 4
        %s577 = scalar_lea.vmem %s0, %s576
        %s578 = smul.u32 16, %s35
        %p580 = scmp.eq.s32.totalorder %s35, 0
        // Predicated region
        $region93: #{graph_encoder_forward.1} parent=91 // pred_check
          %p581 = pneg %p580
        $region94: #{graph_encoder_forward.1} parent=91 // pred_check_branch
          %583 = sbr.rel (%p581) target = $region96
        $region95: #{graph_encoder_forward.1} parent=91 // pred_region
          %p584 = scmp.eq.s32.totalorder %s34, 0
          // Predicated region
          $region97: #{graph_encoder_forward.1} parent=95 // pred_check
            %p585 = pneg %p584
          $region98: #{graph_encoder_forward.1} parent=95 // pred_check_branch
            %587 = sbr.rel (%p585) target = $region100
          $region99: #{graph_encoder_forward.1} parent=95 // pred_region
            %v588 = vld [vmem:[%s1] sm:$0xff]
            %v589 = vld [vmem:[%s1 + $0x8] sm:$0xff]
            %v590 = vld [vmem:[%s1 + $0x10] sm:$0xff]
            %v591 = vld [vmem:[%s1 + $0x18] sm:$0xff]
            %v592 = vld [vmem:[%s1 + $0x20] sm:$0xff]
            %v593 = vld [vmem:[%s1 + $0x28] sm:$0xff]
            %v594 = vld [vmem:[%s1 + $0x30] sm:$0xff]
            %v595 = vld [vmem:[%s1 + $0x38] sm:$0xff]
            %v596 = vld [vmem:[%s1 + $0x40] sm:$0xff]
            %v597 = vld [vmem:[%s1 + $0x48] sm:$0xff]
            %v598 = vld [vmem:[%s1 + $0x50] sm:$0xff]
            %v599 = vld [vmem:[%s1 + $0x58] sm:$0xff]
            %v600 = vld [vmem:[%s1 + $0x60] sm:$0xff]
            %v601 = vld [vmem:[%s1 + $0x68] sm:$0xff]
            %v602 = vld [vmem:[%s1 + $0x70] sm:$0xff]
            %v603 = vld [vmem:[%s1 + $0x78] sm:$0xff]
            %v604 = vld [vmem:[%s1 + $0x80] sm:$0xff]
            %v605 = vld [vmem:[%s1 + $0x88] sm:$0xff]
            %v606 = vld [vmem:[%s1 + $0x90] sm:$0xff]
            %v607 = vld [vmem:[%s1 + $0x98] sm:$0xff]
            %v608 = vld [vmem:[%s1 + $0xa0] sm:$0xff]
            %v609 = vld [vmem:[%s1 + $0xa8] sm:$0xff]
            %v610 = vld [vmem:[%s1 + $0xb0] sm:$0xff]
            %v611 = vld [vmem:[%s1 + $0xb8] sm:$0xff]
            %v612 = vld [vmem:[%s1 + $0xc0] sm:$0xff]
            %v613 = vld [vmem:[%s1 + $0xc8] sm:$0xff]
            %v614 = vld [vmem:[%s1 + $0xd0] sm:$0xff]
            %v615 = vld [vmem:[%s1 + $0xd8] sm:$0xff]
            %v616 = vld [vmem:[%s1 + $0xe0] sm:$0xff]
            %v617 = vld [vmem:[%s1 + $0xe8] sm:$0xff]
            %v618 = vld [vmem:[%s1 + $0xf0] sm:$0xff]
            %v619 = vld [vmem:[%s1 + $0xf8] sm:$0xff]
            %v620 = vld [vmem:[%s2] sm:$0xf]
            %vm621 = vcmask 31744
            %v623 = vsel %vm621, %v588, 0
            %v626 = vsel %vm621, %v589, 0
            %v629 = vsel %vm621, %v590, 0
            %v632 = vsel %vm621, %v591, 0
            %v635 = vsel %vm621, %v592, 0
            %v638 = vsel %vm621, %v593, 0
            %v641 = vsel %vm621, %v594, 0
            %v644 = vsel %vm621, %v595, 0
            %v647 = vsel %vm621, %v596, 0
            %v650 = vsel %vm621, %v597, 0
            %v653 = vsel %vm621, %v598, 0
            %v656 = vsel %vm621, %v599, 0
            %v659 = vsel %vm621, %v600, 0
            %v662 = vsel %vm621, %v601, 0
            %v665 = vsel %vm621, %v602, 0
            %v668 = vsel %vm621, %v603, 0
            %v671 = vsel %vm621, %v604, 0
            %v674 = vsel %vm621, %v605, 0
            %v677 = vsel %vm621, %v606, 0
            %v680 = vsel %vm621, %v607, 0
            %v683 = vsel %vm621, %v608, 0
            %v686 = vsel %vm621, %v609, 0
            %v689 = vsel %vm621, %v610, 0
            %v692 = vsel %vm621, %v611, 0
            %v695 = vsel %vm621, %v612, 0
            %v698 = vsel %vm621, %v613, 0
            %v701 = vsel %vm621, %v614, 0
            %v704 = vsel %vm621, %v615, 0
            %v707 = vsel %vm621, %v616, 0
            %v710 = vsel %vm621, %v617, 0
            %v713 = vsel %vm621, %v618, 0
            %v716 = vsel %vm621, %v619, 0
            %vm718 = vcmask 1043456
            %v720 = vsel %vm718, %v620, 0
            %722 = vmatprep.subr.mxu0 0.0
            %723 = vmatpush1.msra.mxu0 %v720
            %724 = vmatprep.subr.mxu0 0.0
            %725 = vmatpush1.msra.mxu0 0.0
            %726 = vmatprep.subr.mxu0 0.0
            %727 = vmatpush1.msra.mxu0 0.0
            %728 = vmatprep.subr.mxu0 0.0
            %729 = vmatpush1.msra.mxu0 0.0
            %730 = vmatprep.subr.mxu0 0.0
            %731 = vmatpush1.msra.mxu0 0.0
            %732 = vmatprep.subr.mxu0 0.0
            %733 = vmatpush1.msra.mxu0 0.0
            %734 = vmatprep.subr.mxu0 0.0
            %735 = vmatpush1.msra.mxu0 0.0
            %736 = vmatprep.subr.mxu0 0.0
            %737 = vmatpush1.msra.mxu0 0.0
            %738 = vmatprep.subr.mxu0 0.0
            %739 = vmatpush1.msra.mxu0 0.0
            %740 = vmatprep.subr.mxu0 0.0
            %741 = vmatpush1.msra.mxu0 0.0
            %742 = vmatprep.subr.mxu0 0.0
            %743 = vmatpush1.msra.mxu0 0.0
            %744 = vmatprep.subr.mxu0 0.0
            %745 = vmatpush1.msra.mxu0 0.0
            %746 = vmatprep.subr.mxu0 0.0
            %747 = vmatpush1.msra.mxu0 0.0
            %748 = vmatprep.subr.mxu0 0.0
            %749 = vmatpush1.msra.mxu0 0.0
            %750 = vmatprep.subr.mxu0 0.0
            %751 = vmatpush1.msra.mxu0 0.0
            %752 = vmatprep.subr.mxu0 0.0
            %753 = vmatpush1.msra.mxu0 0.0
            %754 = vmatprep.subr.mxu0 0.0
            %755 = vmatpush1.msra.mxu0 0.0
            %756 = vmatprep.subr.mxu0 0.0
            %757 = vmatpush1.msra.mxu0 0.0
            %758 = vmatprep.subr.mxu0 0.0
            %759 = vmatpush1.msra.mxu0 0.0
            %760 = vmatprep.subr.mxu0 0.0
            %761 = vmatpush1.msra.mxu0 0.0
            %762 = vmatprep.subr.mxu0 0.0
            %763 = vmatpush1.msra.mxu0 0.0
            %764 = vmatprep.subr.mxu0 0.0
            %765 = vmatpush1.msra.mxu0 0.0
            %766 = vmatprep.subr.mxu0 0.0
            %767 = vmatpush1.msra.mxu0 0.0
            %768 = vmatprep.subr.mxu0 0.0
            %769 = vmatpush1.msra.mxu0 0.0
            %770 = vmatprep.subr.mxu0 0.0
            %771 = vmatpush1.msra.mxu0 0.0
            %772 = vmatprep.subr.mxu0 0.0
            %773 = vmatpush1.msra.mxu0 0.0
            %774 = vmatprep.subr.mxu0 0.0
            %775 = vmatpush1.msra.mxu0 0.0
            %776 = vmatprep.subr.mxu0 0.0
            %777 = vmatpush1.msra.mxu0 0.0
            %778 = vmatprep.subr.mxu0 0.0
            %779 = vmatpush1.msra.mxu0 0.0
            %780 = vmatprep.subr.mxu0 0.0
            %781 = vmatpush1.msra.mxu0 0.0
            %782 = vmatprep.subr.mxu0 0.0
            %783 = vmatpush1.msra.mxu0 0.0
            %784 = vmatprep.subr.mxu0 0.0
            %785 = vmatpush1.msra.mxu0 0.0
            %786 = vmatprep.mubr.f32.mxu0 0.0
            %787 = vmatmul.mubr.f32.gmra.mrb[0].mxu0 %v623
            %v788 = vpop.f32.mrb[0].mxu0
            %v789 = vadd.f32 0.0, %v788
            %v790 = vpop.f32.mrb[0].mxu0
            %791 = vmatprep.mubr.f32.mxu0 0.0
            %792 = vmatmul.mubr.f32.gmra.mrb[0].mxu0 %v626
            %v793 = vpop.f32.mrb[0].mxu0
            %v794 = vadd.f32 0.0, %v793
            %v795 = vpop.f32.mrb[0].mxu0
            %796 = vmatprep.mubr.f32.mxu0 0.0
            %797 = vmatmul.mubr.f32.gmra.mrb[0].mxu0 %v629
            %v798 = vpop.f32.mrb[0].mxu0
            %v799 = vadd.f32 0.0, %v798
            %v800 = vpop.f32.mrb[0].mxu0
            %801 = vmatprep.mubr.f32.mxu0 0.0
            %802 = vmatmul.mubr.f32.gmra.mrb[0].mxu0 %v632
            %v803 = vpop.f32.mrb[0].mxu0
            %v804 = vadd.f32 0.0, %v803
            %v805 = vpop.f32.mrb[0].mxu0
            %806 = vmatprep.mubr.f32.mxu0 0.0
            %807 = vmatmul.mubr.f32.gmra.mrb[0].mxu0 %v635
            %v808 = vpop.f32.mrb[0].mxu0
            %v809 = vadd.f32 0.0, %v808
            %v810 = vpop.f32.mrb[0].mxu0
            %811 = vmatprep.mubr.f32.mxu0 0.0
            %812 = vmatmul.mubr.f32.gmra.mrb[0].mxu0 %v638
            %v813 = vpop.f32.mrb[0].mxu0
            %v814 = vadd.f32 0.0, %v813
            %v815 = vpop.f32.mrb[0].mxu0
            %816 = vmatprep.mubr.f32.mxu0 0.0
            %817 = vmatmul.mubr.f32.gmra.mrb[0].mxu0 %v641
            %v818 = vpop.f32.mrb[0].mxu0
            %v819 = vadd.f32 0.0, %v818
            %v820 = vpop.f32.mrb[0].mxu0
            %821 = vmatprep.mubr.f32.mxu0 0.0
            %822 = vmatmul.mubr.f32.gmra.mrb[0].mxu0 %v644
            %v823 = vpop.f32.mrb[0].mxu0
            %v824 = vadd.f32 0.0, %v823
            %v825 = vpop.f32.mrb[0].mxu0
            %826 = vmatprep.mubr.f32.mxu0 0.0
            %827 = vmatmul.mubr.f32.gmra.mrb[0].mxu0 %v647
            %v828 = vpop.f32.mrb[0].mxu0
            %v829 = vadd.f32 0.0, %v828
            %v830 = vpop.f32.mrb[0].mxu0
            %831 = vmatprep.mubr.f32.mxu0 0.0
            %832 = vmatmul.mubr.f32.gmra.mrb[0].mxu0 %v650
            %v833 = vpop.f32.mrb[0].mxu0
            %v834 = vadd.f32 0.0, %v833
            %v835 = vpop.f32.mrb[0].mxu0
            %836 = vmatprep.mubr.f32.mxu0 0.0
            %837 = vmatmul.mubr.f32.gmra.mrb[0].mxu0 %v653
            %v838 = vpop.f32.mrb[0].mxu0
            %v839 = vadd.f32 0.0, %v838
            %v840 = vpop.f32.mrb[0].mxu0
            %841 = vmatprep.mubr.f32.mxu0 0.0
            %842 = vmatmul.mubr.f32.gmra.mrb[0].mxu0 %v656
            %v843 = vpop.f32.mrb[0].mxu0
            %v844 = vadd.f32 0.0, %v843
            %v845 = vpop.f32.mrb[0].mxu0
            %846 = vmatprep.mubr.f32.mxu0 0.0
            %847 = vmatmul.mubr.f32.gmra.mrb[0].mxu0 %v659
            %v848 = vpop.f32.mrb[0].mxu0
            %v849 = vadd.f32 0.0, %v848
            %v850 = vpop.f32.mrb[0].mxu0
            %851 = vmatprep.mubr.f32.mxu0 0.0
            %852 = vmatmul.mubr.f32.gmra.mrb[0].mxu0 %v662
            %v853 = vpop.f32.mrb[0].mxu0
            %v854 = vadd.f32 0.0, %v853
            %v855 = vpop.f32.mrb[0].mxu0
            %856 = vmatprep.mubr.f32.mxu0 0.0
            %857 = vmatmul.mubr.f32.gmra.mrb[0].mxu0 %v665
            %v858 = vpop.f32.mrb[0].mxu0
            %v859 = vadd.f32 0.0, %v858
            %v860 = vpop.f32.mrb[0].mxu0
            %861 = vmatprep.mubr.f32.mxu0 0.0
            %862 = vmatmul.mubr.f32.gmra.mrb[0].mxu0 %v668
            %v863 = vpop.f32.mrb[0].mxu0
            %v864 = vadd.f32 0.0, %v863
            %v865 = vpop.f32.mrb[0].mxu0
            %866 = vmatprep.mubr.f32.mxu0 0.0
            %867 = vmatmul.mubr.f32.gmra.mrb[0].mxu0 %v671
            %v868 = vpop.f32.mrb[0].mxu0
            %v869 = vadd.f32 0.0, %v868
            %v870 = vpop.f32.mrb[0].mxu0
            %871 = vmatprep.mubr.f32.mxu0 0.0
            %872 = vmatmul.mubr.f32.gmra.mrb[0].mxu0 %v674
            %v873 = vpop.f32.mrb[0].mxu0
            %v874 = vadd.f32 0.0, %v873
            %v875 = vpop.f32.mrb[0].mxu0
            %876 = vmatprep.mubr.f32.mxu0 0.0
            %877 = vmatmul.mubr.f32.gmra.mrb[0].mxu0 %v677
            %v878 = vpop.f32.mrb[0].mxu0
            %v879 = vadd.f32 0.0, %v878
            %v880 = vpop.f32.mrb[0].mxu0
            %881 = vmatprep.mubr.f32.mxu0 0.0
            %882 = vmatmul.mubr.f32.gmra.mrb[0].mxu0 %v680
            %v883 = vpop.f32.mrb[0].mxu0
            %v884 = vadd.f32 0.0, %v883
            %v885 = vpop.f32.mrb[0].mxu0
            %886 = vmatprep.mubr.f32.mxu0 0.0
            %887 = vmatmul.mubr.f32.gmra.mrb[0].mxu0 %v683
            %v888 = vpop.f32.mrb[0].mxu0
            %v889 = vadd.f32 0.0, %v888
            %v890 = vpop.f32.mrb[0].mxu0
            %891 = vmatprep.mubr.f32.mxu0 0.0
            %892 = vmatmul.mubr.f32.gmra.mrb[0].mxu0 %v686
            %v893 = vpop.f32.mrb[0].mxu0
            %v894 = vadd.f32 0.0, %v893
            %v895 = vpop.f32.mrb[0].mxu0
            %896 = vmatprep.mubr.f32.mxu0 0.0
            %897 = vmatmul.mubr.f32.gmra.mrb[0].mxu0 %v689
            %v898 = vpop.f32.mrb[0].mxu0
            %v899 = vadd.f32 0.0, %v898
            %v900 = vpop.f32.mrb[0].mxu0
            %901 = vmatprep.mubr.f32.mxu0 0.0
            %902 = vmatmul.mubr.f32.gmra.mrb[0].mxu0 %v692
            %v903 = vpop.f32.mrb[0].mxu0
            %v904 = vadd.f32 0.0, %v903
            %v905 = vpop.f32.mrb[0].mxu0
            %906 = vmatprep.mubr.f32.mxu0 0.0
            %907 = vmatmul.mubr.f32.gmra.mrb[0].mxu0 %v695
            %v908 = vpop.f32.mrb[0].mxu0
            %v909 = vadd.f32 0.0, %v908
            %v910 = vpop.f32.mrb[0].mxu0
            %911 = vmatprep.mubr.f32.mxu0 0.0
            %912 = vmatmul.mubr.f32.gmra.mrb[0].mxu0 %v698
            %v913 = vpop.f32.mrb[0].mxu0
            %v914 = vadd.f32 0.0, %v913
            %v915 = vpop.f32.mrb[0].mxu0
            %916 = vmatprep.mubr.f32.mxu0 0.0
            %917 = vmatmul.mubr.f32.gmra.mrb[0].mxu0 %v701
            %v918 = vpop.f32.mrb[0].mxu0
            %v919 = vadd.f32 0.0, %v918
            %v920 = vpop.f32.mrb[0].mxu0
            %921 = vmatprep.mubr.f32.mxu0 0.0
            %922 = vmatmul.mubr.f32.gmra.mrb[0].mxu0 %v704
            %v923 = vpop.f32.mrb[0].mxu0
            %v924 = vadd.f32 0.0, %v923
            %v925 = vpop.f32.mrb[0].mxu0
            %926 = vmatprep.mubr.f32.mxu0 0.0
            %927 = vmatmul.mubr.f32.gmra.mrb[0].mxu0 %v707
            %v928 = vpop.f32.mrb[0].mxu0
            %v929 = vadd.f32 0.0, %v928
            %v930 = vpop.f32.mrb[0].mxu0
            %931 = vmatprep.mubr.f32.mxu0 0.0
            %932 = vmatmul.mubr.f32.gmra.mrb[0].mxu0 %v710
            %v933 = vpop.f32.mrb[0].mxu0
            %v934 = vadd.f32 0.0, %v933
            %v935 = vpop.f32.mrb[0].mxu0
            %936 = vmatprep.mubr.f32.mxu0 0.0
            %937 = vmatmul.mubr.f32.gmra.mrb[0].mxu0 %v713
            %v938 = vpop.f32.mrb[0].mxu0
            %v939 = vadd.f32 0.0, %v938
            %v940 = vpop.f32.mrb[0].mxu0
            %941 = vmatprep.mubr.f32.mxu0 0.0
            %942 = vmatmul.mubr.f32.gmra.mrb[0].mxu0 %v716
            %v943 = vpop.f32.mrb[0].mxu0
            %v944 = vadd.f32 0.0, %v943
            %v945 = vpop.f32.mrb[0].mxu0
            %946 = vdwg.mxu0
            %v947 = vpack.c.bf16 %v794, %v789
            %v948 = vpack.c.bf16 %v804, %v799
            %v949 = vpack.c.bf16 %v814, %v809
            %v950 = vpack.c.bf16 %v824, %v819
            %v951 = vpack.c.bf16 %v834, %v829
            %v952 = vpack.c.bf16 %v844, %v839
            %v953 = vpack.c.bf16 %v854, %v849
            %v954 = vpack.c.bf16 %v864, %v859
            %v955 = vpack.c.bf16 %v874, %v869
            %v956 = vpack.c.bf16 %v884, %v879
            %v957 = vpack.c.bf16 %v894, %v889
            %v958 = vpack.c.bf16 %v904, %v899
            %v959 = vpack.c.bf16 %v914, %v909
            %v960 = vpack.c.bf16 %v924, %v919
            %v961 = vpack.c.bf16 %v934, %v929
            %v962 = vpack.c.bf16 %v944, %v939
            %vm963 = vcmask 64512
            %964 = vst.msk [vmem:[#allocation6] sm:$0xff] %vm963, %v947
            %965 = vst.msk [vmem:[#allocation6 + $0x8] sm:$0xff] %vm963, %v948
            %966 = vst.msk [vmem:[#allocation6 + $0x10] sm:$0xff] %vm963, %v949
            %967 = vst.msk [vmem:[#allocation6 + $0x18] sm:$0xff] %vm963, %v950
            %968 = vst.msk [vmem:[#allocation6 + $0x20] sm:$0xff] %vm963, %v951
            %969 = vst.msk [vmem:[#allocation6 + $0x28] sm:$0xff] %vm963, %v952
            %970 = vst.msk [vmem:[#allocation6 + $0x30] sm:$0xff] %vm963, %v953
            %971 = vst.msk [vmem:[#allocation6 + $0x38] sm:$0xff] %vm963, %v954
            %972 = vst.msk [vmem:[#allocation6 + $0x40] sm:$0xff] %vm963, %v955
            %973 = vst.msk [vmem:[#allocation6 + $0x48] sm:$0xff] %vm963, %v956
            %974 = vst.msk [vmem:[#allocation6 + $0x50] sm:$0xff] %vm963, %v957
            %975 = vst.msk [vmem:[#allocation6 + $0x58] sm:$0xff] %vm963, %v958
            %976 = vst.msk [vmem:[#allocation6 + $0x60] sm:$0xff] %vm963, %v959
            %977 = vst.msk [vmem:[#allocation6 + $0x68] sm:$0xff] %vm963, %v960
            %978 = vst.msk [vmem:[#allocation6 + $0x70] sm:$0xff] %vm963, %v961
            %979 = vst.msk [vmem:[#allocation6 + $0x78] sm:$0xff] %vm963, %v962
          $region100: #{graph_encoder_forward.1} parent=95 // pred_fallthru
            _
          %p980 = scmp.eq.s32.totalorder %s34, 1
          // Predicated region
          $region101: #{graph_encoder_forward.1} parent=95 // pred_check
            %p981 = pneg %p980
          $region102: #{graph_encoder_forward.1} parent=95 // pred_check_branch
            %983 = sbr.rel (%p981) target = $region104
          $region103: #{graph_encoder_forward.1} parent=95 // pred_region
            %v984 = vld [vmem:[#allocation2] sm:$0xff]
            %v985 = vld [vmem:[#allocation2 + $0x8] sm:$0xff]
            %v986 = vld [vmem:[#allocation2 + $0x10] sm:$0xff]
            %v987 = vld [vmem:[#allocation2 + $0x18] sm:$0xff]
            %v988 = vld [vmem:[#allocation2 + $0x20] sm:$0xff]
            %v989 = vld [vmem:[#allocation2 + $0x28] sm:$0xff]
            %v990 = vld [vmem:[#allocation2 + $0x30] sm:$0xff]
            %v991 = vld [vmem:[#allocation2 + $0x38] sm:$0xff]
            %v992 = vld [vmem:[#allocation2 + $0x40] sm:$0xff]
            %v993 = vld [vmem:[#allocation2 + $0x48] sm:$0xff]
            %v994 = vld [vmem:[#allocation2 + $0x50] sm:$0xff]
            %v995 = vld [vmem:[#allocation2 + $0x58] sm:$0xff]
            %v996 = vld [vmem:[#allocation2 + $0x60] sm:$0xff]
            %v997 = vld [vmem:[#allocation2 + $0x68] sm:$0xff]
            %v998 = vld [vmem:[#allocation2 + $0x70] sm:$0xff]
            %v999 = vld [vmem:[#allocation2 + $0x78] sm:$0xff]
            %v1000 = vld [vmem:[#allocation2 + $0x80] sm:$0xff]
            %v1001 = vld [vmem:[#allocation2 + $0x88] sm:$0xff]
            %v1002 = vld [vmem:[#allocation2 + $0x90] sm:$0xff]
            %v1003 = vld [vmem:[#allocation2 + $0x98] sm:$0xff]
            %v1004 = vld [vmem:[#allocation2 + $0xa0] sm:$0xff]
            %v1005 = vld [vmem:[#allocation2 + $0xa8] sm:$0xff]
            %v1006 = vld [vmem:[#allocation2 + $0xb0] sm:$0xff]
            %v1007 = vld [vmem:[#allocation2 + $0xb8] sm:$0xff]
            %v1008 = vld [vmem:[#allocation2 + $0xc0] sm:$0xff]
            %v1009 = vld [vmem:[#allocation2 + $0xc8] sm:$0xff]
            %v1010 = vld [vmem:[#allocation2 + $0xd0] sm:$0xff]
            %v1011 = vld [vmem:[#allocation2 + $0xd8] sm:$0xff]
            %v1012 = vld [vmem:[#allocation2 + $0xe0] sm:$0xff]
            %v1013 = vld [vmem:[#allocation2 + $0xe8] sm:$0xff]
            %v1014 = vld [vmem:[#allocation2 + $0xf0] sm:$0xff]
            %v1015 = vld [vmem:[#allocation2 + $0xf8] sm:$0xff]
            %v1016 = vmax.f32 %v984, 0.0
            %v1017 = vmax.f32 %v985, 0.0
            %v1018 = vmax.f32 %v986, 0.0
            %v1019 = vmax.f32 %v987, 0.0
            %v1020 = vmax.f32 %v988, 0.0
            %v1021 = vmax.f32 %v989, 0.0
            %v1022 = vmax.f32 %v990, 0.0
            %v1023 = vmax.f32 %v991, 0.0
            %v1024 = vmax.f32 %v992, 0.0
            %v1025 = vmax.f32 %v993, 0.0
            %v1026 = vmax.f32 %v994, 0.0
            %v1027 = vmax.f32 %v995, 0.0
            %v1028 = vmax.f32 %v996, 0.0
            %v1029 = vmax.f32 %v997, 0.0
            %v1030 = vmax.f32 %v998, 0.0
            %v1031 = vmax.f32 %v999, 0.0
            %v1032 = vmax.f32 %v1000, 0.0
            %v1033 = vmax.f32 %v1001, 0.0
            %v1034 = vmax.f32 %v1002, 0.0
            %v1035 = vmax.f32 %v1003, 0.0
            %v1036 = vmax.f32 %v1004, 0.0
            %v1037 = vmax.f32 %v1005, 0.0
            %v1038 = vmax.f32 %v1006, 0.0
            %v1039 = vmax.f32 %v1007, 0.0
            %v1040 = vmax.f32 %v1008, 0.0
            %v1041 = vmax.f32 %v1009, 0.0
            %v1042 = vmax.f32 %v1010, 0.0
            %v1043 = vmax.f32 %v1011, 0.0
            %v1044 = vmax.f32 %v1012, 0.0
            %v1045 = vmax.f32 %v1013, 0.0
            %v1046 = vmax.f32 %v1014, 0.0
            %v1047 = vmax.f32 %v1015, 0.0
            %v1048 = vld [vmem:[%s4] sm:$0xff]
            %vm1049 = vcmask 64512
            %v1051 = vsel %vm1049, %v1016, 0
            %v1054 = vsel %vm1049, %v1017, 0
            %v1057 = vsel %vm1049, %v1018, 0
            %v1060 = vsel %vm1049, %v1019, 0
            %v1063 = vsel %vm1049, %v1020, 0
            %v1066 = vsel %vm1049, %v1021, 0
            %v1069 = vsel %vm1049, %v1022, 0
            %v1072 = vsel %vm1049, %v1023, 0
            %v1075 = vsel %vm1049, %v1024, 0
            %v1078 = vsel %vm1049, %v1025, 0
            %v1081 = vsel %vm1049, %v1026, 0
            %v1084 = vsel %vm1049, %v1027, 0
            %v1087 = vsel %vm1049, %v1028, 0
            %v1090 = vsel %vm1049, %v1029, 0
            %v1093 = vsel %vm1049, %v1030, 0
            %v1096 = vsel %vm1049, %v1031, 0
            %v1099 = vsel %vm1049, %v1032, 0
            %v1102 = vsel %vm1049, %v1033, 0
            %v1105 = vsel %vm1049, %v1034, 0
            %v1108 = vsel %vm1049, %v1035, 0
            %v1111 = vsel %vm1049, %v1036, 0
            %v1114 = vsel %vm1049, %v1037, 0
            %v1117 = vsel %vm1049, %v1038, 0
            %v1120 = vsel %vm1049, %v1039, 0
            %v1123 = vsel %vm1049, %v1040, 0
            %v1126 = vsel %vm1049, %v1041, 0
            %v1129 = vsel %vm1049, %v1042, 0
            %v1132 = vsel %vm1049, %v1043, 0
            %v1135 = vsel %vm1049, %v1044, 0
            %v1138 = vsel %vm1049, %v1045, 0
            %v1141 = vsel %vm1049, %v1046, 0
            %v1144 = vsel %vm1049, %v1047, 0
            %1146 = vmatprep.subr.mxu0 0.0
            %1147 = vmatpush1.msra.mxu0 %v1048
            %1148 = vmatprep.subr.mxu0 0.0
            %1149 = vmatpush1.msra.mxu0 0.0
            %1150 = vmatprep.subr.mxu0 0.0
            %1151 = vmatpush1.msra.mxu0 0.0
            %1152 = vmatprep.subr.mxu0 0.0
            %1153 = vmatpush1.msra.mxu0 0.0
            %1154 = vmatprep.subr.mxu0 0.0
            %1155 = vmatpush1.msra.mxu0 0.0
            %1156 = vmatprep.subr.mxu0 0.0
            %1157 = vmatpush1.msra.mxu0 0.0
            %1158 = vmatprep.subr.mxu0 0.0
            %1159 = vmatpush1.msra.mxu0 0.0
            %1160 = vmatprep.subr.mxu0 0.0
            %1161 = vmatpush1.msra.mxu0 0.0
            %1162 = vmatprep.subr.mxu0 0.0
            %1163 = vmatpush1.msra.mxu0 0.0
            %1164 = vmatprep.subr.mxu0 0.0
            %1165 = vmatpush1.msra.mxu0 0.0
            %1166 = vmatprep.subr.mxu0 0.0
            %1167 = vmatpush1.msra.mxu0 0.0
            %1168 = vmatprep.subr.mxu0 0.0
            %1169 = vmatpush1.msra.mxu0 0.0
            %1170 = vmatprep.subr.mxu0 0.0
            %1171 = vmatpush1.msra.mxu0 0.0
            %1172 = vmatprep.subr.mxu0 0.0
            %1173 = vmatpush1.msra.mxu0 0.0
            %1174 = vmatprep.subr.mxu0 0.0
            %1175 = vmatpush1.msra.mxu0 0.0
            %1176 = vmatprep.subr.mxu0 0.0
            %1177 = vmatpush1.msra.mxu0 0.0
            %1178 = vmatprep.subr.mxu0 0.0
            %1179 = vmatpush1.msra.mxu0 0.0
            %1180 = vmatprep.subr.mxu0 0.0
            %1181 = vmatpush1.msra.mxu0 0.0
            %1182 = vmatprep.subr.mxu0 0.0
            %1183 = vmatpush1.msra.mxu0 0.0
            %1184 = vmatprep.subr.mxu0 0.0
            %1185 = vmatpush1.msra.mxu0 0.0
            %1186 = vmatprep.subr.mxu0 0.0
            %1187 = vmatpush1.msra.mxu0 0.0
            %1188 = vmatprep.subr.mxu0 0.0
            %1189 = vmatpush1.msra.mxu0 0.0
            %1190 = vmatprep.subr.mxu0 0.0
            %1191 = vmatpush1.msra.mxu0 0.0
            %1192 = vmatprep.subr.mxu0 0.0
            %1193 = vmatpush1.msra.mxu0 0.0
            %1194 = vmatprep.subr.mxu0 0.0
            %1195 = vmatpush1.msra.mxu0 0.0
            %1196 = vmatprep.subr.mxu0 0.0
            %1197 = vmatpush1.msra.mxu0 0.0
            %1198 = vmatprep.subr.mxu0 0.0
            %1199 = vmatpush1.msra.mxu0 0.0
            %1200 = vmatprep.subr.mxu0 0.0
            %1201 = vmatpush1.msra.mxu0 0.0
            %1202 = vmatprep.subr.mxu0 0.0
            %1203 = vmatpush1.msra.mxu0 0.0
            %1204 = vmatprep.subr.mxu0 0.0
            %1205 = vmatpush1.msra.mxu0 0.0
            %1206 = vmatprep.subr.mxu0 0.0
            %1207 = vmatpush1.msra.mxu0 0.0
            %1208 = vmatprep.subr.mxu0 0.0
            %1209 = vmatpush1.msra.mxu0 0.0
            %1210 = vmatprep.mubr.f32.mxu0 0.0
            %1211 = vmatmul.mubr.f32.gmra.mrb[0].mxu0 %v1051
            %v1212 = vpop.f32.mrb[0].mxu0
            %v1213 = vadd.f32 0.0, %v1212
            %v1214 = vpop.f32.mrb[0].mxu0
            %1215 = vmatprep.mubr.f32.mxu0 0.0
            %1216 = vmatmul.mubr.f32.gmra.mrb[0].mxu0 %v1054
            %v1217 = vpop.f32.mrb[0].mxu0
            %v1218 = vadd.f32 0.0, %v1217
            %v1219 = vpop.f32.mrb[0].mxu0
            %1220 = vmatprep.mubr.f32.mxu0 0.0
            %1221 = vmatmul.mubr.f32.gmra.mrb[0].mxu0 %v1057
            %v1222 = vpop.f32.mrb[0].mxu0
            %v1223 = vadd.f32 0.0, %v1222
            %v1224 = vpop.f32.mrb[0].mxu0
            %1225 = vmatprep.mubr.f32.mxu0 0.0
            %1226 = vmatmul.mubr.f32.gmra.mrb[0].mxu0 %v1060
            %v1227 = vpop.f32.mrb[0].mxu0
            %v1228 = vadd.f32 0.0, %v1227
            %v1229 = vpop.f32.mrb[0].mxu0
            %1230 = vmatprep.mubr.f32.mxu0 0.0
            %1231 = vmatmul.mubr.f32.gmra.mrb[0].mxu0 %v1063
            %v1232 = vpop.f32.mrb[0].mxu0
            %v1233 = vadd.f32 0.0, %v1232
            %v1234 = vpop.f32.mrb[0].mxu0
            %1235 = vmatprep.mubr.f32.mxu0 0.0
            %1236 = vmatmul.mubr.f32.gmra.mrb[0].mxu0 %v1066
            %v1237 = vpop.f32.mrb[0].mxu0
            %v1238 = vadd.f32 0.0, %v1237
            %v1239 = vpop.f32.mrb[0].mxu0
            %1240 = vmatprep.mubr.f32.mxu0 0.0
            %1241 = vmatmul.mubr.f32.gmra.mrb[0].mxu0 %v1069
            %v1242 = vpop.f32.mrb[0].mxu0
            %v1243 = vadd.f32 0.0, %v1242
            %v1244 = vpop.f32.mrb[0].mxu0
            %1245 = vmatprep.mubr.f32.mxu0 0.0
            %1246 = vmatmul.mubr.f32.gmra.mrb[0].mxu0 %v1072
            %v1247 = vpop.f32.mrb[0].mxu0
            %v1248 = vadd.f32 0.0, %v1247
            %v1249 = vpop.f32.mrb[0].mxu0
            %1250 = vmatprep.mubr.f32.mxu0 0.0
            %1251 = vmatmul.mubr.f32.gmra.mrb[0].mxu0 %v1075
            %v1252 = vpop.f32.mrb[0].mxu0
            %v1253 = vadd.f32 0.0, %v1252
            %v1254 = vpop.f32.mrb[0].mxu0
            %1255 = vmatprep.mubr.f32.mxu0 0.0
            %1256 = vmatmul.mubr.f32.gmra.mrb[0].mxu0 %v1078
            %v1257 = vpop.f32.mrb[0].mxu0
            %v1258 = vadd.f32 0.0, %v1257
            %v1259 = vpop.f32.mrb[0].mxu0
            %1260 = vmatprep.mubr.f32.mxu0 0.0
            %1261 = vmatmul.mubr.f32.gmra.mrb[0].mxu0 %v1081
            %v1262 = vpop.f32.mrb[0].mxu0
            %v1263 = vadd.f32 0.0, %v1262
            %v1264 = vpop.f32.mrb[0].mxu0
            %1265 = vmatprep.mubr.f32.mxu0 0.0
            %1266 = vmatmul.mubr.f32.gmra.mrb[0].mxu0 %v1084
            %v1267 = vpop.f32.mrb[0].mxu0
            %v1268 = vadd.f32 0.0, %v1267
            %v1269 = vpop.f32.mrb[0].mxu0
            %1270 = vmatprep.mubr.f32.mxu0 0.0
            %1271 = vmatmul.mubr.f32.gmra.mrb[0].mxu0 %v1087
            %v1272 = vpop.f32.mrb[0].mxu0
            %v1273 = vadd.f32 0.0, %v1272
            %v1274 = vpop.f32.mrb[0].mxu0
            %1275 = vmatprep.mubr.f32.mxu0 0.0
            %1276 = vmatmul.mubr.f32.gmra.mrb[0].mxu0 %v1090
            %v1277 = vpop.f32.mrb[0].mxu0
            %v1278 = vadd.f32 0.0, %v1277
            %v1279 = vpop.f32.mrb[0].mxu0
            %1280 = vmatprep.mubr.f32.mxu0 0.0
            %1281 = vmatmul.mubr.f32.gmra.mrb[0].mxu0 %v1093
            %v1282 = vpop.f32.mrb[0].mxu0
            %v1283 = vadd.f32 0.0, %v1282
            %v1284 = vpop.f32.mrb[0].mxu0
            %1285 = vmatprep.mubr.f32.mxu0 0.0
            %1286 = vmatmul.mubr.f32.gmra.mrb[0].mxu0 %v1096
            %v1287 = vpop.f32.mrb[0].mxu0
            %v1288 = vadd.f32 0.0, %v1287
            %v1289 = vpop.f32.mrb[0].mxu0
            %1290 = vmatprep.mubr.f32.mxu0 0.0
            %1291 = vmatmul.mubr.f32.gmra.mrb[0].mxu0 %v1099
            %v1292 = vpop.f32.mrb[0].mxu0
            %v1293 = vadd.f32 0.0, %v1292
            %v1294 = vpop.f32.mrb[0].mxu0
            %1295 = vmatprep.mubr.f32.mxu0 0.0
            %1296 = vmatmul.mubr.f32.gmra.mrb[0].mxu0 %v1102
            %v1297 = vpop.f32.mrb[0].mxu0
            %v1298 = vadd.f32 0.0, %v1297
            %v1299 = vpop.f32.mrb[0].mxu0
            %1300 = vmatprep.mubr.f32.mxu0 0.0
            %1301 = vmatmul.mubr.f32.gmra.mrb[0].mxu0 %v1105
            %v1302 = vpop.f32.mrb[0].mxu0
            %v1303 = vadd.f32 0.0, %v1302
            %v1304 = vpop.f32.mrb[0].mxu0
            %1305 = vmatprep.mubr.f32.mxu0 0.0
            %1306 = vmatmul.mubr.f32.gmra.mrb[0].mxu0 %v1108
            %v1307 = vpop.f32.mrb[0].mxu0
            %v1308 = vadd.f32 0.0, %v1307
            %v1309 = vpop.f32.mrb[0].mxu0
            %1310 = vmatprep.mubr.f32.mxu0 0.0
            %1311 = vmatmul.mubr.f32.gmra.mrb[0].mxu0 %v1111
            %v1312 = vpop.f32.mrb[0].mxu0
            %v1313 = vadd.f32 0.0, %v1312
            %v1314 = vpop.f32.mrb[0].mxu0
            %1315 = vmatprep.mubr.f32.mxu0 0.0
            %1316 = vmatmul.mubr.f32.gmra.mrb[0].mxu0 %v1114
            %v1317 = vpop.f32.mrb[0].mxu0
            %v1318 = vadd.f32 0.0, %v1317
            %v1319 = vpop.f32.mrb[0].mxu0
            %1320 = vmatprep.mubr.f32.mxu0 0.0
            %1321 = vmatmul.mubr.f32.gmra.mrb[0].mxu0 %v1117
            %v1322 = vpop.f32.mrb[0].mxu0
            %v1323 = vadd.f32 0.0, %v1322
            %v1324 = vpop.f32.mrb[0].mxu0
            %1325 = vmatprep.mubr.f32.mxu0 0.0
            %1326 = vmatmul.mubr.f32.gmra.mrb[0].mxu0 %v1120
            %v1327 = vpop.f32.mrb[0].mxu0
            %v1328 = vadd.f32 0.0, %v1327
            %v1329 = vpop.f32.mrb[0].mxu0
            %1330 = vmatprep.mubr.f32.mxu0 0.0
            %1331 = vmatmul.mubr.f32.gmra.mrb[0].mxu0 %v1123
            %v1332 = vpop.f32.mrb[0].mxu0
            %v1333 = vadd.f32 0.0, %v1332
            %v1334 = vpop.f32.mrb[0].mxu0
            %1335 = vmatprep.mubr.f32.mxu0 0.0
            %1336 = vmatmul.mubr.f32.gmra.mrb[0].mxu0 %v1126
            %v1337 = vpop.f32.mrb[0].mxu0
            %v1338 = vadd.f32 0.0, %v1337
            %v1339 = vpop.f32.mrb[0].mxu0
            %1340 = vmatprep.mubr.f32.mxu0 0.0
            %1341 = vmatmul.mubr.f32.gmra.mrb[0].mxu0 %v1129
            %v1342 = vpop.f32.mrb[0].mxu0
            %v1343 = vadd.f32 0.0, %v1342
            %v1344 = vpop.f32.mrb[0].mxu0
            %1345 = vmatprep.mubr.f32.mxu0 0.0
            %1346 = vmatmul.mubr.f32.gmra.mrb[0].mxu0 %v1132
            %v1347 = vpop.f32.mrb[0].mxu0
            %v1348 = vadd.f32 0.0, %v1347
            %v1349 = vpop.f32.mrb[0].mxu0
            %1350 = vmatprep.mubr.f32.mxu0 0.0
            %1351 = vmatmul.mubr.f32.gmra.mrb[0].mxu0 %v1135
            %v1352 = vpop.f32.mrb[0].mxu0
            %v1353 = vadd.f32 0.0, %v1352
            %v1354 = vpop.f32.mrb[0].mxu0
            %1355 = vmatprep.mubr.f32.mxu0 0.0
            %1356 = vmatmul.mubr.f32.gmra.mrb[0].mxu0 %v1138
            %v1357 = vpop.f32.mrb[0].mxu0
            %v1358 = vadd.f32 0.0, %v1357
            %v1359 = vpop.f32.mrb[0].mxu0
            %1360 = vmatprep.mubr.f32.mxu0 0.0
            %1361 = vmatmul.mubr.f32.gmra.mrb[0].mxu0 %v1141
            %v1362 = vpop.f32.mrb[0].mxu0
            %v1363 = vadd.f32 0.0, %v1362
            %v1364 = vpop.f32.mrb[0].mxu0
            %1365 = vmatprep.mubr.f32.mxu0 0.0
            %1366 = vmatmul.mubr.f32.gmra.mrb[0].mxu0 %v1144
            %v1367 = vpop.f32.mrb[0].mxu0
            %v1368 = vadd.f32 0.0, %v1367
            %v1369 = vpop.f32.mrb[0].mxu0
            %1370 = vdwg.mxu0
            %v1371 = vpack.c.bf16 %v1218, %v1213
            %v1372 = vpack.c.bf16 %v1228, %v1223
            %v1373 = vpack.c.bf16 %v1238, %v1233
            %v1374 = vpack.c.bf16 %v1248, %v1243
            %v1375 = vpack.c.bf16 %v1258, %v1253
            %v1376 = vpack.c.bf16 %v1268, %v1263
            %v1377 = vpack.c.bf16 %v1278, %v1273
            %v1378 = vpack.c.bf16 %v1288, %v1283
            %v1379 = vpack.c.bf16 %v1298, %v1293
            %v1380 = vpack.c.bf16 %v1308, %v1303
            %v1381 = vpack.c.bf16 %v1318, %v1313
            %v1382 = vpack.c.bf16 %v1328, %v1323
            %v1383 = vpack.c.bf16 %v1338, %v1333
            %v1384 = vpack.c.bf16 %v1348, %v1343
            %v1385 = vpack.c.bf16 %v1358, %v1353
            %v1386 = vpack.c.bf16 %v1368, %v1363
            %vm1387 = vcmask 130048
            %1388 = vst.msk [vmem:[#allocation7] sm:$0xff] %vm1387, %v1371
            %1389 = vst.msk [vmem:[#allocation7 + $0x8] sm:$0xff] %vm1387, %v1372
            %1390 = vst.msk [vmem:[#allocation7 + $0x10] sm:$0xff] %vm1387, %v1373
            %1391 = vst.msk [vmem:[#allocation7 + $0x18] sm:$0xff] %vm1387, %v1374
            %1392 = vst.msk [vmem:[#allocation7 + $0x20] sm:$0xff] %vm1387, %v1375
            %1393 = vst.msk [vmem:[#allocation7 + $0x28] sm:$0xff] %vm1387, %v1376
            %1394 = vst.msk [vmem:[#allocation7 + $0x30] sm:$0xff] %vm1387, %v1377
            %1395 = vst.msk [vmem:[#allocation7 + $0x38] sm:$0xff] %vm1387, %v1378
            %1396 = vst.msk [vmem:[#allocation7 + $0x40] sm:$0xff] %vm1387, %v1379
            %1397 = vst.msk [vmem:[#allocation7 + $0x48] sm:$0xff] %vm1387, %v1380
            %1398 = vst.msk [vmem:[#allocation7 + $0x50] sm:$0xff] %vm1387, %v1381
            %1399 = vst.msk [vmem:[#allocation7 + $0x58] sm:$0xff] %vm1387, %v1382
            %1400 = vst.msk [vmem:[#allocation7 + $0x60] sm:$0xff] %vm1387, %v1383
            %1401 = vst.msk [vmem:[#allocation7 + $0x68] sm:$0xff] %vm1387, %v1384
            %1402 = vst.msk [vmem:[#allocation7 + $0x70] sm:$0xff] %vm1387, %v1385
            %1403 = vst.msk [vmem:[#allocation7 + $0x78] sm:$0xff] %vm1387, %v1386
          $region104: #{graph_encoder_forward.1} parent=95 // pred_fallthru
            _
          %p1404 = scmp.eq.s32.totalorder %s34, 2
          // Predicated region
          $region105: #{graph_encoder_forward.1} parent=95 // pred_check
            %p1405 = pneg %p1404
          $region106: #{graph_encoder_forward.1} parent=95 // pred_check_branch
            %1407 = sbr.rel (%p1405) target = $region108
          $region107: #{graph_encoder_forward.1} parent=95 // pred_region
            %v1408 = vld [vmem:[#allocation3] sm:$0xff]
            %v1409 = vld [vmem:[#allocation3 + $0x8] sm:$0xff]
            %v1410 = vld [vmem:[#allocation3 + $0x10] sm:$0xff]
            %v1411 = vld [vmem:[#allocation3 + $0x18] sm:$0xff]
            %v1412 = vld [vmem:[#allocation3 + $0x20] sm:$0xff]
            %v1413 = vld [vmem:[#allocation3 + $0x28] sm:$0xff]
            %v1414 = vld [vmem:[#allocation3 + $0x30] sm:$0xff]
            %v1415 = vld [vmem:[#allocation3 + $0x38] sm:$0xff]
            %v1416 = vld [vmem:[#allocation3 + $0x40] sm:$0xff]
            %v1417 = vld [vmem:[#allocation3 + $0x48] sm:$0xff]
            %v1418 = vld [vmem:[#allocation3 + $0x50] sm:$0xff]
            %v1419 = vld [vmem:[#allocation3 + $0x58] sm:$0xff]
            %v1420 = vld [vmem:[#allocation3 + $0x60] sm:$0xff]
            %v1421 = vld [vmem:[#allocation3 + $0x68] sm:$0xff]
            %v1422 = vld [vmem:[#allocation3 + $0x70] sm:$0xff]
            %v1423 = vld [vmem:[#allocation3 + $0x78] sm:$0xff]
            %v1424 = vld [vmem:[#allocation3 + $0x80] sm:$0xff]
            %v1425 = vld [vmem:[#allocation3 + $0x88] sm:$0xff]
            %v1426 = vld [vmem:[#allocation3 + $0x90] sm:$0xff]
            %v1427 = vld [vmem:[#allocation3 + $0x98] sm:$0xff]
            %v1428 = vld [vmem:[#allocation3 + $0xa0] sm:$0xff]
            %v1429 = vld [vmem:[#allocation3 + $0xa8] sm:$0xff]
            %v1430 = vld [vmem:[#allocation3 + $0xb0] sm:$0xff]
            %v1431 = vld [vmem:[#allocation3 + $0xb8] sm:$0xff]
            %v1432 = vld [vmem:[#allocation3 + $0xc0] sm:$0xff]
            %v1433 = vld [vmem:[#allocation3 + $0xc8] sm:$0xff]
            %v1434 = vld [vmem:[#allocation3 + $0xd0] sm:$0xff]
            %v1435 = vld [vmem:[#allocation3 + $0xd8] sm:$0xff]
            %v1436 = vld [vmem:[#allocation3 + $0xe0] sm:$0xff]
            %v1437 = vld [vmem:[#allocation3 + $0xe8] sm:$0xff]
            %v1438 = vld [vmem:[#allocation3 + $0xf0] sm:$0xff]
            %v1439 = vld [vmem:[#allocation3 + $0xf8] sm:$0xff]
            %v1440 = vld [vmem:[%s6] sm:$0x3]
            %vm1441 = vcmask 130048
            %v1442 = vsel %vm1441, %v1408, 0.0
            %v1443 = vsel %vm1441, %v1409, 0.0
            %v1444 = vadd.f32 %v1442, %v1443
            %v1445 = vsel %vm1441, %v1410, 0.0
            %v1446 = vadd.f32 %v1444, %v1445
            %v1447 = vsel %vm1441, %v1411, 0.0
            %v1448 = vadd.f32 %v1446, %v1447
            %v1449 = vsel %vm1441, %v1412, 0.0
            %v1450 = vadd.f32 %v1448, %v1449
            %v1451 = vsel %vm1441, %v1413, 0.0
            %v1452 = vadd.f32 %v1450, %v1451
            %v1453 = vsel %vm1441, %v1414, 0.0
            %v1454 = vadd.f32 %v1452, %v1453
            %v1455 = vsel %vm1441, %v1415, 0.0
            %v1456 = vadd.f32 %v1454, %v1455
            %v1457 = vsel %vm1441, %v1416, 0.0
            %v1458 = vadd.f32 %v1456, %v1457
            %v1459 = vsel %vm1441, %v1417, 0.0
            %v1460 = vadd.f32 %v1458, %v1459
            %v1461 = vsel %vm1441, %v1418, 0.0
            %v1462 = vadd.f32 %v1460, %v1461
            %v1463 = vsel %vm1441, %v1419, 0.0
            %v1464 = vadd.f32 %v1462, %v1463
            %v1465 = vsel %vm1441, %v1420, 0.0
            %v1466 = vadd.f32 %v1464, %v1465
            %v1467 = vsel %vm1441, %v1421, 0.0
            %v1468 = vadd.f32 %v1466, %v1467
            %v1469 = vsel %vm1441, %v1422, 0.0
            %v1470 = vadd.f32 %v1468, %v1469
            %v1471 = vsel %vm1441, %v1423, 0.0
            %v1472 = vadd.f32 %v1470, %v1471
            %v1473 = vsel %vm1441, %v1424, 0.0
            %v1474 = vadd.f32 %v1472, %v1473
            %v1475 = vsel %vm1441, %v1425, 0.0
            %v1476 = vadd.f32 %v1474, %v1475
            %v1477 = vsel %vm1441, %v1426, 0.0
            %v1478 = vadd.f32 %v1476, %v1477
            %v1479 = vsel %vm1441, %v1427, 0.0
            %v1480 = vadd.f32 %v1478, %v1479
            %v1481 = vsel %vm1441, %v1428, 0.0
            %v1482 = vadd.f32 %v1480, %v1481
            %v1483 = vsel %vm1441, %v1429, 0.0
            %v1484 = vadd.f32 %v1482, %v1483
            %v1485 = vsel %vm1441, %v1430, 0.0
            %v1486 = vadd.f32 %v1484, %v1485
            %v1487 = vsel %vm1441, %v1431, 0.0
            %v1488 = vadd.f32 %v1486, %v1487
            %v1489 = vsel %vm1441, %v1432, 0.0
            %v1490 = vadd.f32 %v1488, %v1489
            %v1491 = vsel %vm1441, %v1433, 0.0
            %v1492 = vadd.f32 %v1490, %v1491
            %v1493 = vsel %vm1441, %v1434, 0.0
            %v1494 = vadd.f32 %v1492, %v1493
            %v1495 = vsel %vm1441, %v1435, 0.0
            %v1496 = vadd.f32 %v1494, %v1495
            %v1497 = vsel %vm1441, %v1436, 0.0
            %v1498 = vadd.f32 %v1496, %v1497
            %v1499 = vsel %vm1441, %v1437, 0.0
            %v1500 = vadd.f32 %v1498, %v1499
            %v1501 = vsel %vm1441, %v1438, 0.0
            %v1502 = vadd.f32 %v1500, %v1501
            %v1503 = vsel %vm1441, %v1439, 0.0
            %v1504 = vadd.f32 %v1502, %v1503
            %v1505 = vrot.slane %v1504, 4
            %v1506 = vadd.f32 %v1504, %v1505
            %v1507 = vrot.slane %v1506, 2
            %v1508 = vadd.f32 %v1506, %v1507
            %v1509 = vrot.slane %v1508, 1
            %v1510 = vadd.f32 %v1508, %v1509
            %v1511 = vrcp.pop 256.0
            %v1512 = vmul.f32 %v1510, %v1511
            %v1513 = vsub.f32 %v1408, %v1512
            %v1514 = vsub.f32 %v1409, %v1512
            %v1515 = vsub.f32 %v1410, %v1512
            %v1516 = vsub.f32 %v1411, %v1512
            %v1517 = vsub.f32 %v1412, %v1512
            %v1518 = vsub.f32 %v1413, %v1512
            %v1519 = vsub.f32 %v1414, %v1512
            %v1520 = vsub.f32 %v1415, %v1512
            %v1521 = vsub.f32 %v1416, %v1512
            %v1522 = vsub.f32 %v1417, %v1512
            %v1523 = vsub.f32 %v1418, %v1512
            %v1524 = vsub.f32 %v1419, %v1512
            %v1525 = vsub.f32 %v1420, %v1512
            %v1526 = vsub.f32 %v1421, %v1512
            %v1527 = vsub.f32 %v1422, %v1512
            %v1528 = vsub.f32 %v1423, %v1512
            %v1529 = vsub.f32 %v1424, %v1512
            %v1530 = vsub.f32 %v1425, %v1512
            %v1531 = vsub.f32 %v1426, %v1512
            %v1532 = vsub.f32 %v1427, %v1512
            %v1533 = vsub.f32 %v1428, %v1512
            %v1534 = vsub.f32 %v1429, %v1512
            %v1535 = vsub.f32 %v1430, %v1512
            %v1536 = vsub.f32 %v1431, %v1512
            %v1537 = vsub.f32 %v1432, %v1512
            %v1538 = vsub.f32 %v1433, %v1512
            %v1539 = vsub.f32 %v1434, %v1512
            %v1540 = vsub.f32 %v1435, %v1512
            %v1541 = vsub.f32 %v1436, %v1512
            %v1542 = vsub.f32 %v1437, %v1512
            %v1543 = vsub.f32 %v1438, %v1512
            %v1544 = vsub.f32 %v1439, %v1512
            %v1545 = vmul.f32 %v1513, %v1513
            %v1546 = vmul.f32 %v1514, %v1514
            %v1547 = vmul.f32 %v1515, %v1515
            %v1548 = vmul.f32 %v1516, %v1516
            %v1549 = vmul.f32 %v1517, %v1517
            %v1550 = vmul.f32 %v1518, %v1518
            %v1551 = vmul.f32 %v1519, %v1519
            %v1552 = vmul.f32 %v1520, %v1520
            %v1553 = vmul.f32 %v1521, %v1521
            %v1554 = vmul.f32 %v1522, %v1522
            %v1555 = vmul.f32 %v1523, %v1523
            %v1556 = vmul.f32 %v1524, %v1524
            %v1557 = vmul.f32 %v1525, %v1525
            %v1558 = vmul.f32 %v1526, %v1526
            %v1559 = vmul.f32 %v1527, %v1527
            %v1560 = vmul.f32 %v1528, %v1528
            %v1561 = vmul.f32 %v1529, %v1529
            %v1562 = vmul.f32 %v1530, %v1530
            %v1563 = vmul.f32 %v1531, %v1531
            %v1564 = vmul.f32 %v1532, %v1532
            %v1565 = vmul.f32 %v1533, %v1533
            %v1566 = vmul.f32 %v1534, %v1534
            %v1567 = vmul.f32 %v1535, %v1535
            %v1568 = vmul.f32 %v1536, %v1536
            %v1569 = vmul.f32 %v1537, %v1537
            %v1570 = vmul.f32 %v1538, %v1538
            %v1571 = vmul.f32 %v1539, %v1539
            %v1572 = vmul.f32 %v1540, %v1540
            %v1573 = vmul.f32 %v1541, %v1541
            %v1574 = vmul.f32 %v1542, %v1542
            %v1575 = vmul.f32 %v1543, %v1543
            %v1576 = vmul.f32 %v1544, %v1544
            %v1577 = vsel %vm1441, %v1545, 0.0
            %v1578 = vsel %vm1441, %v1546, 0.0
            %v1579 = vadd.f32 %v1577, %v1578
            %v1580 = vsel %vm1441, %v1547, 0.0
            %v1581 = vadd.f32 %v1579, %v1580
            %v1582 = vsel %vm1441, %v1548, 0.0
            %v1583 = vadd.f32 %v1581, %v1582
            %v1584 = vsel %vm1441, %v1549, 0.0
            %v1585 = vadd.f32 %v1583, %v1584
            %v1586 = vsel %vm1441, %v1550, 0.0
            %v1587 = vadd.f32 %v1585, %v1586
            %v1588 = vsel %vm1441, %v1551, 0.0
            %v1589 = vadd.f32 %v1587, %v1588
            %v1590 = vsel %vm1441, %v1552, 0.0
            %v1591 = vadd.f32 %v1589, %v1590
            %v1592 = vsel %vm1441, %v1553, 0.0
            %v1593 = vadd.f32 %v1591, %v1592
            %v1594 = vsel %vm1441, %v1554, 0.0
            %v1595 = vadd.f32 %v1593, %v1594
            %v1596 = vsel %vm1441, %v1555, 0.0
            %v1597 = vadd.f32 %v1595, %v1596
            %v1598 = vsel %vm1441, %v1556, 0.0
            %v1599 = vadd.f32 %v1597, %v1598
            %v1600 = vsel %vm1441, %v1557, 0.0
            %v1601 = vadd.f32 %v1599, %v1600
            %v1602 = vsel %vm1441, %v1558, 0.0
            %v1603 = vadd.f32 %v1601, %v1602
            %v1604 = vsel %vm1441, %v1559, 0.0
            %v1605 = vadd.f32 %v1603, %v1604
            %v1606 = vsel %vm1441, %v1560, 0.0
            %v1607 = vadd.f32 %v1605, %v1606
            %v1608 = vsel %vm1441, %v1561, 0.0
            %v1609 = vadd.f32 %v1607, %v1608
            %v1610 = vsel %vm1441, %v1562, 0.0
            %v1611 = vadd.f32 %v1609, %v1610
            %v1612 = vsel %vm1441, %v1563, 0.0
            %v1613 = vadd.f32 %v1611, %v1612
            %v1614 = vsel %vm1441, %v1564, 0.0
            %v1615 = vadd.f32 %v1613, %v1614
            %v1616 = vsel %vm1441, %v1565, 0.0
            %v1617 = vadd.f32 %v1615, %v1616
            %v1618 = vsel %vm1441, %v1566, 0.0
            %v1619 = vadd.f32 %v1617, %v1618
            %v1620 = vsel %vm1441, %v1567, 0.0
            %v1621 = vadd.f32 %v1619, %v1620
            %v1622 = vsel %vm1441, %v1568, 0.0
            %v1623 = vadd.f32 %v1621, %v1622
            %v1624 = vsel %vm1441, %v1569, 0.0
            %v1625 = vadd.f32 %v1623, %v1624
            %v1626 = vsel %vm1441, %v1570, 0.0
            %v1627 = vadd.f32 %v1625, %v1626
            %v1628 = vsel %vm1441, %v1571, 0.0
            %v1629 = vadd.f32 %v1627, %v1628
            %v1630 = vsel %vm1441, %v1572, 0.0
            %v1631 = vadd.f32 %v1629, %v1630
            %v1632 = vsel %vm1441, %v1573, 0.0
            %v1633 = vadd.f32 %v1631, %v1632
            %v1634 = vsel %vm1441, %v1574, 0.0
            %v1635 = vadd.f32 %v1633, %v1634
            %v1636 = vsel %vm1441, %v1575, 0.0
            %v1637 = vadd.f32 %v1635, %v1636
            %v1638 = vsel %vm1441, %v1576, 0.0
            %v1639 = vadd.f32 %v1637, %v1638
            %v1640 = vrot.slane %v1639, 4
            %v1641 = vadd.f32 %v1639, %v1640
            %v1642 = vrot.slane %v1641, 2
            %v1643 = vadd.f32 %v1641, %v1642
            %v1644 = vrot.slane %v1643, 1
            %v1645 = vadd.f32 %v1643, %v1644
            %v1646 = vmul.f32 %v1645, %v1511
            %v1647 = vadd.f32 %v1646, 1e-05
            %v1648 = vrsqrt.pop %v1647
            %v1649 = vmul.f32 %v1513, %v1648
            %v1650 = vmul.f32 %v1514, %v1648
            %v1651 = vmul.f32 %v1515, %v1648
            %v1652 = vmul.f32 %v1516, %v1648
            %v1653 = vmul.f32 %v1517, %v1648
            %v1654 = vmul.f32 %v1518, %v1648
            %v1655 = vmul.f32 %v1519, %v1648
            %v1656 = vmul.f32 %v1520, %v1648
            %v1657 = vmul.f32 %v1521, %v1648
            %v1658 = vmul.f32 %v1522, %v1648
            %v1659 = vmul.f32 %v1523, %v1648
            %v1660 = vmul.f32 %v1524, %v1648
            %v1661 = vmul.f32 %v1525, %v1648
            %v1662 = vmul.f32 %v1526, %v1648
            %v1663 = vmul.f32 %v1527, %v1648
            %v1664 = vmul.f32 %v1528, %v1648
            %v1665 = vmul.f32 %v1529, %v1648
            %v1666 = vmul.f32 %v1530, %v1648
            %v1667 = vmul.f32 %v1531, %v1648
            %v1668 = vmul.f32 %v1532, %v1648
            %v1669 = vmul.f32 %v1533, %v1648
            %v1670 = vmul.f32 %v1534, %v1648
            %v1671 = vmul.f32 %v1535, %v1648
            %v1672 = vmul.f32 %v1536, %v1648
            %v1673 = vmul.f32 %v1537, %v1648
            %v1674 = vmul.f32 %v1538, %v1648
            %v1675 = vmul.f32 %v1539, %v1648
            %v1676 = vmul.f32 %v1540, %v1648
            %v1677 = vmul.f32 %v1541, %v1648
            %v1678 = vmul.f32 %v1542, %v1648
            %v1679 = vmul.f32 %v1543, %v1648
            %v1680 = vmul.f32 %v1544, %v1648
            %v1681 = vlaneseq
            %v1682 = vshrl.u32 %v1681, 7
            %v1683 = vsub.s32 0, %v1682
            %v1684 = vrot.slane %v1440, %v1683
            %v1685 = vmul.f32 %v1649, %v1684
            %v1686 = vmul.f32 %v1650, %v1684
            %v1687 = vmul.f32 %v1651, %v1684
            %v1688 = vmul.f32 %v1652, %v1684
            %v1689 = vmul.f32 %v1653, %v1684
            %v1690 = vmul.f32 %v1654, %v1684
            %v1691 = vmul.f32 %v1655, %v1684
            %v1692 = vmul.f32 %v1656, %v1684
            %v1693 = vmul.f32 %v1657, %v1684
            %v1694 = vmul.f32 %v1658, %v1684
            %v1695 = vmul.f32 %v1659, %v1684
            %v1696 = vmul.f32 %v1660, %v1684
            %v1697 = vmul.f32 %v1661, %v1684
            %v1698 = vmul.f32 %v1662, %v1684
            %v1699 = vmul.f32 %v1663, %v1684
            %v1700 = vmul.f32 %v1664, %v1684
            %v1701 = vmul.f32 %v1665, %v1684
            %v1702 = vmul.f32 %v1666, %v1684
            %v1703 = vmul.f32 %v1667, %v1684
            %v1704 = vmul.f32 %v1668, %v1684
            %v1705 = vmul.f32 %v1669, %v1684
            %v1706 = vmul.f32 %v1670, %v1684
            %v1707 = vmul.f32 %v1671, %v1684
            %v1708 = vmul.f32 %v1672, %v1684
            %v1709 = vmul.f32 %v1673, %v1684
            %v1710 = vmul.f32 %v1674, %v1684
            %v1711 = vmul.f32 %v1675, %v1684
            %v1712 = vmul.f32 %v1676, %v1684
            %v1713 = vmul.f32 %v1677, %v1684
            %v1714 = vmul.f32 %v1678, %v1684
            %v1715 = vmul.f32 %v1679, %v1684
            %v1716 = vmul.f32 %v1680, %v1684
            %v1717 = vlaneseq
            %v1718 = vshrl.u32 %v1717, 7
            %v1719 = vsub.s32 1, %v1718
            %v1720 = vrot.slane %v1440, %v1719
            %v1721 = vadd.f32 %v1685, %v1720
            %v1722 = vadd.f32 %v1686, %v1720
            %v1723 = vadd.f32 %v1687, %v1720
            %v1724 = vadd.f32 %v1688, %v1720
            %v1725 = vadd.f32 %v1689, %v1720
            %v1726 = vadd.f32 %v1690, %v1720
            %v1727 = vadd.f32 %v1691, %v1720
            %v1728 = vadd.f32 %v1692, %v1720
            %v1729 = vadd.f32 %v1693, %v1720
            %v1730 = vadd.f32 %v1694, %v1720
            %v1731 = vadd.f32 %v1695, %v1720
            %v1732 = vadd.f32 %v1696, %v1720
            %v1733 = vadd.f32 %v1697, %v1720
            %v1734 = vadd.f32 %v1698, %v1720
            %v1735 = vadd.f32 %v1699, %v1720
            %v1736 = vadd.f32 %v1700, %v1720
            %v1737 = vadd.f32 %v1701, %v1720
            %v1738 = vadd.f32 %v1702, %v1720
            %v1739 = vadd.f32 %v1703, %v1720
            %v1740 = vadd.f32 %v1704, %v1720
            %v1741 = vadd.f32 %v1705, %v1720
            %v1742 = vadd.f32 %v1706, %v1720
            %v1743 = vadd.f32 %v1707, %v1720
            %v1744 = vadd.f32 %v1708, %v1720
            %v1745 = vadd.f32 %v1709, %v1720
            %v1746 = vadd.f32 %v1710, %v1720
            %v1747 = vadd.f32 %v1711, %v1720
            %v1748 = vadd.f32 %v1712, %v1720
            %v1749 = vadd.f32 %v1713, %v1720
            %v1750 = vadd.f32 %v1714, %v1720
            %v1751 = vadd.f32 %v1715, %v1720
            %v1752 = vadd.f32 %v1716, %v1720
            %v1753 = vmax.f32 %v1721, 0.0
            %v1754 = vmax.f32 %v1722, 0.0
            %v1755 = vmax.f32 %v1723, 0.0
            %v1756 = vmax.f32 %v1724, 0.0
            %v1757 = vmax.f32 %v1725, 0.0
            %v1758 = vmax.f32 %v1726, 0.0
            %v1759 = vmax.f32 %v1727, 0.0
            %v1760 = vmax.f32 %v1728, 0.0
            %v1761 = vmax.f32 %v1729, 0.0
            %v1762 = vmax.f32 %v1730, 0.0
            %v1763 = vmax.f32 %v1731, 0.0
            %v1764 = vmax.f32 %v1732, 0.0
            %v1765 = vmax.f32 %v1733, 0.0
            %v1766 = vmax.f32 %v1734, 0.0
            %v1767 = vmax.f32 %v1735, 0.0
            %v1768 = vmax.f32 %v1736, 0.0
            %v1769 = vmax.f32 %v1737, 0.0
            %v1770 = vmax.f32 %v1738, 0.0
            %v1771 = vmax.f32 %v1739, 0.0
            %v1772 = vmax.f32 %v1740, 0.0
            %v1773 = vmax.f32 %v1741, 0.0
            %v1774 = vmax.f32 %v1742, 0.0
            %v1775 = vmax.f32 %v1743, 0.0
            %v1776 = vmax.f32 %v1744, 0.0
            %v1777 = vmax.f32 %v1745, 0.0
            %v1778 = vmax.f32 %v1746, 0.0
            %v1779 = vmax.f32 %v1747, 0.0
            %v1780 = vmax.f32 %v1748, 0.0
            %v1781 = vmax.f32 %v1749, 0.0
            %v1782 = vmax.f32 %v1750, 0.0
            %v1783 = vmax.f32 %v1751, 0.0
            %v1784 = vmax.f32 %v1752, 0.0
            %v1785 = vld [vmem:[%s7] sm:$0xff]
            %v1786 = vld [vmem:[%s7 + $0x8] sm:$0xff]
            %v1788 = vsel %vm1441, %v1753, 0
            %v1791 = vsel %vm1441, %v1754, 0
            %v1794 = vsel %vm1441, %v1755, 0
            %v1797 = vsel %vm1441, %v1756, 0
            %v1800 = vsel %vm1441, %v1757, 0
            %v1803 = vsel %vm1441, %v1758, 0
            %v1806 = vsel %vm1441, %v1759, 0
            %v1809 = vsel %vm1441, %v1760, 0
            %v1812 = vsel %vm1441, %v1761, 0
            %v1815 = vsel %vm1441, %v1762, 0
            %v1818 = vsel %vm1441, %v1763, 0
            %v1821 = vsel %vm1441, %v1764, 0
            %v1824 = vsel %vm1441, %v1765, 0
            %v1827 = vsel %vm1441, %v1766, 0
            %v1830 = vsel %vm1441, %v1767, 0
            %v1833 = vsel %vm1441, %v1768, 0
            %v1836 = vsel %vm1441, %v1769, 0
            %v1839 = vsel %vm1441, %v1770, 0
            %v1842 = vsel %vm1441, %v1771, 0
            %v1845 = vsel %vm1441, %v1772, 0
            %v1848 = vsel %vm1441, %v1773, 0
            %v1851 = vsel %vm1441, %v1774, 0
            %v1854 = vsel %vm1441, %v1775, 0
            %v1857 = vsel %vm1441, %v1776, 0
            %v1860 = vsel %vm1441, %v1777, 0
            %v1863 = vsel %vm1441, %v1778, 0
            %v1866 = vsel %vm1441, %v1779, 0
            %v1869 = vsel %vm1441, %v1780, 0
            %v1872 = vsel %vm1441, %v1781, 0
            %v1875 = vsel %vm1441, %v1782, 0
            %v1878 = vsel %vm1441, %v1783, 0
            %v1881 = vsel %vm1441, %v1784, 0
            %1883 = vmatprep.subr.mxu0 0.0
            %1884 = vmatpush1.msra.mxu0 %v1785
            %1885 = vmatprep.subr.mxu0 0.0
            %1886 = vmatpush1.msra.mxu0 %v1786
            %1887 = vmatprep.subr.mxu0 0.0
            %1888 = vmatpush1.msra.mxu0 0.0
            %1889 = vmatprep.subr.mxu0 0.0
            %1890 = vmatpush1.msra.mxu0 0.0
            %1891 = vmatprep.subr.mxu0 0.0
            %1892 = vmatpush1.msra.mxu0 0.0
            %1893 = vmatprep.subr.mxu0 0.0
            %1894 = vmatpush1.msra.mxu0 0.0
            %1895 = vmatprep.subr.mxu0 0.0
            %1896 = vmatpush1.msra.mxu0 0.0
            %1897 = vmatprep.subr.mxu0 0.0
            %1898 = vmatpush1.msra.mxu0 0.0
            %1899 = vmatprep.subr.mxu0 0.0
            %1900 = vmatpush1.msra.mxu0 0.0
            %1901 = vmatprep.subr.mxu0 0.0
            %1902 = vmatpush1.msra.mxu0 0.0
            %1903 = vmatprep.subr.mxu0 0.0
            %1904 = vmatpush1.msra.mxu0 0.0
            %1905 = vmatprep.subr.mxu0 0.0
            %1906 = vmatpush1.msra.mxu0 0.0
            %1907 = vmatprep.subr.mxu0 0.0
            %1908 = vmatpush1.msra.mxu0 0.0
            %1909 = vmatprep.subr.mxu0 0.0
            %1910 = vmatpush1.msra.mxu0 0.0
            %1911 = vmatprep.subr.mxu0 0.0
            %1912 = vmatpush1.msra.mxu0 0.0
            %1913 = vmatprep.subr.mxu0 0.0
            %1914 = vmatpush1.msra.mxu0 0.0
            %1915 = vmatprep.subr.mxu0 0.0
            %1916 = vmatpush1.msra.mxu0 0.0
            %1917 = vmatprep.subr.mxu0 0.0
            %1918 = vmatpush1.msra.mxu0 0.0
            %1919 = vmatprep.subr.mxu0 0.0
            %1920 = vmatpush1.msra.mxu0 0.0
            %1921 = vmatprep.subr.mxu0 0.0
            %1922 = vmatpush1.msra.mxu0 0.0
            %1923 = vmatprep.subr.mxu0 0.0
            %1924 = vmatpush1.msra.mxu0 0.0
            %1925 = vmatprep.subr.mxu0 0.0
            %1926 = vmatpush1.msra.mxu0 0.0
            %1927 = vmatprep.subr.mxu0 0.0
            %1928 = vmatpush1.msra.mxu0 0.0
            %1929 = vmatprep.subr.mxu0 0.0
            %1930 = vmatpush1.msra.mxu0 0.0
            %1931 = vmatprep.subr.mxu0 0.0
            %1932 = vmatpush1.msra.mxu0 0.0
            %1933 = vmatprep.subr.mxu0 0.0
            %1934 = vmatpush1.msra.mxu0 0.0
            %1935 = vmatprep.subr.mxu0 0.0
            %1936 = vmatpush1.msra.mxu0 0.0
            %1937 = vmatprep.subr.mxu0 0.0
            %1938 = vmatpush1.msra.mxu0 0.0
            %1939 = vmatprep.subr.mxu0 0.0
            %1940 = vmatpush1.msra.mxu0 0.0
            %1941 = vmatprep.subr.mxu0 0.0
            %1942 = vmatpush1.msra.mxu0 0.0
            %1943 = vmatprep.subr.mxu0 0.0
            %1944 = vmatpush1.msra.mxu0 0.0
            %1945 = vmatprep.subr.mxu0 0.0
            %1946 = vmatpush1.msra.mxu0 0.0
            %1947 = vmatprep.mubr.f32.mxu0 0.0
            %1948 = vmatmul.mubr.f32.gmra.mrb[0].mxu0 %v1788
            %v1949 = vpop.f32.mrb[0].mxu0
            %v1950 = vadd.f32 0.0, %v1949
            %v1951 = vpop.f32.mrb[0].mxu0
            %1952 = vmatprep.mubr.f32.mxu0 0.0
            %1953 = vmatmul.mubr.f32.gmra.mrb[0].mxu0 %v1791
            %v1954 = vpop.f32.mrb[0].mxu0
            %v1955 = vadd.f32 0.0, %v1954
            %v1956 = vpop.f32.mrb[0].mxu0
            %1957 = vmatprep.mubr.f32.mxu0 0.0
            %1958 = vmatmul.mubr.f32.gmra.mrb[0].mxu0 %v1794
            %v1959 = vpop.f32.mrb[0].mxu0
            %v1960 = vadd.f32 0.0, %v1959
            %v1961 = vpop.f32.mrb[0].mxu0
            %1962 = vmatprep.mubr.f32.mxu0 0.0
            %1963 = vmatmul.mubr.f32.gmra.mrb[0].mxu0 %v1797
            %v1964 = vpop.f32.mrb[0].mxu0
            %v1965 = vadd.f32 0.0, %v1964
            %v1966 = vpop.f32.mrb[0].mxu0
            %1967 = vmatprep.mubr.f32.mxu0 0.0
            %1968 = vmatmul.mubr.f32.gmra.mrb[0].mxu0 %v1800
            %v1969 = vpop.f32.mrb[0].mxu0
            %v1970 = vadd.f32 0.0, %v1969
            %v1971 = vpop.f32.mrb[0].mxu0
            %1972 = vmatprep.mubr.f32.mxu0 0.0
            %1973 = vmatmul.mubr.f32.gmra.mrb[0].mxu0 %v1803
            %v1974 = vpop.f32.mrb[0].mxu0
            %v1975 = vadd.f32 0.0, %v1974
            %v1976 = vpop.f32.mrb[0].mxu0
            %1977 = vmatprep.mubr.f32.mxu0 0.0
            %1978 = vmatmul.mubr.f32.gmra.mrb[0].mxu0 %v1806
            %v1979 = vpop.f32.mrb[0].mxu0
            %v1980 = vadd.f32 0.0, %v1979
            %v1981 = vpop.f32.mrb[0].mxu0
            %1982 = vmatprep.mubr.f32.mxu0 0.0
            %1983 = vmatmul.mubr.f32.gmra.mrb[0].mxu0 %v1809
            %v1984 = vpop.f32.mrb[0].mxu0
            %v1985 = vadd.f32 0.0, %v1984
            %v1986 = vpop.f32.mrb[0].mxu0
            %1987 = vmatprep.mubr.f32.mxu0 0.0
            %1988 = vmatmul.mubr.f32.gmra.mrb[0].mxu0 %v1812
            %v1989 = vpop.f32.mrb[0].mxu0
            %v1990 = vadd.f32 0.0, %v1989
            %v1991 = vpop.f32.mrb[0].mxu0
            %1992 = vmatprep.mubr.f32.mxu0 0.0
            %1993 = vmatmul.mubr.f32.gmra.mrb[0].mxu0 %v1815
            %v1994 = vpop.f32.mrb[0].mxu0
            %v1995 = vadd.f32 0.0, %v1994
            %v1996 = vpop.f32.mrb[0].mxu0
            %1997 = vmatprep.mubr.f32.mxu0 0.0
            %1998 = vmatmul.mubr.f32.gmra.mrb[0].mxu0 %v1818
            %v1999 = vpop.f32.mrb[0].mxu0
            %v2000 = vadd.f32 0.0, %v1999
            %v2001 = vpop.f32.mrb[0].mxu0
            %2002 = vmatprep.mubr.f32.mxu0 0.0
            %2003 = vmatmul.mubr.f32.gmra.mrb[0].mxu0 %v1821
            %v2004 = vpop.f32.mrb[0].mxu0
            %v2005 = vadd.f32 0.0, %v2004
            %v2006 = vpop.f32.mrb[0].mxu0
            %2007 = vmatprep.mubr.f32.mxu0 0.0
            %2008 = vmatmul.mubr.f32.gmra.mrb[0].mxu0 %v1824
            %v2009 = vpop.f32.mrb[0].mxu0
            %v2010 = vadd.f32 0.0, %v2009
            %v2011 = vpop.f32.mrb[0].mxu0
            %2012 = vmatprep.mubr.f32.mxu0 0.0
            %2013 = vmatmul.mubr.f32.gmra.mrb[0].mxu0 %v1827
            %v2014 = vpop.f32.mrb[0].mxu0
            %v2015 = vadd.f32 0.0, %v2014
            %v2016 = vpop.f32.mrb[0].mxu0
            %2017 = vmatprep.mubr.f32.mxu0 0.0
            %2018 = vmatmul.mubr.f32.gmra.mrb[0].mxu0 %v1830
            %v2019 = vpop.f32.mrb[0].mxu0
            %v2020 = vadd.f32 0.0, %v2019
            %v2021 = vpop.f32.mrb[0].mxu0
            %2022 = vmatprep.mubr.f32.mxu0 0.0
            %2023 = vmatmul.mubr.f32.gmra.mrb[0].mxu0 %v1833
            %v2024 = vpop.f32.mrb[0].mxu0
            %v2025 = vadd.f32 0.0, %v2024
            %v2026 = vpop.f32.mrb[0].mxu0
            %2027 = vmatprep.mubr.f32.mxu0 0.0
            %2028 = vmatmul.mubr.f32.gmra.mrb[0].mxu0 %v1836
            %v2029 = vpop.f32.mrb[0].mxu0
            %v2030 = vadd.f32 0.0, %v2029
            %v2031 = vpop.f32.mrb[0].mxu0
            %2032 = vmatprep.mubr.f32.mxu0 0.0
            %2033 = vmatmul.mubr.f32.gmra.mrb[0].mxu0 %v1839
            %v2034 = vpop.f32.mrb[0].mxu0
            %v2035 = vadd.f32 0.0, %v2034
            %v2036 = vpop.f32.mrb[0].mxu0
            %2037 = vmatprep.mubr.f32.mxu0 0.0
            %2038 = vmatmul.mubr.f32.gmra.mrb[0].mxu0 %v1842
            %v2039 = vpop.f32.mrb[0].mxu0
            %v2040 = vadd.f32 0.0, %v2039
            %v2041 = vpop.f32.mrb[0].mxu0
            %2042 = vmatprep.mubr.f32.mxu0 0.0
            %2043 = vmatmul.mubr.f32.gmra.mrb[0].mxu0 %v1845
            %v2044 = vpop.f32.mrb[0].mxu0
            %v2045 = vadd.f32 0.0, %v2044
            %v2046 = vpop.f32.mrb[0].mxu0
            %2047 = vmatprep.mubr.f32.mxu0 0.0
            %2048 = vmatmul.mubr.f32.gmra.mrb[0].mxu0 %v1848
            %v2049 = vpop.f32.mrb[0].mxu0
            %v2050 = vadd.f32 0.0, %v2049
            %v2051 = vpop.f32.mrb[0].mxu0
            %2052 = vmatprep.mubr.f32.mxu0 0.0
            %2053 = vmatmul.mubr.f32.gmra.mrb[0].mxu0 %v1851
            %v2054 = vpop.f32.mrb[0].mxu0
            %v2055 = vadd.f32 0.0, %v2054
            %v2056 = vpop.f32.mrb[0].mxu0
            %2057 = vmatprep.mubr.f32.mxu0 0.0
            %2058 = vmatmul.mubr.f32.gmra.mrb[0].mxu0 %v1854
            %v2059 = vpop.f32.mrb[0].mxu0
            %v2060 = vadd.f32 0.0, %v2059
            %v2061 = vpop.f32.mrb[0].mxu0
            %2062 = vmatprep.mubr.f32.mxu0 0.0
            %2063 = vmatmul.mubr.f32.gmra.mrb[0].mxu0 %v1857
            %v2064 = vpop.f32.mrb[0].mxu0
            %v2065 = vadd.f32 0.0, %v2064
            %v2066 = vpop.f32.mrb[0].mxu0
            %2067 = vmatprep.mubr.f32.mxu0 0.0
            %2068 = vmatmul.mubr.f32.gmra.mrb[0].mxu0 %v1860
            %v2069 = vpop.f32.mrb[0].mxu0
            %v2070 = vadd.f32 0.0, %v2069
            %v2071 = vpop.f32.mrb[0].mxu0
            %2072 = vmatprep.mubr.f32.mxu0 0.0
            %2073 = vmatmul.mubr.f32.gmra.mrb[0].mxu0 %v1863
            %v2074 = vpop.f32.mrb[0].mxu0
            %v2075 = vadd.f32 0.0, %v2074
            %v2076 = vpop.f32.mrb[0].mxu0
            %2077 = vmatprep.mubr.f32.mxu0 0.0
            %2078 = vmatmul.mubr.f32.gmra.mrb[0].mxu0 %v1866
            %v2079 = vpop.f32.mrb[0].mxu0
            %v2080 = vadd.f32 0.0, %v2079
            %v2081 = vpop.f32.mrb[0].mxu0
            %2082 = vmatprep.mubr.f32.mxu0 0.0
            %2083 = vmatmul.mubr.f32.gmra.mrb[0].mxu0 %v1869
            %v2084 = vpop.f32.mrb[0].mxu0
            %v2085 = vadd.f32 0.0, %v2084
            %v2086 = vpop.f32.mrb[0].mxu0
            %2087 = vmatprep.mubr.f32.mxu0 0.0
            %2088 = vmatmul.mubr.f32.gmra.mrb[0].mxu0 %v1872
            %v2089 = vpop.f32.mrb[0].mxu0
            %v2090 = vadd.f32 0.0, %v2089
            %v2091 = vpop.f32.mrb[0].mxu0
            %2092 = vmatprep.mubr.f32.mxu0 0.0
            %2093 = vmatmul.mubr.f32.gmra.mrb[0].mxu0 %v1875
            %v2094 = vpop.f32.mrb[0].mxu0
            %v2095 = vadd.f32 0.0, %v2094
            %v2096 = vpop.f32.mrb[0].mxu0
            %2097 = vmatprep.mubr.f32.mxu0 0.0
            %2098 = vmatmul.mubr.f32.gmra.mrb[0].mxu0 %v1878
            %v2099 = vpop.f32.mrb[0].mxu0
            %v2100 = vadd.f32 0.0, %v2099
            %v2101 = vpop.f32.mrb[0].mxu0
            %2102 = vmatprep.mubr.f32.mxu0 0.0
            %2103 = vmatmul.mubr.f32.gmra.mrb[0].mxu0 %v1881
            %v2104 = vpop.f32.mrb[0].mxu0
            %v2105 = vadd.f32 0.0, %v2104
            %v2106 = vpop.f32.mrb[0].mxu0
            %2107 = vdwg.mxu0
            %v2108 = vpack.c.bf16 %v1955, %v1950
            %v2109 = vpack.c.bf16 %v1965, %v1960
            %v2110 = vpack.c.bf16 %v1975, %v1970
            %v2111 = vpack.c.bf16 %v1985, %v1980
            %v2112 = vpack.c.bf16 %v1995, %v1990
            %v2113 = vpack.c.bf16 %v2005, %v2000
            %v2114 = vpack.c.bf16 %v2015, %v2010
            %v2115 = vpack.c.bf16 %v2025, %v2020
            %v2116 = vpack.c.bf16 %v2035, %v2030
            %v2117 = vpack.c.bf16 %v2045, %v2040
            %v2118 = vpack.c.bf16 %v2055, %v2050
            %v2119 = vpack.c.bf16 %v2065, %v2060
            %v2120 = vpack.c.bf16 %v2075, %v2070
            %v2121 = vpack.c.bf16 %v2085, %v2080
            %v2122 = vpack.c.bf16 %v2095, %v2090
            %v2123 = vpack.c.bf16 %v2105, %v2100
            %vm2124 = vcmask 261120
            %2125 = vst.msk [vmem:[#allocation8] sm:$0xff] %vm2124, %v2108
            %2126 = vst.msk [vmem:[#allocation8 + $0x8] sm:$0xff] %vm2124, %v2109
            %2127 = vst.msk [vmem:[#allocation8 + $0x10] sm:$0xff] %vm2124, %v2110
            %2128 = vst.msk [vmem:[#allocation8 + $0x18] sm:$0xff] %vm2124, %v2111
            %2129 = vst.msk [vmem:[#allocation8 + $0x20] sm:$0xff] %vm2124, %v2112
            %2130 = vst.msk [vmem:[#allocation8 + $0x28] sm:$0xff] %vm2124, %v2113
            %2131 = vst.msk [vmem:[#allocation8 + $0x30] sm:$0xff] %vm2124, %v2114
            %2132 = vst.msk [vmem:[#allocation8 + $0x38] sm:$0xff] %vm2124, %v2115
            %2133 = vst.msk [vmem:[#allocation8 + $0x40] sm:$0xff] %vm2124, %v2116
            %2134 = vst.msk [vmem:[#allocation8 + $0x48] sm:$0xff] %vm2124, %v2117
            %2135 = vst.msk [vmem:[#allocation8 + $0x50] sm:$0xff] %vm2124, %v2118
            %2136 = vst.msk [vmem:[#allocation8 + $0x58] sm:$0xff] %vm2124, %v2119
            %2137 = vst.msk [vmem:[#allocation8 + $0x60] sm:$0xff] %vm2124, %v2120
            %2138 = vst.msk [vmem:[#allocation8 + $0x68] sm:$0xff] %vm2124, %v2121
            %2139 = vst.msk [vmem:[#allocation8 + $0x70] sm:$0xff] %vm2124, %v2122
            %2140 = vst.msk [vmem:[#allocation8 + $0x78] sm:$0xff] %vm2124, %v2123
          $region108: #{graph_encoder_forward.1} parent=95 // pred_fallthru
            _
          %p2141 = scmp.eq.s32.totalorder %s34, 3
          // Predicated region
          $region109: #{graph_encoder_forward.1} parent=95 // pred_check
            %p2142 = pneg %p2141
          $region110: #{graph_encoder_forward.1} parent=95 // pred_check_branch
            %2144 = sbr.rel (%p2142) target = $region112
          $region111: #{graph_encoder_forward.1} parent=95 // pred_region
            %v2145 = vld [vmem:[#allocation4] sm:$0xff]
            %v2146 = vld [vmem:[#allocation4 + $0x8] sm:$0xff]
            %v2147 = vld [vmem:[#allocation4 + $0x10] sm:$0xff]
            %v2148 = vld [vmem:[#allocation4 + $0x18] sm:$0xff]
            %v2149 = vld [vmem:[#allocation4 + $0x20] sm:$0xff]
            %v2150 = vld [vmem:[#allocation4 + $0x28] sm:$0xff]
            %v2151 = vld [vmem:[#allocation4 + $0x30] sm:$0xff]
            %v2152 = vld [vmem:[#allocation4 + $0x38] sm:$0xff]
            %v2153 = vld [vmem:[#allocation4 + $0x40] sm:$0xff]
            %v2154 = vld [vmem:[#allocation4 + $0x48] sm:$0xff]
            %v2155 = vld [vmem:[#allocation4 + $0x50] sm:$0xff]
            %v2156 = vld [vmem:[#allocation4 + $0x58] sm:$0xff]
            %v2157 = vld [vmem:[#allocation4 + $0x60] sm:$0xff]
            %v2158 = vld [vmem:[#allocation4 + $0x68] sm:$0xff]
            %v2159 = vld [vmem:[#allocation4 + $0x70] sm:$0xff]
            %v2160 = vld [vmem:[#allocation4 + $0x78] sm:$0xff]
            %v2161 = vld [vmem:[#allocation4 + $0x80] sm:$0xff]
            %v2162 = vld [vmem:[#allocation4 + $0x88] sm:$0xff]
            %v2163 = vld [vmem:[#allocation4 + $0x90] sm:$0xff]
            %v2164 = vld [vmem:[#allocation4 + $0x98] sm:$0xff]
            %v2165 = vld [vmem:[#allocation4 + $0xa0] sm:$0xff]
            %v2166 = vld [vmem:[#allocation4 + $0xa8] sm:$0xff]
            %v2167 = vld [vmem:[#allocation4 + $0xb0] sm:$0xff]
            %v2168 = vld [vmem:[#allocation4 + $0xb8] sm:$0xff]
            %v2169 = vld [vmem:[#allocation4 + $0xc0] sm:$0xff]
            %v2170 = vld [vmem:[#allocation4 + $0xc8] sm:$0xff]
            %v2171 = vld [vmem:[#allocation4 + $0xd0] sm:$0xff]
            %v2172 = vld [vmem:[#allocation4 + $0xd8] sm:$0xff]
            %v2173 = vld [vmem:[#allocation4 + $0xe0] sm:$0xff]
            %v2174 = vld [vmem:[#allocation4 + $0xe8] sm:$0xff]
            %v2175 = vld [vmem:[#allocation4 + $0xf0] sm:$0xff]
            %v2176 = vld [vmem:[#allocation4 + $0xf8] sm:$0xff]
            %v2177 = vmax.f32 %v2145, 0.0
            %v2178 = vmax.f32 %v2146, 0.0
            %v2179 = vmax.f32 %v2147, 0.0
            %v2180 = vmax.f32 %v2148, 0.0
            %v2181 = vmax.f32 %v2149, 0.0
            %v2182 = vmax.f32 %v2150, 0.0
            %v2183 = vmax.f32 %v2151, 0.0
            %v2184 = vmax.f32 %v2152, 0.0
            %v2185 = vmax.f32 %v2153, 0.0
            %v2186 = vmax.f32 %v2154, 0.0
            %v2187 = vmax.f32 %v2155, 0.0
            %v2188 = vmax.f32 %v2156, 0.0
            %v2189 = vmax.f32 %v2157, 0.0
            %v2190 = vmax.f32 %v2158, 0.0
            %v2191 = vmax.f32 %v2159, 0.0
            %v2192 = vmax.f32 %v2160, 0.0
            %v2193 = vmax.f32 %v2161, 0.0
            %v2194 = vmax.f32 %v2162, 0.0
            %v2195 = vmax.f32 %v2163, 0.0
            %v2196 = vmax.f32 %v2164, 0.0
            %v2197 = vmax.f32 %v2165, 0.0
            %v2198 = vmax.f32 %v2166, 0.0
            %v2199 = vmax.f32 %v2167, 0.0
            %v2200 = vmax.f32 %v2168, 0.0
            %v2201 = vmax.f32 %v2169, 0.0
            %v2202 = vmax.f32 %v2170, 0.0
            %v2203 = vmax.f32 %v2171, 0.0
            %v2204 = vmax.f32 %v2172, 0.0
            %v2205 = vmax.f32 %v2173, 0.0
            %v2206 = vmax.f32 %v2174, 0.0
            %v2207 = vmax.f32 %v2175, 0.0
            %v2208 = vmax.f32 %v2176, 0.0
            %v2209 = vld [vmem:[%s9] sm:$0xff]
            %v2210 = vld [vmem:[%s9 + $0x8] sm:$0xff]
            %v2211 = vld [vmem:[%s9 + $0x10] sm:$0xff]
            %v2212 = vld [vmem:[%s9 + $0x18] sm:$0xff]
            %vm2213 = vcmask 261120
            %v2215 = vsel %vm2213, %v2177, 0
            %v2218 = vsel %vm2213, %v2178, 0
            %v2221 = vsel %vm2213, %v2179, 0
            %v2224 = vsel %vm2213, %v2180, 0
            %v2227 = vsel %vm2213, %v2181, 0
            %v2230 = vsel %vm2213, %v2182, 0
            %v2233 = vsel %vm2213, %v2183, 0
            %v2236 = vsel %vm2213, %v2184, 0
            %v2239 = vsel %vm2213, %v2185, 0
            %v2242 = vsel %vm2213, %v2186, 0
            %v2245 = vsel %vm2213, %v2187, 0
            %v2248 = vsel %vm2213, %v2188, 0
            %v2251 = vsel %vm2213, %v2189, 0
            %v2254 = vsel %vm2213, %v2190, 0
            %v2257 = vsel %vm2213, %v2191, 0
            %v2260 = vsel %vm2213, %v2192, 0
            %v2263 = vsel %vm2213, %v2193, 0
            %v2266 = vsel %vm2213, %v2194, 0
            %v2269 = vsel %vm2213, %v2195, 0
            %v2272 = vsel %vm2213, %v2196, 0
            %v2275 = vsel %vm2213, %v2197, 0
            %v2278 = vsel %vm2213, %v2198, 0
            %v2281 = vsel %vm2213, %v2199, 0
            %v2284 = vsel %vm2213, %v2200, 0
            %v2287 = vsel %vm2213, %v2201, 0
            %v2290 = vsel %vm2213, %v2202, 0
            %v2293 = vsel %vm2213, %v2203, 0
            %v2296 = vsel %vm2213, %v2204, 0
            %v2299 = vsel %vm2213, %v2205, 0
            %v2302 = vsel %vm2213, %v2206, 0
            %v2305 = vsel %vm2213, %v2207, 0
            %v2308 = vsel %vm2213, %v2208, 0
            %2310 = vmatprep.subr.mxu0 0.0
            %2311 = vmatpush1.msra.mxu0 %v2209
            %2312 = vmatprep.subr.mxu0 0.0
            %2313 = vmatpush1.msra.mxu0 %v2210
            %2314 = vmatprep.subr.mxu0 0.0
            %2315 = vmatpush1.msra.mxu0 %v2211
            %2316 = vmatprep.subr.mxu0 0.0
            %2317 = vmatpush1.msra.mxu0 %v2212
            %2318 = vmatprep.subr.mxu0 0.0
            %2319 = vmatpush1.msra.mxu0 0.0
            %2320 = vmatprep.subr.mxu0 0.0
            %2321 = vmatpush1.msra.mxu0 0.0
            %2322 = vmatprep.subr.mxu0 0.0
            %2323 = vmatpush1.msra.mxu0 0.0
            %2324 = vmatprep.subr.mxu0 0.0
            %2325 = vmatpush1.msra.mxu0 0.0
            %2326 = vmatprep.subr.mxu0 0.0
            %2327 = vmatpush1.msra.mxu0 0.0
            %2328 = vmatprep.subr.mxu0 0.0
            %2329 = vmatpush1.msra.mxu0 0.0
            %2330 = vmatprep.subr.mxu0 0.0
            %2331 = vmatpush1.msra.mxu0 0.0
            %2332 = vmatprep.subr.mxu0 0.0
            %2333 = vmatpush1.msra.mxu0 0.0
            %2334 = vmatprep.subr.mxu0 0.0
            %2335 = vmatpush1.msra.mxu0 0.0
            %2336 = vmatprep.subr.mxu0 0.0
            %2337 = vmatpush1.msra.mxu0 0.0
            %2338 = vmatprep.subr.mxu0 0.0
            %2339 = vmatpush1.msra.mxu0 0.0
            %2340 = vmatprep.subr.mxu0 0.0
            %2341 = vmatpush1.msra.mxu0 0.0
            %2342 = vmatprep.subr.mxu0 0.0
            %2343 = vmatpush1.msra.mxu0 0.0
            %2344 = vmatprep.subr.mxu0 0.0
            %2345 = vmatpush1.msra.mxu0 0.0
            %2346 = vmatprep.subr.mxu0 0.0
            %2347 = vmatpush1.msra.mxu0 0.0
            %2348 = vmatprep.subr.mxu0 0.0
            %2349 = vmatpush1.msra.mxu0 0.0
            %2350 = vmatprep.subr.mxu0 0.0
            %2351 = vmatpush1.msra.mxu0 0.0
            %2352 = vmatprep.subr.mxu0 0.0
            %2353 = vmatpush1.msra.mxu0 0.0
            %2354 = vmatprep.subr.mxu0 0.0
            %2355 = vmatpush1.msra.mxu0 0.0
            %2356 = vmatprep.subr.mxu0 0.0
            %2357 = vmatpush1.msra.mxu0 0.0
            %2358 = vmatprep.subr.mxu0 0.0
            %2359 = vmatpush1.msra.mxu0 0.0
            %2360 = vmatprep.subr.mxu0 0.0
            %2361 = vmatpush1.msra.mxu0 0.0
            %2362 = vmatprep.subr.mxu0 0.0
            %2363 = vmatpush1.msra.mxu0 0.0
            %2364 = vmatprep.subr.mxu0 0.0
            %2365 = vmatpush1.msra.mxu0 0.0
            %2366 = vmatprep.subr.mxu0 0.0
            %2367 = vmatpush1.msra.mxu0 0.0
            %2368 = vmatprep.subr.mxu0 0.0
            %2369 = vmatpush1.msra.mxu0 0.0
            %2370 = vmatprep.subr.mxu0 0.0
            %2371 = vmatpush1.msra.mxu0 0.0
            %2372 = vmatprep.subr.mxu0 0.0
            %2373 = vmatpush1.msra.mxu0 0.0
            %2374 = vmatprep.mubr.f32.mxu0 0.0
            %2375 = vmatmul.mubr.f32.gmra.mrb[0].mxu0 %v2215
            %v2376 = vpop.f32.mrb[0].mxu0
            %v2377 = vadd.f32 0.0, %v2376
            %v2378 = vpop.f32.mrb[0].mxu0
            %2379 = vmatprep.mubr.f32.mxu0 0.0
            %2380 = vmatmul.mubr.f32.gmra.mrb[0].mxu0 %v2218
            %v2381 = vpop.f32.mrb[0].mxu0
            %v2382 = vadd.f32 0.0, %v2381
            %v2383 = vpop.f32.mrb[0].mxu0
            %2384 = vmatprep.mubr.f32.mxu0 0.0
            %2385 = vmatmul.mubr.f32.gmra.mrb[0].mxu0 %v2221
            %v2386 = vpop.f32.mrb[0].mxu0
            %v2387 = vadd.f32 0.0, %v2386
            %v2388 = vpop.f32.mrb[0].mxu0
            %2389 = vmatprep.mubr.f32.mxu0 0.0
            %2390 = vmatmul.mubr.f32.gmra.mrb[0].mxu0 %v2224
            %v2391 = vpop.f32.mrb[0].mxu0
            %v2392 = vadd.f32 0.0, %v2391
            %v2393 = vpop.f32.mrb[0].mxu0
            %2394 = vmatprep.mubr.f32.mxu0 0.0
            %2395 = vmatmul.mubr.f32.gmra.mrb[0].mxu0 %v2227
            %v2396 = vpop.f32.mrb[0].mxu0
            %v2397 = vadd.f32 0.0, %v2396
            %v2398 = vpop.f32.mrb[0].mxu0
            %2399 = vmatprep.mubr.f32.mxu0 0.0
            %2400 = vmatmul.mubr.f32.gmra.mrb[0].mxu0 %v2230
            %v2401 = vpop.f32.mrb[0].mxu0
            %v2402 = vadd.f32 0.0, %v2401
            %v2403 = vpop.f32.mrb[0].mxu0
            %2404 = vmatprep.mubr.f32.mxu0 0.0
            %2405 = vmatmul.mubr.f32.gmra.mrb[0].mxu0 %v2233
            %v2406 = vpop.f32.mrb[0].mxu0
            %v2407 = vadd.f32 0.0, %v2406
            %v2408 = vpop.f32.mrb[0].mxu0
            %2409 = vmatprep.mubr.f32.mxu0 0.0
            %2410 = vmatmul.mubr.f32.gmra.mrb[0].mxu0 %v2236
            %v2411 = vpop.f32.mrb[0].mxu0
            %v2412 = vadd.f32 0.0, %v2411
            %v2413 = vpop.f32.mrb[0].mxu0
            %2414 = vmatprep.mubr.f32.mxu0 0.0
            %2415 = vmatmul.mubr.f32.gmra.mrb[0].mxu0 %v2239
            %v2416 = vpop.f32.mrb[0].mxu0
            %v2417 = vadd.f32 0.0, %v2416
            %v2418 = vpop.f32.mrb[0].mxu0
            %2419 = vmatprep.mubr.f32.mxu0 0.0
            %2420 = vmatmul.mubr.f32.gmra.mrb[0].mxu0 %v2242
            %v2421 = vpop.f32.mrb[0].mxu0
            %v2422 = vadd.f32 0.0, %v2421
            %v2423 = vpop.f32.mrb[0].mxu0
            %2424 = vmatprep.mubr.f32.mxu0 0.0
            %2425 = vmatmul.mubr.f32.gmra.mrb[0].mxu0 %v2245
            %v2426 = vpop.f32.mrb[0].mxu0
            %v2427 = vadd.f32 0.0, %v2426
            %v2428 = vpop.f32.mrb[0].mxu0
            %2429 = vmatprep.mubr.f32.mxu0 0.0
            %2430 = vmatmul.mubr.f32.gmra.mrb[0].mxu0 %v2248
            %v2431 = vpop.f32.mrb[0].mxu0
            %v2432 = vadd.f32 0.0, %v2431
            %v2433 = vpop.f32.mrb[0].mxu0
            %2434 = vmatprep.mubr.f32.mxu0 0.0
            %2435 = vmatmul.mubr.f32.gmra.mrb[0].mxu0 %v2251
            %v2436 = vpop.f32.mrb[0].mxu0
            %v2437 = vadd.f32 0.0, %v2436
            %v2438 = vpop.f32.mrb[0].mxu0
            %2439 = vmatprep.mubr.f32.mxu0 0.0
            %2440 = vmatmul.mubr.f32.gmra.mrb[0].mxu0 %v2254
            %v2441 = vpop.f32.mrb[0].mxu0
            %v2442 = vadd.f32 0.0, %v2441
            %v2443 = vpop.f32.mrb[0].mxu0
            %2444 = vmatprep.mubr.f32.mxu0 0.0
            %2445 = vmatmul.mubr.f32.gmra.mrb[0].mxu0 %v2257
            %v2446 = vpop.f32.mrb[0].mxu0
            %v2447 = vadd.f32 0.0, %v2446
            %v2448 = vpop.f32.mrb[0].mxu0
            %2449 = vmatprep.mubr.f32.mxu0 0.0
            %2450 = vmatmul.mubr.f32.gmra.mrb[0].mxu0 %v2260
            %v2451 = vpop.f32.mrb[0].mxu0
            %v2452 = vadd.f32 0.0, %v2451
            %v2453 = vpop.f32.mrb[0].mxu0
            %2454 = vmatprep.mubr.f32.mxu0 0.0
            %2455 = vmatmul.mubr.f32.gmra.mrb[0].mxu0 %v2263
            %v2456 = vpop.f32.mrb[0].mxu0
            %v2457 = vadd.f32 0.0, %v2456
            %v2458 = vpop.f32.mrb[0].mxu0
            %2459 = vmatprep.mubr.f32.mxu0 0.0
            %2460 = vmatmul.mubr.f32.gmra.mrb[0].mxu0 %v2266
            %v2461 = vpop.f32.mrb[0].mxu0
            %v2462 = vadd.f32 0.0, %v2461
            %v2463 = vpop.f32.mrb[0].mxu0
            %2464 = vmatprep.mubr.f32.mxu0 0.0
            %2465 = vmatmul.mubr.f32.gmra.mrb[0].mxu0 %v2269
            %v2466 = vpop.f32.mrb[0].mxu0
            %v2467 = vadd.f32 0.0, %v2466
            %v2468 = vpop.f32.mrb[0].mxu0
            %2469 = vmatprep.mubr.f32.mxu0 0.0
            %2470 = vmatmul.mubr.f32.gmra.mrb[0].mxu0 %v2272
            %v2471 = vpop.f32.mrb[0].mxu0
            %v2472 = vadd.f32 0.0, %v2471
            %v2473 = vpop.f32.mrb[0].mxu0
            %2474 = vmatprep.mubr.f32.mxu0 0.0
            %2475 = vmatmul.mubr.f32.gmra.mrb[0].mxu0 %v2275
            %v2476 = vpop.f32.mrb[0].mxu0
            %v2477 = vadd.f32 0.0, %v2476
            %v2478 = vpop.f32.mrb[0].mxu0
            %2479 = vmatprep.mubr.f32.mxu0 0.0
            %2480 = vmatmul.mubr.f32.gmra.mrb[0].mxu0 %v2278
            %v2481 = vpop.f32.mrb[0].mxu0
            %v2482 = vadd.f32 0.0, %v2481
            %v2483 = vpop.f32.mrb[0].mxu0
            %2484 = vmatprep.mubr.f32.mxu0 0.0
            %2485 = vmatmul.mubr.f32.gmra.mrb[0].mxu0 %v2281
            %v2486 = vpop.f32.mrb[0].mxu0
            %v2487 = vadd.f32 0.0, %v2486
            %v2488 = vpop.f32.mrb[0].mxu0
            %2489 = vmatprep.mubr.f32.mxu0 0.0
            %2490 = vmatmul.mubr.f32.gmra.mrb[0].mxu0 %v2284
            %v2491 = vpop.f32.mrb[0].mxu0
            %v2492 = vadd.f32 0.0, %v2491
            %v2493 = vpop.f32.mrb[0].mxu0
            %2494 = vmatprep.mubr.f32.mxu0 0.0
            %2495 = vmatmul.mubr.f32.gmra.mrb[0].mxu0 %v2287
            %v2496 = vpop.f32.mrb[0].mxu0
            %v2497 = vadd.f32 0.0, %v2496
            %v2498 = vpop.f32.mrb[0].mxu0
            %2499 = vmatprep.mubr.f32.mxu0 0.0
            %2500 = vmatmul.mubr.f32.gmra.mrb[0].mxu0 %v2290
            %v2501 = vpop.f32.mrb[0].mxu0
            %v2502 = vadd.f32 0.0, %v2501
            %v2503 = vpop.f32.mrb[0].mxu0
            %2504 = vmatprep.mubr.f32.mxu0 0.0
            %2505 = vmatmul.mubr.f32.gmra.mrb[0].mxu0 %v2293
            %v2506 = vpop.f32.mrb[0].mxu0
            %v2507 = vadd.f32 0.0, %v2506
            %v2508 = vpop.f32.mrb[0].mxu0
            %2509 = vmatprep.mubr.f32.mxu0 0.0
            %2510 = vmatmul.mubr.f32.gmra.mrb[0].mxu0 %v2296
            %v2511 = vpop.f32.mrb[0].mxu0
            %v2512 = vadd.f32 0.0, %v2511
            %v2513 = vpop.f32.mrb[0].mxu0
            %2514 = vmatprep.mubr.f32.mxu0 0.0
            %2515 = vmatmul.mubr.f32.gmra.mrb[0].mxu0 %v2299
            %v2516 = vpop.f32.mrb[0].mxu0
            %v2517 = vadd.f32 0.0, %v2516
            %v2518 = vpop.f32.mrb[0].mxu0
            %2519 = vmatprep.mubr.f32.mxu0 0.0
            %2520 = vmatmul.mubr.f32.gmra.mrb[0].mxu0 %v2302
            %v2521 = vpop.f32.mrb[0].mxu0
            %v2522 = vadd.f32 0.0, %v2521
            %v2523 = vpop.f32.mrb[0].mxu0
            %2524 = vmatprep.mubr.f32.mxu0 0.0
            %2525 = vmatmul.mubr.f32.gmra.mrb[0].mxu0 %v2305
            %v2526 = vpop.f32.mrb[0].mxu0
            %v2527 = vadd.f32 0.0, %v2526
            %v2528 = vpop.f32.mrb[0].mxu0
            %2529 = vmatprep.mubr.f32.mxu0 0.0
            %2530 = vmatmul.mubr.f32.gmra.mrb[0].mxu0 %v2308
            %v2531 = vpop.f32.mrb[0].mxu0
            %v2532 = vadd.f32 0.0, %v2531
            %v2533 = vpop.f32.mrb[0].mxu0
            %2534 = vdwg.mxu0
            %v2535 = vpack.c.bf16 %v2382, %v2377
            %v2536 = vpack.c.bf16 %v2392, %v2387
            %v2537 = vpack.c.bf16 %v2402, %v2397
            %v2538 = vpack.c.bf16 %v2412, %v2407
            %v2539 = vpack.c.bf16 %v2422, %v2417
            %v2540 = vpack.c.bf16 %v2432, %v2427
            %v2541 = vpack.c.bf16 %v2442, %v2437
            %v2542 = vpack.c.bf16 %v2452, %v2447
            %v2543 = vpack.c.bf16 %v2462, %v2457
            %v2544 = vpack.c.bf16 %v2472, %v2467
            %v2545 = vpack.c.bf16 %v2482, %v2477
            %v2546 = vpack.c.bf16 %v2492, %v2487
            %v2547 = vpack.c.bf16 %v2502, %v2497
            %v2548 = vpack.c.bf16 %v2512, %v2507
            %v2549 = vpack.c.bf16 %v2522, %v2517
            %v2550 = vpack.c.bf16 %v2532, %v2527
            %vm2551 = vcmask 523264
            %2552 = vst.msk [vmem:[#allocation9] sm:$0xff] %vm2551, %v2535
            %2553 = vst.msk [vmem:[#allocation9 + $0x8] sm:$0xff] %vm2551, %v2536
            %2554 = vst.msk [vmem:[#allocation9 + $0x10] sm:$0xff] %vm2551, %v2537
            %2555 = vst.msk [vmem:[#allocation9 + $0x18] sm:$0xff] %vm2551, %v2538
            %2556 = vst.msk [vmem:[#allocation9 + $0x20] sm:$0xff] %vm2551, %v2539
            %2557 = vst.msk [vmem:[#allocation9 + $0x28] sm:$0xff] %vm2551, %v2540
            %2558 = vst.msk [vmem:[#allocation9 + $0x30] sm:$0xff] %vm2551, %v2541
            %2559 = vst.msk [vmem:[#allocation9 + $0x38] sm:$0xff] %vm2551, %v2542
            %2560 = vst.msk [vmem:[#allocation9 + $0x40] sm:$0xff] %vm2551, %v2543
            %2561 = vst.msk [vmem:[#allocation9 + $0x48] sm:$0xff] %vm2551, %v2544
            %2562 = vst.msk [vmem:[#allocation9 + $0x50] sm:$0xff] %vm2551, %v2545
            %2563 = vst.msk [vmem:[#allocation9 + $0x58] sm:$0xff] %vm2551, %v2546
            %2564 = vst.msk [vmem:[#allocation9 + $0x60] sm:$0xff] %vm2551, %v2547
            %2565 = vst.msk [vmem:[#allocation9 + $0x68] sm:$0xff] %vm2551, %v2548
            %2566 = vst.msk [vmem:[#allocation9 + $0x70] sm:$0xff] %vm2551, %v2549
            %2567 = vst.msk [vmem:[#allocation9 + $0x78] sm:$0xff] %vm2551, %v2550
          $region112: #{graph_encoder_forward.1} parent=95 // pred_fallthru
            _
        $region96: #{graph_encoder_forward.1} parent=91 // pred_fallthru
          _
        %s2568 = smul.u32 %s35, 128
        %v2569 = vld [vmem:[%s577] sm:$0xff]
        %v2570 = vld [vmem:[%s577 + $0x8] sm:$0xff]
        %v2571 = vld [vmem:[%s577 + $0x10] sm:$0xff]
        %v2572 = vld [vmem:[%s577 + $0x18] sm:$0xff]
        %v2573 = vld [vmem:[%s577 + $0x20] sm:$0xff]
        %v2574 = vld [vmem:[%s577 + $0x28] sm:$0xff]
        %v2575 = vld [vmem:[%s577 + $0x30] sm:$0xff]
        %v2576 = vld [vmem:[%s577 + $0x38] sm:$0xff]
        %v2577 = vld [vmem:[%s577 + $0x40] sm:$0xff]
        %v2578 = vld [vmem:[%s577 + $0x48] sm:$0xff]
        %v2579 = vld [vmem:[%s577 + $0x50] sm:$0xff]
        %v2580 = vld [vmem:[%s577 + $0x58] sm:$0xff]
        %v2581 = vld [vmem:[%s577 + $0x60] sm:$0xff]
        %v2582 = vld [vmem:[%s577 + $0x68] sm:$0xff]
        %v2583 = vld [vmem:[%s577 + $0x70] sm:$0xff]
        %v2584 = vld [vmem:[%s577 + $0x78] sm:$0xff]
        %p2585 = scmp.eq.s32.totalorder %s34, 0
        // Predicated region
        $region113: #{graph_encoder_forward.1} parent=91 // pred_check
          %p2586 = pneg %p2585
        $region114: #{graph_encoder_forward.1} parent=91 // pred_check_branch
          %2588 = sbr.rel (%p2586) target = $region116
        $region115: #{graph_encoder_forward.1} parent=91 // pred_region
          %v2589 = vld [vmem:[#allocation6] sm:$0xff]
          %v2590 = vld [vmem:[#allocation6 + $0x8] sm:$0xff]
          %v2591 = vld [vmem:[#allocation6 + $0x10] sm:$0xff]
          %v2592 = vld [vmem:[#allocation6 + $0x18] sm:$0xff]
          %v2593 = vld [vmem:[#allocation6 + $0x20] sm:$0xff]
          %v2594 = vld [vmem:[#allocation6 + $0x28] sm:$0xff]
          %v2595 = vld [vmem:[#allocation6 + $0x30] sm:$0xff]
          %v2596 = vld [vmem:[#allocation6 + $0x38] sm:$0xff]
          %v2597 = vld [vmem:[#allocation6 + $0x40] sm:$0xff]
          %v2598 = vld [vmem:[#allocation6 + $0x48] sm:$0xff]
          %v2599 = vld [vmem:[#allocation6 + $0x50] sm:$0xff]
          %v2600 = vld [vmem:[#allocation6 + $0x58] sm:$0xff]
          %v2601 = vld [vmem:[#allocation6 + $0x60] sm:$0xff]
          %v2602 = vld [vmem:[#allocation6 + $0x68] sm:$0xff]
          %v2603 = vld [vmem:[#allocation6 + $0x70] sm:$0xff]
          %v2604 = vld [vmem:[#allocation6 + $0x78] sm:$0xff]
          %v2605 = vld [vmem:[%s3] sm:$0x1]
          %v2607 = vlaneseq
          %v2608 = vshrl.u32 %v2607, 7
          %v2609 = vsub.s32 0, %v2608
          %v2610 = vrot.slane %v2605, %v2609
          %v2628 = vunpack.c.l.b16 %v2569
          %v2629 = vunpack.c.h.b16 %v2569
          %v2630 = vunpack.c.l.b16 %v2570
          %v2631 = vunpack.c.h.b16 %v2570
          %v2632 = vunpack.c.l.b16 %v2571
          %v2633 = vunpack.c.h.b16 %v2571
          %v2634 = vunpack.c.l.b16 %v2572
          %v2635 = vunpack.c.h.b16 %v2572
          %v2636 = vunpack.c.l.b16 %v2573
          %v2637 = vunpack.c.h.b16 %v2573
          %v2638 = vunpack.c.l.b16 %v2574
          %v2639 = vunpack.c.h.b16 %v2574
          %v2640 = vunpack.c.l.b16 %v2575
          %v2641 = vunpack.c.h.b16 %v2575
          %v2642 = vunpack.c.l.b16 %v2576
          %v2643 = vunpack.c.h.b16 %v2576
          %v2644 = vunpack.c.l.b16 %v2577
          %v2645 = vunpack.c.h.b16 %v2577
          %v2646 = vunpack.c.l.b16 %v2578
          %v2647 = vunpack.c.h.b16 %v2578
          %v2648 = vunpack.c.l.b16 %v2579
          %v2649 = vunpack.c.h.b16 %v2579
          %v2650 = vunpack.c.l.b16 %v2580
          %v2651 = vunpack.c.h.b16 %v2580
          %v2652 = vunpack.c.l.b16 %v2581
          %v2653 = vunpack.c.h.b16 %v2581
          %v2654 = vunpack.c.l.b16 %v2582
          %v2655 = vunpack.c.h.b16 %v2582
          %v2656 = vunpack.c.l.b16 %v2583
          %v2657 = vunpack.c.h.b16 %v2583
          %v2658 = vunpack.c.l.b16 %v2584
          %v2659 = vunpack.c.h.b16 %v2584
          %v2660 = vpack.c.b16 %v2630, %v2628
          %v2661 = vpack.c.b16 %v2631, %v2629
          %v2662 = vpack.c.b16 %v2634, %v2632
          %v2663 = vpack.c.b16 %v2635, %v2633
          %v2664 = vpack.c.b16 %v2638, %v2636
          %v2665 = vpack.c.b16 %v2639, %v2637
          %v2666 = vpack.c.b16 %v2642, %v2640
          %v2667 = vpack.c.b16 %v2643, %v2641
          %v2668 = vpack.c.b16 %v2646, %v2644
          %v2669 = vpack.c.b16 %v2647, %v2645
          %v2670 = vpack.c.b16 %v2650, %v2648
          %v2671 = vpack.c.b16 %v2651, %v2649
          %v2672 = vpack.c.b16 %v2654, %v2652
          %v2673 = vpack.c.b16 %v2655, %v2653
          %v2674 = vpack.c.b16 %v2658, %v2656
          %v2675 = vpack.c.b16 %v2659, %v2657
          %2692 = vmatprep.subr.bf16.mxu0 0
          %2693 = vmatpush1.bf16.msra.mxu0 %v2589
          %2694 = vmatprep.subr.bf16.mxu0 0
          %2695 = vmatpush1.bf16.msra.mxu0 %v2590
          %2696 = vmatprep.subr.bf16.mxu0 0
          %2697 = vmatpush1.bf16.msra.mxu0 %v2591
          %2698 = vmatprep.subr.bf16.mxu0 0
          %2699 = vmatpush1.bf16.msra.mxu0 %v2592
          %2700 = vmatprep.subr.bf16.mxu0 0
          %2701 = vmatpush1.bf16.msra.mxu0 %v2593
          %2702 = vmatprep.subr.bf16.mxu0 0
          %2703 = vmatpush1.bf16.msra.mxu0 %v2594
          %2704 = vmatprep.subr.bf16.mxu0 0
          %2705 = vmatpush1.bf16.msra.mxu0 %v2595
          %2706 = vmatprep.subr.bf16.mxu0 0
          %2707 = vmatpush1.bf16.msra.mxu0 %v2596
          %2708 = vmatprep.subr.bf16.mxu0 0
          %2709 = vmatpush1.bf16.msra.mxu0 %v2597
          %2710 = vmatprep.subr.bf16.mxu0 0
          %2711 = vmatpush1.bf16.msra.mxu0 %v2598
          %2712 = vmatprep.subr.bf16.mxu0 0
          %2713 = vmatpush1.bf16.msra.mxu0 %v2599
          %2714 = vmatprep.subr.bf16.mxu0 0
          %2715 = vmatpush1.bf16.msra.mxu0 %v2600
          %2716 = vmatprep.subr.bf16.mxu0 0
          %2717 = vmatpush1.bf16.msra.mxu0 %v2601
          %2718 = vmatprep.subr.bf16.mxu0 0
          %2719 = vmatpush1.bf16.msra.mxu0 %v2602
          %2720 = vmatprep.subr.bf16.mxu0 0
          %2721 = vmatpush1.bf16.msra.mxu0 %v2603
          %2722 = vmatprep.subr.bf16.mxu0 0
          %2723 = vmatpush1.bf16.msra.mxu0 %v2604
          %2724 = vmatprep.mubr.bf16.mxu0 %v2661
          %2725 = vmatmul.mubr.bf16.gmra.mrb[0].mxu0 %v2660
          %v2726 = vpop.f32.mrb[0].mxu0
          %v2727 = vadd.f32 %v2610, %v2726
          %v2728 = vpop.f32.mrb[0].mxu0
          %v2729 = vpop.f32.mrb[0].mxu0
          %v2730 = vadd.f32 %v2610, %v2729
          %v2731 = vpop.f32.mrb[0].mxu0
          %2732 = vmatprep.mubr.bf16.mxu0 %v2663
          %2733 = vmatmul.mubr.bf16.gmra.mrb[0].mxu0 %v2662
          %v2734 = vpop.f32.mrb[0].mxu0
          %v2735 = vadd.f32 %v2610, %v2734
          %v2736 = vpop.f32.mrb[0].mxu0
          %v2737 = vpop.f32.mrb[0].mxu0
          %v2738 = vadd.f32 %v2610, %v2737
          %v2739 = vpop.f32.mrb[0].mxu0
          %2740 = vmatprep.mubr.bf16.mxu0 %v2665
          %2741 = vmatmul.mubr.bf16.gmra.mrb[0].mxu0 %v2664
          %v2742 = vpop.f32.mrb[0].mxu0
          %v2743 = vadd.f32 %v2610, %v2742
          %v2744 = vpop.f32.mrb[0].mxu0
          %v2745 = vpop.f32.mrb[0].mxu0
          %v2746 = vadd.f32 %v2610, %v2745
          %v2747 = vpop.f32.mrb[0].mxu0
          %2748 = vmatprep.mubr.bf16.mxu0 %v2667
          %2749 = vmatmul.mubr.bf16.gmra.mrb[0].mxu0 %v2666
          %v2750 = vpop.f32.mrb[0].mxu0
          %v2751 = vadd.f32 %v2610, %v2750
          %v2752 = vpop.f32.mrb[0].mxu0
          %v2753 = vpop.f32.mrb[0].mxu0
          %v2754 = vadd.f32 %v2610, %v2753
          %v2755 = vpop.f32.mrb[0].mxu0
          %2756 = vmatprep.mubr.bf16.mxu0 %v2669
          %2757 = vmatmul.mubr.bf16.gmra.mrb[0].mxu0 %v2668
          %v2758 = vpop.f32.mrb[0].mxu0
          %v2759 = vadd.f32 %v2610, %v2758
          %v2760 = vpop.f32.mrb[0].mxu0
          %v2761 = vpop.f32.mrb[0].mxu0
          %v2762 = vadd.f32 %v2610, %v2761
          %v2763 = vpop.f32.mrb[0].mxu0
          %2764 = vmatprep.mubr.bf16.mxu0 %v2671
          %2765 = vmatmul.mubr.bf16.gmra.mrb[0].mxu0 %v2670
          %v2766 = vpop.f32.mrb[0].mxu0
          %v2767 = vadd.f32 %v2610, %v2766
          %v2768 = vpop.f32.mrb[0].mxu0
          %v2769 = vpop.f32.mrb[0].mxu0
          %v2770 = vadd.f32 %v2610, %v2769
          %v2771 = vpop.f32.mrb[0].mxu0
          %2772 = vmatprep.mubr.bf16.mxu0 %v2673
          %2773 = vmatmul.mubr.bf16.gmra.mrb[0].mxu0 %v2672
          %v2774 = vpop.f32.mrb[0].mxu0
          %v2775 = vadd.f32 %v2610, %v2774
          %v2776 = vpop.f32.mrb[0].mxu0
          %v2777 = vpop.f32.mrb[0].mxu0
          %v2778 = vadd.f32 %v2610, %v2777
          %v2779 = vpop.f32.mrb[0].mxu0
          %2780 = vmatprep.mubr.bf16.mxu0 %v2675
          %2781 = vmatmul.mubr.bf16.gmra.mrb[0].mxu0 %v2674
          %v2782 = vpop.f32.mrb[0].mxu0
          %v2783 = vadd.f32 %v2610, %v2782
          %v2784 = vpop.f32.mrb[0].mxu0
          %v2785 = vpop.f32.mrb[0].mxu0
          %v2786 = vadd.f32 %v2610, %v2785
          %v2787 = vpop.f32.mrb[0].mxu0
          %2788 = vdwg.mxu0
          %s2789 = scalar_lea.vmem [#allocation2], %s2568
          %vm2790 = vcmask 64512
          %2791 = vst.msk [vmem:[%s2789] sm:$0xff] %vm2790, %v2727
          %2792 = vst.msk [vmem:[%s2789 + $0x8] sm:$0xff] %vm2790, %v2730
          %2793 = vst.msk [vmem:[%s2789 + $0x10] sm:$0xff] %vm2790, %v2735
          %2794 = vst.msk [vmem:[%s2789 + $0x18] sm:$0xff] %vm2790, %v2738
          %2795 = vst.msk [vmem:[%s2789 + $0x20] sm:$0xff] %vm2790, %v2743
          %2796 = vst.msk [vmem:[%s2789 + $0x28] sm:$0xff] %vm2790, %v2746
          %2797 = vst.msk [vmem:[%s2789 + $0x30] sm:$0xff] %vm2790, %v2751
          %2798 = vst.msk [vmem:[%s2789 + $0x38] sm:$0xff] %vm2790, %v2754
          %2799 = vst.msk [vmem:[%s2789 + $0x40] sm:$0xff] %vm2790, %v2759
          %2800 = vst.msk [vmem:[%s2789 + $0x48] sm:$0xff] %vm2790, %v2762
          %2801 = vst.msk [vmem:[%s2789 + $0x50] sm:$0xff] %vm2790, %v2767
          %2802 = vst.msk [vmem:[%s2789 + $0x58] sm:$0xff] %vm2790, %v2770
          %2803 = vst.msk [vmem:[%s2789 + $0x60] sm:$0xff] %vm2790, %v2775
          %2804 = vst.msk [vmem:[%s2789 + $0x68] sm:$0xff] %vm2790, %v2778
          %2805 = vst.msk [vmem:[%s2789 + $0x70] sm:$0xff] %vm2790, %v2783
          %2806 = vst.msk [vmem:[%s2789 + $0x78] sm:$0xff] %vm2790, %v2786
        $region116: #{graph_encoder_forward.1} parent=91 // pred_fallthru
          _
        %p2807 = scmp.eq.s32.totalorder %s34, 1
        // Predicated region
        $region117: #{graph_encoder_forward.1} parent=91 // pred_check
          %p2808 = pneg %p2807
        $region118: #{graph_encoder_forward.1} parent=91 // pred_check_branch
          %2810 = sbr.rel (%p2808) target = $region120
        $region119: #{graph_encoder_forward.1} parent=91 // pred_region
          %v2811 = vld [vmem:[#allocation7] sm:$0xff]
          %v2812 = vld [vmem:[#allocation7 + $0x8] sm:$0xff]
          %v2813 = vld [vmem:[#allocation7 + $0x10] sm:$0xff]
          %v2814 = vld [vmem:[#allocation7 + $0x18] sm:$0xff]
          %v2815 = vld [vmem:[#allocation7 + $0x20] sm:$0xff]
          %v2816 = vld [vmem:[#allocation7 + $0x28] sm:$0xff]
          %v2817 = vld [vmem:[#allocation7 + $0x30] sm:$0xff]
          %v2818 = vld [vmem:[#allocation7 + $0x38] sm:$0xff]
          %v2819 = vld [vmem:[#allocation7 + $0x40] sm:$0xff]
          %v2820 = vld [vmem:[#allocation7 + $0x48] sm:$0xff]
          %v2821 = vld [vmem:[#allocation7 + $0x50] sm:$0xff]
          %v2822 = vld [vmem:[#allocation7 + $0x58] sm:$0xff]
          %v2823 = vld [vmem:[#allocation7 + $0x60] sm:$0xff]
          %v2824 = vld [vmem:[#allocation7 + $0x68] sm:$0xff]
          %v2825 = vld [vmem:[#allocation7 + $0x70] sm:$0xff]
          %v2826 = vld [vmem:[#allocation7 + $0x78] sm:$0xff]
          %v2827 = vld [vmem:[%s5] sm:$0x1]
          %v2829 = vlaneseq
          %v2830 = vshrl.u32 %v2829, 7
          %v2831 = vsub.s32 0, %v2830
          %v2832 = vrot.slane %v2827, %v2831
          %v2850 = vunpack.c.l.b16 %v2569
          %v2851 = vunpack.c.h.b16 %v2569
          %v2852 = vunpack.c.l.b16 %v2570
          %v2853 = vunpack.c.h.b16 %v2570
          %v2854 = vunpack.c.l.b16 %v2571
          %v2855 = vunpack.c.h.b16 %v2571
          %v2856 = vunpack.c.l.b16 %v2572
          %v2857 = vunpack.c.h.b16 %v2572
          %v2858 = vunpack.c.l.b16 %v2573
          %v2859 = vunpack.c.h.b16 %v2573
          %v2860 = vunpack.c.l.b16 %v2574
          %v2861 = vunpack.c.h.b16 %v2574
          %v2862 = vunpack.c.l.b16 %v2575
          %v2863 = vunpack.c.h.b16 %v2575
          %v2864 = vunpack.c.l.b16 %v2576
          %v2865 = vunpack.c.h.b16 %v2576
          %v2866 = vunpack.c.l.b16 %v2577
          %v2867 = vunpack.c.h.b16 %v2577
          %v2868 = vunpack.c.l.b16 %v2578
          %v2869 = vunpack.c.h.b16 %v2578
          %v2870 = vunpack.c.l.b16 %v2579
          %v2871 = vunpack.c.h.b16 %v2579
          %v2872 = vunpack.c.l.b16 %v2580
          %v2873 = vunpack.c.h.b16 %v2580
          %v2874 = vunpack.c.l.b16 %v2581
          %v2875 = vunpack.c.h.b16 %v2581
          %v2876 = vunpack.c.l.b16 %v2582
          %v2877 = vunpack.c.h.b16 %v2582
          %v2878 = vunpack.c.l.b16 %v2583
          %v2879 = vunpack.c.h.b16 %v2583
          %v2880 = vunpack.c.l.b16 %v2584
          %v2881 = vunpack.c.h.b16 %v2584
          %v2882 = vpack.c.b16 %v2852, %v2850
          %v2883 = vpack.c.b16 %v2853, %v2851
          %v2884 = vpack.c.b16 %v2856, %v2854
          %v2885 = vpack.c.b16 %v2857, %v2855
          %v2886 = vpack.c.b16 %v2860, %v2858
          %v2887 = vpack.c.b16 %v2861, %v2859
          %v2888 = vpack.c.b16 %v2864, %v2862
          %v2889 = vpack.c.b16 %v2865, %v2863
          %v2890 = vpack.c.b16 %v2868, %v2866
          %v2891 = vpack.c.b16 %v2869, %v2867
          %v2892 = vpack.c.b16 %v2872, %v2870
          %v2893 = vpack.c.b16 %v2873, %v2871
          %v2894 = vpack.c.b16 %v2876, %v2874
          %v2895 = vpack.c.b16 %v2877, %v2875
          %v2896 = vpack.c.b16 %v2880, %v2878
          %v2897 = vpack.c.b16 %v2881, %v2879
          %2914 = vmatprep.subr.bf16.mxu0 0
          %2915 = vmatpush1.bf16.msra.mxu0 %v2811
          %2916 = vmatprep.subr.bf16.mxu0 0
          %2917 = vmatpush1.bf16.msra.mxu0 %v2812
          %2918 = vmatprep.subr.bf16.mxu0 0
          %2919 = vmatpush1.bf16.msra.mxu0 %v2813
          %2920 = vmatprep.subr.bf16.mxu0 0
          %2921 = vmatpush1.bf16.msra.mxu0 %v2814
          %2922 = vmatprep.subr.bf16.mxu0 0
          %2923 = vmatpush1.bf16.msra.mxu0 %v2815
          %2924 = vmatprep.subr.bf16.mxu0 0
          %2925 = vmatpush1.bf16.msra.mxu0 %v2816
          %2926 = vmatprep.subr.bf16.mxu0 0
          %2927 = vmatpush1.bf16.msra.mxu0 %v2817
          %2928 = vmatprep.subr.bf16.mxu0 0
          %2929 = vmatpush1.bf16.msra.mxu0 %v2818
          %2930 = vmatprep.subr.bf16.mxu0 0
          %2931 = vmatpush1.bf16.msra.mxu0 %v2819
          %2932 = vmatprep.subr.bf16.mxu0 0
          %2933 = vmatpush1.bf16.msra.mxu0 %v2820
          %2934 = vmatprep.subr.bf16.mxu0 0
          %2935 = vmatpush1.bf16.msra.mxu0 %v2821
          %2936 = vmatprep.subr.bf16.mxu0 0
          %2937 = vmatpush1.bf16.msra.mxu0 %v2822
          %2938 = vmatprep.subr.bf16.mxu0 0
          %2939 = vmatpush1.bf16.msra.mxu0 %v2823
          %2940 = vmatprep.subr.bf16.mxu0 0
          %2941 = vmatpush1.bf16.msra.mxu0 %v2824
          %2942 = vmatprep.subr.bf16.mxu0 0
          %2943 = vmatpush1.bf16.msra.mxu0 %v2825
          %2944 = vmatprep.subr.bf16.mxu0 0
          %2945 = vmatpush1.bf16.msra.mxu0 %v2826
          %2946 = vmatprep.mubr.bf16.mxu0 %v2883
          %2947 = vmatmul.mubr.bf16.gmra.mrb[0].mxu0 %v2882
          %v2948 = vpop.f32.mrb[0].mxu0
          %v2949 = vadd.f32 %v2832, %v2948
          %v2950 = vpop.f32.mrb[0].mxu0
          %v2951 = vpop.f32.mrb[0].mxu0
          %v2952 = vadd.f32 %v2832, %v2951
          %v2953 = vpop.f32.mrb[0].mxu0
          %2954 = vmatprep.mubr.bf16.mxu0 %v2885
          %2955 = vmatmul.mubr.bf16.gmra.mrb[0].mxu0 %v2884
          %v2956 = vpop.f32.mrb[0].mxu0
          %v2957 = vadd.f32 %v2832, %v2956
          %v2958 = vpop.f32.mrb[0].mxu0
          %v2959 = vpop.f32.mrb[0].mxu0
          %v2960 = vadd.f32 %v2832, %v2959
          %v2961 = vpop.f32.mrb[0].mxu0
          %2962 = vmatprep.mubr.bf16.mxu0 %v2887
          %2963 = vmatmul.mubr.bf16.gmra.mrb[0].mxu0 %v2886
          %v2964 = vpop.f32.mrb[0].mxu0
          %v2965 = vadd.f32 %v2832, %v2964
          %v2966 = vpop.f32.mrb[0].mxu0
          %v2967 = vpop.f32.mrb[0].mxu0
          %v2968 = vadd.f32 %v2832, %v2967
          %v2969 = vpop.f32.mrb[0].mxu0
          %2970 = vmatprep.mubr.bf16.mxu0 %v2889
          %2971 = vmatmul.mubr.bf16.gmra.mrb[0].mxu0 %v2888
          %v2972 = vpop.f32.mrb[0].mxu0
          %v2973 = vadd.f32 %v2832, %v2972
          %v2974 = vpop.f32.mrb[0].mxu0
          %v2975 = vpop.f32.mrb[0].mxu0
          %v2976 = vadd.f32 %v2832, %v2975
          %v2977 = vpop.f32.mrb[0].mxu0
          %2978 = vmatprep.mubr.bf16.mxu0 %v2891
          %2979 = vmatmul.mubr.bf16.gmra.mrb[0].mxu0 %v2890
          %v2980 = vpop.f32.mrb[0].mxu0
          %v2981 = vadd.f32 %v2832, %v2980
          %v2982 = vpop.f32.mrb[0].mxu0
          %v2983 = vpop.f32.mrb[0].mxu0
          %v2984 = vadd.f32 %v2832, %v2983
          %v2985 = vpop.f32.mrb[0].mxu0
          %2986 = vmatprep.mubr.bf16.mxu0 %v2893
          %2987 = vmatmul.mubr.bf16.gmra.mrb[0].mxu0 %v2892
          %v2988 = vpop.f32.mrb[0].mxu0
          %v2989 = vadd.f32 %v2832, %v2988
          %v2990 = vpop.f32.mrb[0].mxu0
          %v2991 = vpop.f32.mrb[0].mxu0
          %v2992 = vadd.f32 %v2832, %v2991
          %v2993 = vpop.f32.mrb[0].mxu0
          %2994 = vmatprep.mubr.bf16.mxu0 %v2895
          %2995 = vmatmul.mubr.bf16.gmra.mrb[0].mxu0 %v2894
          %v2996 = vpop.f32.mrb[0].mxu0
          %v2997 = vadd.f32 %v2832, %v2996
          %v2998 = vpop.f32.mrb[0].mxu0
          %v2999 = vpop.f32.mrb[0].mxu0
          %v3000 = vadd.f32 %v2832, %v2999
          %v3001 = vpop.f32.mrb[0].mxu0
          %3002 = vmatprep.mubr.bf16.mxu0 %v2897
          %3003 = vmatmul.mubr.bf16.gmra.mrb[0].mxu0 %v2896
          %v3004 = vpop.f32.mrb[0].mxu0
          %v3005 = vadd.f32 %v2832, %v3004
          %v3006 = vpop.f32.mrb[0].mxu0
          %v3007 = vpop.f32.mrb[0].mxu0
          %v3008 = vadd.f32 %v2832, %v3007
          %v3009 = vpop.f32.mrb[0].mxu0
          %3010 = vdwg.mxu0
          %s3011 = scalar_lea.vmem [#allocation3], %s2568
          %vm3012 = vcmask 130048
          %3013 = vst.msk [vmem:[%s3011] sm:$0xff] %vm3012, %v2949
          %3014 = vst.msk [vmem:[%s3011 + $0x8] sm:$0xff] %vm3012, %v2952
          %3015 = vst.msk [vmem:[%s3011 + $0x10] sm:$0xff] %vm3012, %v2957
          %3016 = vst.msk [vmem:[%s3011 + $0x18] sm:$0xff] %vm3012, %v2960
          %3017 = vst.msk [vmem:[%s3011 + $0x20] sm:$0xff] %vm3012, %v2965
          %3018 = vst.msk [vmem:[%s3011 + $0x28] sm:$0xff] %vm3012, %v2968
          %3019 = vst.msk [vmem:[%s3011 + $0x30] sm:$0xff] %vm3012, %v2973
          %3020 = vst.msk [vmem:[%s3011 + $0x38] sm:$0xff] %vm3012, %v2976
          %3021 = vst.msk [vmem:[%s3011 + $0x40] sm:$0xff] %vm3012, %v2981
          %3022 = vst.msk [vmem:[%s3011 + $0x48] sm:$0xff] %vm3012, %v2984
          %3023 = vst.msk [vmem:[%s3011 + $0x50] sm:$0xff] %vm3012, %v2989
          %3024 = vst.msk [vmem:[%s3011 + $0x58] sm:$0xff] %vm3012, %v2992
          %3025 = vst.msk [vmem:[%s3011 + $0x60] sm:$0xff] %vm3012, %v2997
          %3026 = vst.msk [vmem:[%s3011 + $0x68] sm:$0xff] %vm3012, %v3000
          %3027 = vst.msk [vmem:[%s3011 + $0x70] sm:$0xff] %vm3012, %v3005
          %3028 = vst.msk [vmem:[%s3011 + $0x78] sm:$0xff] %vm3012, %v3008
        $region120: #{graph_encoder_forward.1} parent=91 // pred_fallthru
          _
        %p3029 = scmp.eq.s32.totalorder %s34, 2
        // Predicated region
        $region121: #{graph_encoder_forward.1} parent=91 // pred_check
          %p3030 = pneg %p3029
        $region122: #{graph_encoder_forward.1} parent=91 // pred_check_branch
          %3032 = sbr.rel (%p3030) target = $region124
        $region123: #{graph_encoder_forward.1} parent=91 // pred_region
          %v3033 = vld [vmem:[#allocation8] sm:$0xff]
          %v3034 = vld [vmem:[#allocation8 + $0x8] sm:$0xff]
          %v3035 = vld [vmem:[#allocation8 + $0x10] sm:$0xff]
          %v3036 = vld [vmem:[#allocation8 + $0x18] sm:$0xff]
          %v3037 = vld [vmem:[#allocation8 + $0x20] sm:$0xff]
          %v3038 = vld [vmem:[#allocation8 + $0x28] sm:$0xff]
          %v3039 = vld [vmem:[#allocation8 + $0x30] sm:$0xff]
          %v3040 = vld [vmem:[#allocation8 + $0x38] sm:$0xff]
          %v3041 = vld [vmem:[#allocation8 + $0x40] sm:$0xff]
          %v3042 = vld [vmem:[#allocation8 + $0x48] sm:$0xff]
          %v3043 = vld [vmem:[#allocation8 + $0x50] sm:$0xff]
          %v3044 = vld [vmem:[#allocation8 + $0x58] sm:$0xff]
          %v3045 = vld [vmem:[#allocation8 + $0x60] sm:$0xff]
          %v3046 = vld [vmem:[#allocation8 + $0x68] sm:$0xff]
          %v3047 = vld [vmem:[#allocation8 + $0x70] sm:$0xff]
          %v3048 = vld [vmem:[#allocation8 + $0x78] sm:$0xff]
          %v3049 = vld [vmem:[%s8] sm:$0x1]
          %v3051 = vlaneseq
          %v3052 = vshrl.u32 %v3051, 7
          %v3053 = vsub.s32 0, %v3052
          %v3054 = vrot.slane %v3049, %v3053
          %v3072 = vunpack.c.l.b16 %v2569
          %v3073 = vunpack.c.h.b16 %v2569
          %v3074 = vunpack.c.l.b16 %v2570
          %v3075 = vunpack.c.h.b16 %v2570
          %v3076 = vunpack.c.l.b16 %v2571
          %v3077 = vunpack.c.h.b16 %v2571
          %v3078 = vunpack.c.l.b16 %v2572
          %v3079 = vunpack.c.h.b16 %v2572
          %v3080 = vunpack.c.l.b16 %v2573
          %v3081 = vunpack.c.h.b16 %v2573
          %v3082 = vunpack.c.l.b16 %v2574
          %v3083 = vunpack.c.h.b16 %v2574
          %v3084 = vunpack.c.l.b16 %v2575
          %v3085 = vunpack.c.h.b16 %v2575
          %v3086 = vunpack.c.l.b16 %v2576
          %v3087 = vunpack.c.h.b16 %v2576
          %v3088 = vunpack.c.l.b16 %v2577
          %v3089 = vunpack.c.h.b16 %v2577
          %v3090 = vunpack.c.l.b16 %v2578
          %v3091 = vunpack.c.h.b16 %v2578
          %v3092 = vunpack.c.l.b16 %v2579
          %v3093 = vunpack.c.h.b16 %v2579
          %v3094 = vunpack.c.l.b16 %v2580
          %v3095 = vunpack.c.h.b16 %v2580
          %v3096 = vunpack.c.l.b16 %v2581
          %v3097 = vunpack.c.h.b16 %v2581
          %v3098 = vunpack.c.l.b16 %v2582
          %v3099 = vunpack.c.h.b16 %v2582
          %v3100 = vunpack.c.l.b16 %v2583
          %v3101 = vunpack.c.h.b16 %v2583
          %v3102 = vunpack.c.l.b16 %v2584
          %v3103 = vunpack.c.h.b16 %v2584
          %v3104 = vpack.c.b16 %v3074, %v3072
          %v3105 = vpack.c.b16 %v3075, %v3073
          %v3106 = vpack.c.b16 %v3078, %v3076
          %v3107 = vpack.c.b16 %v3079, %v3077
          %v3108 = vpack.c.b16 %v3082, %v3080
          %v3109 = vpack.c.b16 %v3083, %v3081
          %v3110 = vpack.c.b16 %v3086, %v3084
          %v3111 = vpack.c.b16 %v3087, %v3085
          %v3112 = vpack.c.b16 %v3090, %v3088
          %v3113 = vpack.c.b16 %v3091, %v3089
          %v3114 = vpack.c.b16 %v3094, %v3092
          %v3115 = vpack.c.b16 %v3095, %v3093
          %v3116 = vpack.c.b16 %v3098, %v3096
          %v3117 = vpack.c.b16 %v3099, %v3097
          %v3118 = vpack.c.b16 %v3102, %v3100
          %v3119 = vpack.c.b16 %v3103, %v3101
          %3136 = vmatprep.subr.bf16.mxu0 0
          %3137 = vmatpush1.bf16.msra.mxu0 %v3033
          %3138 = vmatprep.subr.bf16.mxu0 0
          %3139 = vmatpush1.bf16.msra.mxu0 %v3034
          %3140 = vmatprep.subr.bf16.mxu0 0
          %3141 = vmatpush1.bf16.msra.mxu0 %v3035
          %3142 = vmatprep.subr.bf16.mxu0 0
          %3143 = vmatpush1.bf16.msra.mxu0 %v3036
          %3144 = vmatprep.subr.bf16.mxu0 0
          %3145 = vmatpush1.bf16.msra.mxu0 %v3037
          %3146 = vmatprep.subr.bf16.mxu0 0
          %3147 = vmatpush1.bf16.msra.mxu0 %v3038
          %3148 = vmatprep.subr.bf16.mxu0 0
          %3149 = vmatpush1.bf16.msra.mxu0 %v3039
          %3150 = vmatprep.subr.bf16.mxu0 0
          %3151 = vmatpush1.bf16.msra.mxu0 %v3040
          %3152 = vmatprep.subr.bf16.mxu0 0
          %3153 = vmatpush1.bf16.msra.mxu0 %v3041
          %3154 = vmatprep.subr.bf16.mxu0 0
          %3155 = vmatpush1.bf16.msra.mxu0 %v3042
          %3156 = vmatprep.subr.bf16.mxu0 0
          %3157 = vmatpush1.bf16.msra.mxu0 %v3043
          %3158 = vmatprep.subr.bf16.mxu0 0
          %3159 = vmatpush1.bf16.msra.mxu0 %v3044
          %3160 = vmatprep.subr.bf16.mxu0 0
          %3161 = vmatpush1.bf16.msra.mxu0 %v3045
          %3162 = vmatprep.subr.bf16.mxu0 0
          %3163 = vmatpush1.bf16.msra.mxu0 %v3046
          %3164 = vmatprep.subr.bf16.mxu0 0
          %3165 = vmatpush1.bf16.msra.mxu0 %v3047
          %3166 = vmatprep.subr.bf16.mxu0 0
          %3167 = vmatpush1.bf16.msra.mxu0 %v3048
          %3168 = vmatprep.mubr.bf16.mxu0 %v3105
          %3169 = vmatmul.mubr.bf16.gmra.mrb[0].mxu0 %v3104
          %v3170 = vpop.f32.mrb[0].mxu0
          %v3171 = vadd.f32 %v3054, %v3170
          %v3172 = vpop.f32.mrb[0].mxu0
          %v3173 = vpop.f32.mrb[0].mxu0
          %v3174 = vadd.f32 %v3054, %v3173
          %v3175 = vpop.f32.mrb[0].mxu0
          %3176 = vmatprep.mubr.bf16.mxu0 %v3107
          %3177 = vmatmul.mubr.bf16.gmra.mrb[0].mxu0 %v3106
          %v3178 = vpop.f32.mrb[0].mxu0
          %v3179 = vadd.f32 %v3054, %v3178
          %v3180 = vpop.f32.mrb[0].mxu0
          %v3181 = vpop.f32.mrb[0].mxu0
          %v3182 = vadd.f32 %v3054, %v3181
          %v3183 = vpop.f32.mrb[0].mxu0
          %3184 = vmatprep.mubr.bf16.mxu0 %v3109
          %3185 = vmatmul.mubr.bf16.gmra.mrb[0].mxu0 %v3108
          %v3186 = vpop.f32.mrb[0].mxu0
          %v3187 = vadd.f32 %v3054, %v3186
          %v3188 = vpop.f32.mrb[0].mxu0
          %v3189 = vpop.f32.mrb[0].mxu0
          %v3190 = vadd.f32 %v3054, %v3189
          %v3191 = vpop.f32.mrb[0].mxu0
          %3192 = vmatprep.mubr.bf16.mxu0 %v3111
          %3193 = vmatmul.mubr.bf16.gmra.mrb[0].mxu0 %v3110
          %v3194 = vpop.f32.mrb[0].mxu0
          %v3195 = vadd.f32 %v3054, %v3194
          %v3196 = vpop.f32.mrb[0].mxu0
          %v3197 = vpop.f32.mrb[0].mxu0
          %v3198 = vadd.f32 %v3054, %v3197
          %v3199 = vpop.f32.mrb[0].mxu0
          %3200 = vmatprep.mubr.bf16.mxu0 %v3113
          %3201 = vmatmul.mubr.bf16.gmra.mrb[0].mxu0 %v3112
          %v3202 = vpop.f32.mrb[0].mxu0
          %v3203 = vadd.f32 %v3054, %v3202
          %v3204 = vpop.f32.mrb[0].mxu0
          %v3205 = vpop.f32.mrb[0].mxu0
          %v3206 = vadd.f32 %v3054, %v3205
          %v3207 = vpop.f32.mrb[0].mxu0
          %3208 = vmatprep.mubr.bf16.mxu0 %v3115
          %3209 = vmatmul.mubr.bf16.gmra.mrb[0].mxu0 %v3114
          %v3210 = vpop.f32.mrb[0].mxu0
          %v3211 = vadd.f32 %v3054, %v3210
          %v3212 = vpop.f32.mrb[0].mxu0
          %v3213 = vpop.f32.mrb[0].mxu0
          %v3214 = vadd.f32 %v3054, %v3213
          %v3215 = vpop.f32.mrb[0].mxu0
          %3216 = vmatprep.mubr.bf16.mxu0 %v3117
          %3217 = vmatmul.mubr.bf16.gmra.mrb[0].mxu0 %v3116
          %v3218 = vpop.f32.mrb[0].mxu0
          %v3219 = vadd.f32 %v3054, %v3218
          %v3220 = vpop.f32.mrb[0].mxu0
          %v3221 = vpop.f32.mrb[0].mxu0
          %v3222 = vadd.f32 %v3054, %v3221
          %v3223 = vpop.f32.mrb[0].mxu0
          %3224 = vmatprep.mubr.bf16.mxu0 %v3119
          %3225 = vmatmul.mubr.bf16.gmra.mrb[0].mxu0 %v3118
          %v3226 = vpop.f32.mrb[0].mxu0
          %v3227 = vadd.f32 %v3054, %v3226
          %v3228 = vpop.f32.mrb[0].mxu0
          %v3229 = vpop.f32.mrb[0].mxu0
          %v3230 = vadd.f32 %v3054, %v3229
          %v3231 = vpop.f32.mrb[0].mxu0
          %3232 = vdwg.mxu0
          %s3233 = scalar_lea.vmem [#allocation4], %s2568
          %vm3234 = vcmask 261120
          %3235 = vst.msk [vmem:[%s3233] sm:$0xff] %vm3234, %v3171
          %3236 = vst.msk [vmem:[%s3233 + $0x8] sm:$0xff] %vm3234, %v3174
          %3237 = vst.msk [vmem:[%s3233 + $0x10] sm:$0xff] %vm3234, %v3179
          %3238 = vst.msk [vmem:[%s3233 + $0x18] sm:$0xff] %vm3234, %v3182
          %3239 = vst.msk [vmem:[%s3233 + $0x20] sm:$0xff] %vm3234, %v3187
          %3240 = vst.msk [vmem:[%s3233 + $0x28] sm:$0xff] %vm3234, %v3190
          %3241 = vst.msk [vmem:[%s3233 + $0x30] sm:$0xff] %vm3234, %v3195
          %3242 = vst.msk [vmem:[%s3233 + $0x38] sm:$0xff] %vm3234, %v3198
          %3243 = vst.msk [vmem:[%s3233 + $0x40] sm:$0xff] %vm3234, %v3203
          %3244 = vst.msk [vmem:[%s3233 + $0x48] sm:$0xff] %vm3234, %v3206
          %3245 = vst.msk [vmem:[%s3233 + $0x50] sm:$0xff] %vm3234, %v3211
          %3246 = vst.msk [vmem:[%s3233 + $0x58] sm:$0xff] %vm3234, %v3214
          %3247 = vst.msk [vmem:[%s3233 + $0x60] sm:$0xff] %vm3234, %v3219
          %3248 = vst.msk [vmem:[%s3233 + $0x68] sm:$0xff] %vm3234, %v3222
          %3249 = vst.msk [vmem:[%s3233 + $0x70] sm:$0xff] %vm3234, %v3227
          %3250 = vst.msk [vmem:[%s3233 + $0x78] sm:$0xff] %vm3234, %v3230
        $region124: #{graph_encoder_forward.1} parent=91 // pred_fallthru
          _
        %p3251 = scmp.eq.s32.totalorder %s34, 3
        // Predicated region
        $region125: #{graph_encoder_forward.1} parent=91 // pred_check
          %p3252 = pneg %p3251
        $region126: #{graph_encoder_forward.1} parent=91 // pred_check_branch
          %3254 = sbr.rel (%p3252) target = $region128
        $region127: #{graph_encoder_forward.1} parent=91 // pred_region
          %v3255 = vld [vmem:[#allocation9] sm:$0xff]
          %v3256 = vld [vmem:[#allocation9 + $0x8] sm:$0xff]
          %v3257 = vld [vmem:[#allocation9 + $0x10] sm:$0xff]
          %v3258 = vld [vmem:[#allocation9 + $0x18] sm:$0xff]
          %v3259 = vld [vmem:[#allocation9 + $0x20] sm:$0xff]
          %v3260 = vld [vmem:[#allocation9 + $0x28] sm:$0xff]
          %v3261 = vld [vmem:[#allocation9 + $0x30] sm:$0xff]
          %v3262 = vld [vmem:[#allocation9 + $0x38] sm:$0xff]
          %v3263 = vld [vmem:[#allocation9 + $0x40] sm:$0xff]
          %v3264 = vld [vmem:[#allocation9 + $0x48] sm:$0xff]
          %v3265 = vld [vmem:[#allocation9 + $0x50] sm:$0xff]
          %v3266 = vld [vmem:[#allocation9 + $0x58] sm:$0xff]
          %v3267 = vld [vmem:[#allocation9 + $0x60] sm:$0xff]
          %v3268 = vld [vmem:[#allocation9 + $0x68] sm:$0xff]
          %v3269 = vld [vmem:[#allocation9 + $0x70] sm:$0xff]
          %v3270 = vld [vmem:[#allocation9 + $0x78] sm:$0xff]
          %v3271 = vld [vmem:[%s10] sm:$0x1]
          %v3273 = vlaneseq
          %v3274 = vshrl.u32 %v3273, 7
          %v3275 = vsub.s32 0, %v3274
          %v3276 = vrot.slane %v3271, %v3275
          %v3294 = vunpack.c.l.b16 %v2569
          %v3295 = vunpack.c.h.b16 %v2569
          %v3296 = vunpack.c.l.b16 %v2570
          %v3297 = vunpack.c.h.b16 %v2570
          %v3298 = vunpack.c.l.b16 %v2571
          %v3299 = vunpack.c.h.b16 %v2571
          %v3300 = vunpack.c.l.b16 %v2572
          %v3301 = vunpack.c.h.b16 %v2572
          %v3302 = vunpack.c.l.b16 %v2573
          %v3303 = vunpack.c.h.b16 %v2573
          %v3304 = vunpack.c.l.b16 %v2574
          %v3305 = vunpack.c.h.b16 %v2574
          %v3306 = vunpack.c.l.b16 %v2575
          %v3307 = vunpack.c.h.b16 %v2575
          %v3308 = vunpack.c.l.b16 %v2576
          %v3309 = vunpack.c.h.b16 %v2576
          %v3310 = vunpack.c.l.b16 %v2577
          %v3311 = vunpack.c.h.b16 %v2577
          %v3312 = vunpack.c.l.b16 %v2578
          %v3313 = vunpack.c.h.b16 %v2578
          %v3314 = vunpack.c.l.b16 %v2579
          %v3315 = vunpack.c.h.b16 %v2579
          %v3316 = vunpack.c.l.b16 %v2580
          %v3317 = vunpack.c.h.b16 %v2580
          %v3318 = vunpack.c.l.b16 %v2581
          %v3319 = vunpack.c.h.b16 %v2581
          %v3320 = vunpack.c.l.b16 %v2582
          %v3321 = vunpack.c.h.b16 %v2582
          %v3322 = vunpack.c.l.b16 %v2583
          %v3323 = vunpack.c.h.b16 %v2583
          %v3324 = vunpack.c.l.b16 %v2584
          %v3325 = vunpack.c.h.b16 %v2584
          %v3326 = vpack.c.b16 %v3296, %v3294
          %v3327 = vpack.c.b16 %v3297, %v3295
          %v3328 = vpack.c.b16 %v3300, %v3298
          %v3329 = vpack.c.b16 %v3301, %v3299
          %v3330 = vpack.c.b16 %v3304, %v3302
          %v3331 = vpack.c.b16 %v3305, %v3303
          %v3332 = vpack.c.b16 %v3308, %v3306
          %v3333 = vpack.c.b16 %v3309, %v3307
          %v3334 = vpack.c.b16 %v3312, %v3310
          %v3335 = vpack.c.b16 %v3313, %v3311
          %v3336 = vpack.c.b16 %v3316, %v3314
          %v3337 = vpack.c.b16 %v3317, %v3315
          %v3338 = vpack.c.b16 %v3320, %v3318
          %v3339 = vpack.c.b16 %v3321, %v3319
          %v3340 = vpack.c.b16 %v3324, %v3322
          %v3341 = vpack.c.b16 %v3325, %v3323
          %3358 = vmatprep.subr.bf16.mxu0 0
          %3359 = vmatpush1.bf16.msra.mxu0 %v3255
          %3360 = vmatprep.subr.bf16.mxu0 0
          %3361 = vmatpush1.bf16.msra.mxu0 %v3256
          %3362 = vmatprep.subr.bf16.mxu0 0
          %3363 = vmatpush1.bf16.msra.mxu0 %v3257
          %3364 = vmatprep.subr.bf16.mxu0 0
          %3365 = vmatpush1.bf16.msra.mxu0 %v3258
          %3366 = vmatprep.subr.bf16.mxu0 0
          %3367 = vmatpush1.bf16.msra.mxu0 %v3259
          %3368 = vmatprep.subr.bf16.mxu0 0
          %3369 = vmatpush1.bf16.msra.mxu0 %v3260
          %3370 = vmatprep.subr.bf16.mxu0 0
          %3371 = vmatpush1.bf16.msra.mxu0 %v3261
          %3372 = vmatprep.subr.bf16.mxu0 0
          %3373 = vmatpush1.bf16.msra.mxu0 %v3262
          %3374 = vmatprep.subr.bf16.mxu0 0
          %3375 = vmatpush1.bf16.msra.mxu0 %v3263
          %3376 = vmatprep.subr.bf16.mxu0 0
          %3377 = vmatpush1.bf16.msra.mxu0 %v3264
          %3378 = vmatprep.subr.bf16.mxu0 0
          %3379 = vmatpush1.bf16.msra.mxu0 %v3265
          %3380 = vmatprep.subr.bf16.mxu0 0
          %3381 = vmatpush1.bf16.msra.mxu0 %v3266
          %3382 = vmatprep.subr.bf16.mxu0 0
          %3383 = vmatpush1.bf16.msra.mxu0 %v3267
          %3384 = vmatprep.subr.bf16.mxu0 0
          %3385 = vmatpush1.bf16.msra.mxu0 %v3268
          %3386 = vmatprep.subr.bf16.mxu0 0
          %3387 = vmatpush1.bf16.msra.mxu0 %v3269
          %3388 = vmatprep.subr.bf16.mxu0 0
          %3389 = vmatpush1.bf16.msra.mxu0 %v3270
          %3390 = vmatprep.mubr.bf16.mxu0 %v3327
          %3391 = vmatmul.mubr.bf16.gmra.mrb[0].mxu0 %v3326
          %v3392 = vpop.f32.mrb[0].mxu0
          %v3393 = vadd.f32 %v3276, %v3392
          %v3394 = vpop.f32.mrb[0].mxu0
          %v3395 = vpop.f32.mrb[0].mxu0
          %v3396 = vadd.f32 %v3276, %v3395
          %v3397 = vpop.f32.mrb[0].mxu0
          %3398 = vmatprep.mubr.bf16.mxu0 %v3329
          %3399 = vmatmul.mubr.bf16.gmra.mrb[0].mxu0 %v3328
          %v3400 = vpop.f32.mrb[0].mxu0
          %v3401 = vadd.f32 %v3276, %v3400
          %v3402 = vpop.f32.mrb[0].mxu0
          %v3403 = vpop.f32.mrb[0].mxu0
          %v3404 = vadd.f32 %v3276, %v3403
          %v3405 = vpop.f32.mrb[0].mxu0
          %3406 = vmatprep.mubr.bf16.mxu0 %v3331
          %3407 = vmatmul.mubr.bf16.gmra.mrb[0].mxu0 %v3330
          %v3408 = vpop.f32.mrb[0].mxu0
          %v3409 = vadd.f32 %v3276, %v3408
          %v3410 = vpop.f32.mrb[0].mxu0
          %v3411 = vpop.f32.mrb[0].mxu0
          %v3412 = vadd.f32 %v3276, %v3411
          %v3413 = vpop.f32.mrb[0].mxu0
          %3414 = vmatprep.mubr.bf16.mxu0 %v3333
          %3415 = vmatmul.mubr.bf16.gmra.mrb[0].mxu0 %v3332
          %v3416 = vpop.f32.mrb[0].mxu0
          %v3417 = vadd.f32 %v3276, %v3416
          %v3418 = vpop.f32.mrb[0].mxu0
          %v3419 = vpop.f32.mrb[0].mxu0
          %v3420 = vadd.f32 %v3276, %v3419
          %v3421 = vpop.f32.mrb[0].mxu0
          %3422 = vmatprep.mubr.bf16.mxu0 %v3335
          %3423 = vmatmul.mubr.bf16.gmra.mrb[0].mxu0 %v3334
          %v3424 = vpop.f32.mrb[0].mxu0
          %v3425 = vadd.f32 %v3276, %v3424
          %v3426 = vpop.f32.mrb[0].mxu0
          %v3427 = vpop.f32.mrb[0].mxu0
          %v3428 = vadd.f32 %v3276, %v3427
          %v3429 = vpop.f32.mrb[0].mxu0
          %3430 = vmatprep.mubr.bf16.mxu0 %v3337
          %3431 = vmatmul.mubr.bf16.gmra.mrb[0].mxu0 %v3336
          %v3432 = vpop.f32.mrb[0].mxu0
          %v3433 = vadd.f32 %v3276, %v3432
          %v3434 = vpop.f32.mrb[0].mxu0
          %v3435 = vpop.f32.mrb[0].mxu0
          %v3436 = vadd.f32 %v3276, %v3435
          %v3437 = vpop.f32.mrb[0].mxu0
          %3438 = vmatprep.mubr.bf16.mxu0 %v3339
          %3439 = vmatmul.mubr.bf16.gmra.mrb[0].mxu0 %v3338
          %v3440 = vpop.f32.mrb[0].mxu0
          %v3441 = vadd.f32 %v3276, %v3440
          %v3442 = vpop.f32.mrb[0].mxu0
          %v3443 = vpop.f32.mrb[0].mxu0
          %v3444 = vadd.f32 %v3276, %v3443
          %v3445 = vpop.f32.mrb[0].mxu0
          %3446 = vmatprep.mubr.bf16.mxu0 %v3341
          %3447 = vmatmul.mubr.bf16.gmra.mrb[0].mxu0 %v3340
          %v3448 = vpop.f32.mrb[0].mxu0
          %v3449 = vadd.f32 %v3276, %v3448
          %v3450 = vpop.f32.mrb[0].mxu0
          %v3451 = vpop.f32.mrb[0].mxu0
          %v3452 = vadd.f32 %v3276, %v3451
          %v3453 = vpop.f32.mrb[0].mxu0
          %3454 = vdwg.mxu0
          %s3455 = scalar_lea.vmem [#allocation5], %s2568
          %vm3456 = vcmask 523264
          %3457 = vst.msk [vmem:[%s3455] sm:$0xff] %vm3456, %v3393
          %3458 = vst.msk [vmem:[%s3455 + $0x8] sm:$0xff] %vm3456, %v3396
          %3459 = vst.msk [vmem:[%s3455 + $0x10] sm:$0xff] %vm3456, %v3401
          %3460 = vst.msk [vmem:[%s3455 + $0x18] sm:$0xff] %vm3456, %v3404
          %3461 = vst.msk [vmem:[%s3455 + $0x20] sm:$0xff] %vm3456, %v3409
          %3462 = vst.msk [vmem:[%s3455 + $0x28] sm:$0xff] %vm3456, %v3412
          %3463 = vst.msk [vmem:[%s3455 + $0x30] sm:$0xff] %vm3456, %v3417
          %3464 = vst.msk [vmem:[%s3455 + $0x38] sm:$0xff] %vm3456, %v3420
          %3465 = vst.msk [vmem:[%s3455 + $0x40] sm:$0xff] %vm3456, %v3425
          %3466 = vst.msk [vmem:[%s3455 + $0x48] sm:$0xff] %vm3456, %v3428
          %3467 = vst.msk [vmem:[%s3455 + $0x50] sm:$0xff] %vm3456, %v3433
          %3468 = vst.msk [vmem:[%s3455 + $0x58] sm:$0xff] %vm3456, %v3436
          %3469 = vst.msk [vmem:[%s3455 + $0x60] sm:$0xff] %vm3456, %v3441
          %3470 = vst.msk [vmem:[%s3455 + $0x68] sm:$0xff] %vm3456, %v3444
          %3471 = vst.msk [vmem:[%s3455 + $0x70] sm:$0xff] %vm3456, %v3449
          %3472 = vst.msk [vmem:[%s3455 + $0x78] sm:$0xff] %vm3456, %v3452
        $region128: #{graph_encoder_forward.1} parent=91 // pred_fallthru
          _
        %p3473 = scmp.eq.s32.totalorder %s35, 1
        %p3474 = pnand %p3251, %p3473
        %p3475 = pneg %p3474
        // Predicated region
        $region129: #{graph_encoder_forward.1} parent=91 // pred_check
          _
        $region130: #{graph_encoder_forward.1} parent=91 // pred_check_branch
          %3477 = sbr.rel (%p3474) target = $region132
        $region131: #{graph_encoder_forward.1} parent=91 // pred_region
          %v3478 = vld [vmem:[#allocation5] sm:$0xff]
          %v3479 = vld [vmem:[#allocation5 + $0x8] sm:$0xff]
          %v3480 = vld [vmem:[#allocation5 + $0x10] sm:$0xff]
          %v3481 = vld [vmem:[#allocation5 + $0x18] sm:$0xff]
          %v3482 = vld [vmem:[#allocation5 + $0x20] sm:$0xff]
          %v3483 = vld [vmem:[#allocation5 + $0x28] sm:$0xff]
          %v3484 = vld [vmem:[#allocation5 + $0x30] sm:$0xff]
          %v3485 = vld [vmem:[#allocation5 + $0x38] sm:$0xff]
          %v3486 = vld [vmem:[#allocation5 + $0x40] sm:$0xff]
          %v3487 = vld [vmem:[#allocation5 + $0x48] sm:$0xff]
          %v3488 = vld [vmem:[#allocation5 + $0x50] sm:$0xff]
          %v3489 = vld [vmem:[#allocation5 + $0x58] sm:$0xff]
          %v3490 = vld [vmem:[#allocation5 + $0x60] sm:$0xff]
          %v3491 = vld [vmem:[#allocation5 + $0x68] sm:$0xff]
          %v3492 = vld [vmem:[#allocation5 + $0x70] sm:$0xff]
          %v3493 = vld [vmem:[#allocation5 + $0x78] sm:$0xff]
          %v3494 = vld [vmem:[#allocation5 + $0x80] sm:$0xff]
          %v3495 = vld [vmem:[#allocation5 + $0x88] sm:$0xff]
          %v3496 = vld [vmem:[#allocation5 + $0x90] sm:$0xff]
          %v3497 = vld [vmem:[#allocation5 + $0x98] sm:$0xff]
          %v3498 = vld [vmem:[#allocation5 + $0xa0] sm:$0xff]
          %v3499 = vld [vmem:[#allocation5 + $0xa8] sm:$0xff]
          %v3500 = vld [vmem:[#allocation5 + $0xb0] sm:$0xff]
          %v3501 = vld [vmem:[#allocation5 + $0xb8] sm:$0xff]
          %v3502 = vld [vmem:[#allocation5 + $0xc0] sm:$0xff]
          %v3503 = vld [vmem:[#allocation5 + $0xc8] sm:$0xff]
          %v3504 = vld [vmem:[#allocation5 + $0xd0] sm:$0xff]
          %v3505 = vld [vmem:[#allocation5 + $0xd8] sm:$0xff]
          %v3506 = vld [vmem:[#allocation5 + $0xe0] sm:$0xff]
          %v3507 = vld [vmem:[#allocation5 + $0xe8] sm:$0xff]
          %v3508 = vld [vmem:[#allocation5 + $0xf0] sm:$0xff]
          %v3509 = vld [vmem:[#allocation5 + $0xf8] sm:$0xff]
          %v3510 = vld [vmem:[%s11] sm:$0x3]
          %vm3511 = vcmask 523264
          %v3512 = vsel %vm3511, %v3478, 0.0
          %v3513 = vsel %vm3511, %v3479, 0.0
          %v3514 = vadd.f32 %v3512, %v3513
          %v3515 = vsel %vm3511, %v3480, 0.0
          %v3516 = vadd.f32 %v3514, %v3515
          %v3517 = vsel %vm3511, %v3481, 0.0
          %v3518 = vadd.f32 %v3516, %v3517
          %v3519 = vsel %vm3511, %v3482, 0.0
          %v3520 = vadd.f32 %v3518, %v3519
          %v3521 = vsel %vm3511, %v3483, 0.0
          %v3522 = vadd.f32 %v3520, %v3521
          %v3523 = vsel %vm3511, %v3484, 0.0
          %v3524 = vadd.f32 %v3522, %v3523
          %v3525 = vsel %vm3511, %v3485, 0.0
          %v3526 = vadd.f32 %v3524, %v3525
          %v3527 = vsel %vm3511, %v3486, 0.0
          %v3528 = vadd.f32 %v3526, %v3527
          %v3529 = vsel %vm3511, %v3487, 0.0
          %v3530 = vadd.f32 %v3528, %v3529
          %v3531 = vsel %vm3511, %v3488, 0.0
          %v3532 = vadd.f32 %v3530, %v3531
          %v3533 = vsel %vm3511, %v3489, 0.0
          %v3534 = vadd.f32 %v3532, %v3533
          %v3535 = vsel %vm3511, %v3490, 0.0
          %v3536 = vadd.f32 %v3534, %v3535
          %v3537 = vsel %vm3511, %v3491, 0.0
          %v3538 = vadd.f32 %v3536, %v3537
          %v3539 = vsel %vm3511, %v3492, 0.0
          %v3540 = vadd.f32 %v3538, %v3539
          %v3541 = vsel %vm3511, %v3493, 0.0
          %v3542 = vadd.f32 %v3540, %v3541
          %v3543 = vsel %vm3511, %v3494, 0.0
          %v3544 = vadd.f32 %v3542, %v3543
          %v3545 = vsel %vm3511, %v3495, 0.0
          %v3546 = vadd.f32 %v3544, %v3545
          %v3547 = vsel %vm3511, %v3496, 0.0
          %v3548 = vadd.f32 %v3546, %v3547
          %v3549 = vsel %vm3511, %v3497, 0.0
          %v3550 = vadd.f32 %v3548, %v3549
          %v3551 = vsel %vm3511, %v3498, 0.0
          %v3552 = vadd.f32 %v3550, %v3551
          %v3553 = vsel %vm3511, %v3499, 0.0
          %v3554 = vadd.f32 %v3552, %v3553
          %v3555 = vsel %vm3511, %v3500, 0.0
          %v3556 = vadd.f32 %v3554, %v3555
          %v3557 = vsel %vm3511, %v3501, 0.0
          %v3558 = vadd.f32 %v3556, %v3557
          %v3559 = vsel %vm3511, %v3502, 0.0
          %v3560 = vadd.f32 %v3558, %v3559
          %v3561 = vsel %vm3511, %v3503, 0.0
          %v3562 = vadd.f32 %v3560, %v3561
          %v3563 = vsel %vm3511, %v3504, 0.0
          %v3564 = vadd.f32 %v3562, %v3563
          %v3565 = vsel %vm3511, %v3505, 0.0
          %v3566 = vadd.f32 %v3564, %v3565
          %v3567 = vsel %vm3511, %v3506, 0.0
          %v3568 = vadd.f32 %v3566, %v3567
          %v3569 = vsel %vm3511, %v3507, 0.0
          %v3570 = vadd.f32 %v3568, %v3569
          %v3571 = vsel %vm3511, %v3508, 0.0
          %v3572 = vadd.f32 %v3570, %v3571
          %v3573 = vsel %vm3511, %v3509, 0.0
          %v3574 = vadd.f32 %v3572, %v3573
          %v3575 = vrot.slane %v3574, 4
          %v3576 = vadd.f32 %v3574, %v3575
          %v3577 = vrot.slane %v3576, 2
          %v3578 = vadd.f32 %v3576, %v3577
          %v3579 = vrot.slane %v3578, 1
          %v3580 = vadd.f32 %v3578, %v3579
          %v3581 = vrcp.pop 256.0
          %v3582 = vmul.f32 %v3580, %v3581
          %v3583 = vsub.f32 %v3478, %v3582
          %v3584 = vsub.f32 %v3479, %v3582
          %v3585 = vsub.f32 %v3480, %v3582
          %v3586 = vsub.f32 %v3481, %v3582
          %v3587 = vsub.f32 %v3482, %v3582
          %v3588 = vsub.f32 %v3483, %v3582
          %v3589 = vsub.f32 %v3484, %v3582
          %v3590 = vsub.f32 %v3485, %v3582
          %v3591 = vsub.f32 %v3486, %v3582
          %v3592 = vsub.f32 %v3487, %v3582
          %v3593 = vsub.f32 %v3488, %v3582
          %v3594 = vsub.f32 %v3489, %v3582
          %v3595 = vsub.f32 %v3490, %v3582
          %v3596 = vsub.f32 %v3491, %v3582
          %v3597 = vsub.f32 %v3492, %v3582
          %v3598 = vsub.f32 %v3493, %v3582
          %v3599 = vsub.f32 %v3494, %v3582
          %v3600 = vsub.f32 %v3495, %v3582
          %v3601 = vsub.f32 %v3496, %v3582
          %v3602 = vsub.f32 %v3497, %v3582
          %v3603 = vsub.f32 %v3498, %v3582
          %v3604 = vsub.f32 %v3499, %v3582
          %v3605 = vsub.f32 %v3500, %v3582
          %v3606 = vsub.f32 %v3501, %v3582
          %v3607 = vsub.f32 %v3502, %v3582
          %v3608 = vsub.f32 %v3503, %v3582
          %v3609 = vsub.f32 %v3504, %v3582
          %v3610 = vsub.f32 %v3505, %v3582
          %v3611 = vsub.f32 %v3506, %v3582
          %v3612 = vsub.f32 %v3507, %v3582
          %v3613 = vsub.f32 %v3508, %v3582
          %v3614 = vsub.f32 %v3509, %v3582
          %v3615 = vmul.f32 %v3583, %v3583
          %v3616 = vmul.f32 %v3584, %v3584
          %v3617 = vmul.f32 %v3585, %v3585
          %v3618 = vmul.f32 %v3586, %v3586
          %v3619 = vmul.f32 %v3587, %v3587
          %v3620 = vmul.f32 %v3588, %v3588
          %v3621 = vmul.f32 %v3589, %v3589
          %v3622 = vmul.f32 %v3590, %v3590
          %v3623 = vmul.f32 %v3591, %v3591
          %v3624 = vmul.f32 %v3592, %v3592
          %v3625 = vmul.f32 %v3593, %v3593
          %v3626 = vmul.f32 %v3594, %v3594
          %v3627 = vmul.f32 %v3595, %v3595
          %v3628 = vmul.f32 %v3596, %v3596
          %v3629 = vmul.f32 %v3597, %v3597
          %v3630 = vmul.f32 %v3598, %v3598
          %v3631 = vmul.f32 %v3599, %v3599
          %v3632 = vmul.f32 %v3600, %v3600
          %v3633 = vmul.f32 %v3601, %v3601
          %v3634 = vmul.f32 %v3602, %v3602
          %v3635 = vmul.f32 %v3603, %v3603
          %v3636 = vmul.f32 %v3604, %v3604
          %v3637 = vmul.f32 %v3605, %v3605
          %v3638 = vmul.f32 %v3606, %v3606
          %v3639 = vmul.f32 %v3607, %v3607
          %v3640 = vmul.f32 %v3608, %v3608
          %v3641 = vmul.f32 %v3609, %v3609
          %v3642 = vmul.f32 %v3610, %v3610
          %v3643 = vmul.f32 %v3611, %v3611
          %v3644 = vmul.f32 %v3612, %v3612
          %v3645 = vmul.f32 %v3613, %v3613
          %v3646 = vmul.f32 %v3614, %v3614
          %v3647 = vsel %vm3511, %v3615, 0.0
          %v3648 = vsel %vm3511, %v3616, 0.0
          %v3649 = vadd.f32 %v3647, %v3648
          %v3650 = vsel %vm3511, %v3617, 0.0
          %v3651 = vadd.f32 %v3649, %v3650
          %v3652 = vsel %vm3511, %v3618, 0.0
          %v3653 = vadd.f32 %v3651, %v3652
          %v3654 = vsel %vm3511, %v3619, 0.0
          %v3655 = vadd.f32 %v3653, %v3654
          %v3656 = vsel %vm3511, %v3620, 0.0
          %v3657 = vadd.f32 %v3655, %v3656
          %v3658 = vsel %vm3511, %v3621, 0.0
          %v3659 = vadd.f32 %v3657, %v3658
          %v3660 = vsel %vm3511, %v3622, 0.0
          %v3661 = vadd.f32 %v3659, %v3660
          %v3662 = vsel %vm3511, %v3623, 0.0
          %v3663 = vadd.f32 %v3661, %v3662
          %v3664 = vsel %vm3511, %v3624, 0.0
          %v3665 = vadd.f32 %v3663, %v3664
          %v3666 = vsel %vm3511, %v3625, 0.0
          %v3667 = vadd.f32 %v3665, %v3666
          %v3668 = vsel %vm3511, %v3626, 0.0
          %v3669 = vadd.f32 %v3667, %v3668
          %v3670 = vsel %vm3511, %v3627, 0.0
          %v3671 = vadd.f32 %v3669, %v3670
          %v3672 = vsel %vm3511, %v3628, 0.0
          %v3673 = vadd.f32 %v3671, %v3672
          %v3674 = vsel %vm3511, %v3629, 0.0
          %v3675 = vadd.f32 %v3673, %v3674
          %v3676 = vsel %vm3511, %v3630, 0.0
          %v3677 = vadd.f32 %v3675, %v3676
          %v3678 = vsel %vm3511, %v3631, 0.0
          %v3679 = vadd.f32 %v3677, %v3678
          %v3680 = vsel %vm3511, %v3632, 0.0
          %v3681 = vadd.f32 %v3679, %v3680
          %v3682 = vsel %vm3511, %v3633, 0.0
          %v3683 = vadd.f32 %v3681, %v3682
          %v3684 = vsel %vm3511, %v3634, 0.0
          %v3685 = vadd.f32 %v3683, %v3684
          %v3686 = vsel %vm3511, %v3635, 0.0
          %v3687 = vadd.f32 %v3685, %v3686
          %v3688 = vsel %vm3511, %v3636, 0.0
          %v3689 = vadd.f32 %v3687, %v3688
          %v3690 = vsel %vm3511, %v3637, 0.0
          %v3691 = vadd.f32 %v3689, %v3690
          %v3692 = vsel %vm3511, %v3638, 0.0
          %v3693 = vadd.f32 %v3691, %v3692
          %v3694 = vsel %vm3511, %v3639, 0.0
          %v3695 = vadd.f32 %v3693, %v3694
          %v3696 = vsel %vm3511, %v3640, 0.0
          %v3697 = vadd.f32 %v3695, %v3696
          %v3698 = vsel %vm3511, %v3641, 0.0
          %v3699 = vadd.f32 %v3697, %v3698
          %v3700 = vsel %vm3511, %v3642, 0.0
          %v3701 = vadd.f32 %v3699, %v3700
          %v3702 = vsel %vm3511, %v3643, 0.0
          %v3703 = vadd.f32 %v3701, %v3702
          %v3704 = vsel %vm3511, %v3644, 0.0
          %v3705 = vadd.f32 %v3703, %v3704
          %v3706 = vsel %vm3511, %v3645, 0.0
          %v3707 = vadd.f32 %v3705, %v3706
          %v3708 = vsel %vm3511, %v3646, 0.0
          %v3709 = vadd.f32 %v3707, %v3708
          %v3710 = vrot.slane %v3709, 4
          %v3711 = vadd.f32 %v3709, %v3710
          %v3712 = vrot.slane %v3711, 2
          %v3713 = vadd.f32 %v3711, %v3712
          %v3714 = vrot.slane %v3713, 1
          %v3715 = vadd.f32 %v3713, %v3714
          %v3716 = vmul.f32 %v3715, %v3581
          %v3717 = vadd.f32 %v3716, 1e-05
          %v3718 = vrsqrt.pop %v3717
          %v3719 = vmul.f32 %v3583, %v3718
          %v3720 = vmul.f32 %v3584, %v3718
          %v3721 = vmul.f32 %v3585, %v3718
          %v3722 = vmul.f32 %v3586, %v3718
          %v3723 = vmul.f32 %v3587, %v3718
          %v3724 = vmul.f32 %v3588, %v3718
          %v3725 = vmul.f32 %v3589, %v3718
          %v3726 = vmul.f32 %v3590, %v3718
          %v3727 = vmul.f32 %v3591, %v3718
          %v3728 = vmul.f32 %v3592, %v3718
          %v3729 = vmul.f32 %v3593, %v3718
          %v3730 = vmul.f32 %v3594, %v3718
          %v3731 = vmul.f32 %v3595, %v3718
          %v3732 = vmul.f32 %v3596, %v3718
          %v3733 = vmul.f32 %v3597, %v3718
          %v3734 = vmul.f32 %v3598, %v3718
          %v3735 = vmul.f32 %v3599, %v3718
          %v3736 = vmul.f32 %v3600, %v3718
          %v3737 = vmul.f32 %v3601, %v3718
          %v3738 = vmul.f32 %v3602, %v3718
          %v3739 = vmul.f32 %v3603, %v3718
          %v3740 = vmul.f32 %v3604, %v3718
          %v3741 = vmul.f32 %v3605, %v3718
          %v3742 = vmul.f32 %v3606, %v3718
          %v3743 = vmul.f32 %v3607, %v3718
          %v3744 = vmul.f32 %v3608, %v3718
          %v3745 = vmul.f32 %v3609, %v3718
          %v3746 = vmul.f32 %v3610, %v3718
          %v3747 = vmul.f32 %v3611, %v3718
          %v3748 = vmul.f32 %v3612, %v3718
          %v3749 = vmul.f32 %v3613, %v3718
          %v3750 = vmul.f32 %v3614, %v3718
          %v3751 = vlaneseq
          %v3752 = vshrl.u32 %v3751, 7
          %v3753 = vsub.s32 0, %v3752
          %v3754 = vrot.slane %v3510, %v3753
          %v3755 = vmul.f32 %v3719, %v3754
          %v3756 = vmul.f32 %v3720, %v3754
          %v3757 = vmul.f32 %v3721, %v3754
          %v3758 = vmul.f32 %v3722, %v3754
          %v3759 = vmul.f32 %v3723, %v3754
          %v3760 = vmul.f32 %v3724, %v3754
          %v3761 = vmul.f32 %v3725, %v3754
          %v3762 = vmul.f32 %v3726, %v3754
          %v3763 = vmul.f32 %v3727, %v3754
          %v3764 = vmul.f32 %v3728, %v3754
          %v3765 = vmul.f32 %v3729, %v3754
          %v3766 = vmul.f32 %v3730, %v3754
          %v3767 = vmul.f32 %v3731, %v3754
          %v3768 = vmul.f32 %v3732, %v3754
          %v3769 = vmul.f32 %v3733, %v3754
          %v3770 = vmul.f32 %v3734, %v3754
          %v3771 = vmul.f32 %v3735, %v3754
          %v3772 = vmul.f32 %v3736, %v3754
          %v3773 = vmul.f32 %v3737, %v3754
          %v3774 = vmul.f32 %v3738, %v3754
          %v3775 = vmul.f32 %v3739, %v3754
          %v3776 = vmul.f32 %v3740, %v3754
          %v3777 = vmul.f32 %v3741, %v3754
          %v3778 = vmul.f32 %v3742, %v3754
          %v3779 = vmul.f32 %v3743, %v3754
          %v3780 = vmul.f32 %v3744, %v3754
          %v3781 = vmul.f32 %v3745, %v3754
          %v3782 = vmul.f32 %v3746, %v3754
          %v3783 = vmul.f32 %v3747, %v3754
          %v3784 = vmul.f32 %v3748, %v3754
          %v3785 = vmul.f32 %v3749, %v3754
          %v3786 = vmul.f32 %v3750, %v3754
          %v3787 = vlaneseq
          %v3788 = vshrl.u32 %v3787, 7
          %v3789 = vsub.s32 1, %v3788
          %v3790 = vrot.slane %v3510, %v3789
          %v3791 = vadd.f32 %v3755, %v3790
          %v3792 = vadd.f32 %v3756, %v3790
          %v3793 = vadd.f32 %v3757, %v3790
          %v3794 = vadd.f32 %v3758, %v3790
          %v3795 = vadd.f32 %v3759, %v3790
          %v3796 = vadd.f32 %v3760, %v3790
          %v3797 = vadd.f32 %v3761, %v3790
          %v3798 = vadd.f32 %v3762, %v3790
          %v3799 = vadd.f32 %v3763, %v3790
          %v3800 = vadd.f32 %v3764, %v3790
          %v3801 = vadd.f32 %v3765, %v3790
          %v3802 = vadd.f32 %v3766, %v3790
          %v3803 = vadd.f32 %v3767, %v3790
          %v3804 = vadd.f32 %v3768, %v3790
          %v3805 = vadd.f32 %v3769, %v3790
          %v3806 = vadd.f32 %v3770, %v3790
          %v3807 = vadd.f32 %v3771, %v3790
          %v3808 = vadd.f32 %v3772, %v3790
          %v3809 = vadd.f32 %v3773, %v3790
          %v3810 = vadd.f32 %v3774, %v3790
          %v3811 = vadd.f32 %v3775, %v3790
          %v3812 = vadd.f32 %v3776, %v3790
          %v3813 = vadd.f32 %v3777, %v3790
          %v3814 = vadd.f32 %v3778, %v3790
          %v3815 = vadd.f32 %v3779, %v3790
          %v3816 = vadd.f32 %v3780, %v3790
          %v3817 = vadd.f32 %v3781, %v3790
          %v3818 = vadd.f32 %v3782, %v3790
          %v3819 = vadd.f32 %v3783, %v3790
          %v3820 = vadd.f32 %v3784, %v3790
          %v3821 = vadd.f32 %v3785, %v3790
          %v3822 = vadd.f32 %v3786, %v3790
          %v3823 = vmax.f32 %v3791, 0.0
          %v3824 = vmax.f32 %v3792, 0.0
          %v3825 = vmax.f32 %v3793, 0.0
          %v3826 = vmax.f32 %v3794, 0.0
          %v3827 = vmax.f32 %v3795, 0.0
          %v3828 = vmax.f32 %v3796, 0.0
          %v3829 = vmax.f32 %v3797, 0.0
          %v3830 = vmax.f32 %v3798, 0.0
          %v3831 = vmax.f32 %v3799, 0.0
          %v3832 = vmax.f32 %v3800, 0.0
          %v3833 = vmax.f32 %v3801, 0.0
          %v3834 = vmax.f32 %v3802, 0.0
          %v3835 = vmax.f32 %v3803, 0.0
          %v3836 = vmax.f32 %v3804, 0.0
          %v3837 = vmax.f32 %v3805, 0.0
          %v3838 = vmax.f32 %v3806, 0.0
          %v3839 = vmax.f32 %v3807, 0.0
          %v3840 = vmax.f32 %v3808, 0.0
          %v3841 = vmax.f32 %v3809, 0.0
          %v3842 = vmax.f32 %v3810, 0.0
          %v3843 = vmax.f32 %v3811, 0.0
          %v3844 = vmax.f32 %v3812, 0.0
          %v3845 = vmax.f32 %v3813, 0.0
          %v3846 = vmax.f32 %v3814, 0.0
          %v3847 = vmax.f32 %v3815, 0.0
          %v3848 = vmax.f32 %v3816, 0.0
          %v3849 = vmax.f32 %v3817, 0.0
          %v3850 = vmax.f32 %v3818, 0.0
          %v3851 = vmax.f32 %v3819, 0.0
          %v3852 = vmax.f32 %v3820, 0.0
          %v3853 = vmax.f32 %v3821, 0.0
          %v3854 = vmax.f32 %v3822, 0.0
          %v3855 = vld [vmem:[%s13] sm:$0xff]
          %v3856 = vld [vmem:[%s14] sm:$0xff]
          %3858 = vset.pattern.permute.xlu0 0
          %3859 = vperm.xlu0 %3858, %v3856
          %v3860 = vpop.permute.xlu0 %3859
          %3862 = vmatprep.subr.mxu0 0.0
          %3863 = vmatpush1.msra.mxu0 %v3823
          %3864 = vmatprep.subr.mxu0 0.0
          %3865 = vmatpush1.msra.mxu0 %v3824
          %3866 = vmatprep.subr.mxu0 0.0
          %3867 = vmatpush1.msra.mxu0 %v3825
          %3868 = vmatprep.subr.mxu0 0.0
          %3869 = vmatpush1.msra.mxu0 %v3826
          %3870 = vmatprep.subr.mxu0 0.0
          %3871 = vmatpush1.msra.mxu0 %v3827
          %3872 = vmatprep.subr.mxu0 0.0
          %3873 = vmatpush1.msra.mxu0 %v3828
          %3874 = vmatprep.subr.mxu0 0.0
          %3875 = vmatpush1.msra.mxu0 %v3829
          %3876 = vmatprep.subr.mxu0 0.0
          %3877 = vmatpush1.msra.mxu0 %v3830
          %3878 = vmatprep.subr.mxu0 0.0
          %3879 = vmatpush1.msra.mxu0 %v3831
          %3880 = vmatprep.subr.mxu0 0.0
          %3881 = vmatpush1.msra.mxu0 %v3832
          %3882 = vmatprep.subr.mxu0 0.0
          %3883 = vmatpush1.msra.mxu0 %v3833
          %3884 = vmatprep.subr.mxu0 0.0
          %3885 = vmatpush1.msra.mxu0 %v3834
          %3886 = vmatprep.subr.mxu0 0.0
          %3887 = vmatpush1.msra.mxu0 %v3835
          %3888 = vmatprep.subr.mxu0 0.0
          %3889 = vmatpush1.msra.mxu0 %v3836
          %3890 = vmatprep.subr.mxu0 0.0
          %3891 = vmatpush1.msra.mxu0 %v3837
          %3892 = vmatprep.subr.mxu0 0.0
          %3893 = vmatpush1.msra.mxu0 %v3838
          %3894 = vmatprep.subr.mxu0 0.0
          %3895 = vmatpush1.msra.mxu0 0.0
          %3896 = vmatprep.subr.mxu0 0.0
          %3897 = vmatpush1.msra.mxu0 0.0
          %3898 = vmatprep.subr.mxu0 0.0
          %3899 = vmatpush1.msra.mxu0 0.0
          %3900 = vmatprep.subr.mxu0 0.0
          %3901 = vmatpush1.msra.mxu0 0.0
          %3902 = vmatprep.subr.mxu0 0.0
          %3903 = vmatpush1.msra.mxu0 0.0
          %3904 = vmatprep.subr.mxu0 0.0
          %3905 = vmatpush1.msra.mxu0 0.0
          %3906 = vmatprep.subr.mxu0 0.0
          %3907 = vmatpush1.msra.mxu0 0.0
          %3908 = vmatprep.subr.mxu0 0.0
          %3909 = vmatpush1.msra.mxu0 0.0
          %3910 = vmatprep.subr.mxu0 0.0
          %3911 = vmatpush1.msra.mxu0 0.0
          %3912 = vmatprep.subr.mxu0 0.0
          %3913 = vmatpush1.msra.mxu0 0.0
          %3914 = vmatprep.subr.mxu0 0.0
          %3915 = vmatpush1.msra.mxu0 0.0
          %3916 = vmatprep.subr.mxu0 0.0
          %3917 = vmatpush1.msra.mxu0 0.0
          %3918 = vmatprep.subr.mxu0 0.0
          %3919 = vmatpush1.msra.mxu0 0.0
          %3920 = vmatprep.subr.mxu0 0.0
          %3921 = vmatpush1.msra.mxu0 0.0
          %3922 = vmatprep.subr.mxu0 0.0
          %3923 = vmatpush1.msra.mxu0 0.0
          %3924 = vmatprep.subr.mxu0 0.0
          %3925 = vmatpush1.msra.mxu0 0.0
          %3926 = vmatprep.mubr.f32.mxu0 0.0
          %3927 = vmatmul.mubr.f32.gmra.mrb[0].mxu0 %v3855
          %v3928 = vpop.f32.mrb[0].mxu0
          %v3929 = vadd.f32 %v3860, %v3928
          %v3930 = vpop.f32.mrb[0].mxu0
          %3931 = vdwg.mxu0
          %v3932 = vld [vmem:[%s12] sm:$0xff]
          %v3933 = vld [vmem:[%s15] sm:$0xff]
          %v3934 = vld [vmem:[%s15 + $0x8] sm:$0xff]
          %v3935 = vld [vmem:[%s15 + $0x10] sm:$0xff]
          %v3936 = vld [vmem:[%s15 + $0x18] sm:$0xff]
          %v3937 = vld [vmem:[%s15 + $0x20] sm:$0xff]
          %v3938 = vld [vmem:[%s15 + $0x28] sm:$0xff]
          %v3939 = vld [vmem:[%s15 + $0x30] sm:$0xff]
          %v3940 = vld [vmem:[%s15 + $0x38] sm:$0xff]
          %v3941 = vld [vmem:[%s15 + $0x40] sm:$0xff]
          %v3942 = vld [vmem:[%s15 + $0x48] sm:$0xff]
          %v3943 = vld [vmem:[%s15 + $0x50] sm:$0xff]
          %v3944 = vld [vmem:[%s15 + $0x58] sm:$0xff]
          %v3945 = vld [vmem:[%s15 + $0x60] sm:$0xff]
          %v3946 = vld [vmem:[%s15 + $0x68] sm:$0xff]
          %v3947 = vld [vmem:[%s15 + $0x70] sm:$0xff]
          %v3948 = vld [vmem:[%s15 + $0x78] sm:$0xff]
          %v3949 = vld [vmem:[%s16] sm:$0xff]
          %v3950 = vld [vmem:[%s16 + $0x8] sm:$0xff]
          %v3951 = vld [vmem:[%s16 + $0x10] sm:$0xff]
          %v3952 = vld [vmem:[%s16 + $0x18] sm:$0xff]
          %v3953 = vld [vmem:[%s16 + $0x20] sm:$0xff]
          %v3954 = vld [vmem:[%s16 + $0x28] sm:$0xff]
          %v3955 = vld [vmem:[%s16 + $0x30] sm:$0xff]
          %v3956 = vld [vmem:[%s16 + $0x38] sm:$0xff]
          %v3958 = vsel %vm3511, %v3929, 0
          %3960 = vmatprep.subr.mxu0 0.0
          %3961 = vmatpush1.msra.mxu0 %v3949
          %3962 = vmatprep.subr.mxu0 0.0
          %3963 = vmatpush1.msra.mxu0 %v3950
          %3964 = vmatprep.subr.mxu0 0.0
          %3965 = vmatpush1.msra.mxu0 %v3951
          %3966 = vmatprep.subr.mxu0 0.0
          %3967 = vmatpush1.msra.mxu0 %v3952
          %3968 = vmatprep.subr.mxu0 0.0
          %3969 = vmatpush1.msra.mxu0 %v3953
          %3970 = vmatprep.subr.mxu0 0.0
          %3971 = vmatpush1.msra.mxu0 %v3954
          %3972 = vmatprep.subr.mxu0 0.0
          %3973 = vmatpush1.msra.mxu0 %v3955
          %3974 = vmatprep.subr.mxu0 0.0
          %3975 = vmatpush1.msra.mxu0 %v3956
          %3976 = vmatprep.subr.mxu0 0.0
          %3977 = vmatpush1.msra.mxu0 0.0
          %3978 = vmatprep.subr.mxu0 0.0
          %3979 = vmatpush1.msra.mxu0 0.0
          %3980 = vmatprep.subr.mxu0 0.0
          %3981 = vmatpush1.msra.mxu0 0.0
          %3982 = vmatprep.subr.mxu0 0.0
          %3983 = vmatpush1.msra.mxu0 0.0
          %3984 = vmatprep.subr.mxu0 0.0
          %3985 = vmatpush1.msra.mxu0 0.0
          %3986 = vmatprep.subr.mxu0 0.0
          %3987 = vmatpush1.msra.mxu0 0.0
          %3988 = vmatprep.subr.mxu0 0.0
          %3989 = vmatpush1.msra.mxu0 0.0
          %3990 = vmatprep.subr.mxu0 0.0
          %3991 = vmatpush1.msra.mxu0 0.0
          %3992 = vmatprep.subr.mxu0 0.0
          %3993 = vmatpush1.msra.mxu0 0.0
          %3994 = vmatprep.subr.mxu0 0.0
          %3995 = vmatpush1.msra.mxu0 0.0
          %3996 = vmatprep.subr.mxu0 0.0
          %3997 = vmatpush1.msra.mxu0 0.0
          %3998 = vmatprep.subr.mxu0 0.0
          %3999 = vmatpush1.msra.mxu0 0.0
          %4000 = vmatprep.subr.mxu0 0.0
          %4001 = vmatpush1.msra.mxu0 0.0
          %4002 = vmatprep.subr.mxu0 0.0
          %4003 = vmatpush1.msra.mxu0 0.0
          %4004 = vmatprep.subr.mxu0 0.0
          %4005 = vmatpush1.msra.mxu0 0.0
          %4006 = vmatprep.subr.mxu0 0.0
          %4007 = vmatpush1.msra.mxu0 0.0
          %4008 = vmatprep.subr.mxu0 0.0
          %4009 = vmatpush1.msra.mxu0 0.0
          %4010 = vmatprep.subr.mxu0 0.0
          %4011 = vmatpush1.msra.mxu0 0.0
          %4012 = vmatprep.subr.mxu0 0.0
          %4013 = vmatpush1.msra.mxu0 0.0
          %4014 = vmatprep.subr.mxu0 0.0
          %4015 = vmatpush1.msra.mxu0 0.0
          %4016 = vmatprep.subr.mxu0 0.0
          %4017 = vmatpush1.msra.mxu0 0.0
          %4018 = vmatprep.subr.mxu0 0.0
          %4019 = vmatpush1.msra.mxu0 0.0
          %4020 = vmatprep.subr.mxu0 0.0
          %4021 = vmatpush1.msra.mxu0 0.0
          %4022 = vmatprep.subr.mxu0 0.0
          %4023 = vmatpush1.msra.mxu0 0.0
          %4024 = vmatprep.mubr.f32.mxu0 0.0
          %4025 = vmatmul.mubr.f32.gmra.mrb[0].mxu0 %v3958
          %v4026 = vpop.f32.mrb[0].mxu0
          %v4027 = vadd.f32 0.0, %v4026
          %v4028 = vpop.f32.mrb[0].mxu0
          %4029 = vdwg.mxu0
          %4030 = vmatprep.subr.mxu0 0.0
          %4031 = vmatpush1.msra.mxu0 %v3933
          %4032 = vmatprep.subr.mxu0 0.0
          %4033 = vmatpush1.msra.mxu0 %v3934
          %4034 = vmatprep.subr.mxu0 0.0
          %4035 = vmatpush1.msra.mxu0 %v3935
          %4036 = vmatprep.subr.mxu0 0.0
          %4037 = vmatpush1.msra.mxu0 %v3936
          %4038 = vmatprep.subr.mxu0 0.0
          %4039 = vmatpush1.msra.mxu0 %v3937
          %4040 = vmatprep.subr.mxu0 0.0
          %4041 = vmatpush1.msra.mxu0 %v3938
          %4042 = vmatprep.subr.mxu0 0.0
          %4043 = vmatpush1.msra.mxu0 %v3939
          %4044 = vmatprep.subr.mxu0 0.0
          %4045 = vmatpush1.msra.mxu0 %v3940
          %4046 = vmatprep.subr.mxu0 0.0
          %4047 = vmatpush1.msra.mxu0 %v3941
          %4048 = vmatprep.subr.mxu0 0.0
          %4049 = vmatpush1.msra.mxu0 %v3942
          %4050 = vmatprep.subr.mxu0 0.0
          %4051 = vmatpush1.msra.mxu0 %v3943
          %4052 = vmatprep.subr.mxu0 0.0
          %4053 = vmatpush1.msra.mxu0 %v3944
          %4054 = vmatprep.subr.mxu0 0.0
          %4055 = vmatpush1.msra.mxu0 %v3945
          %4056 = vmatprep.subr.mxu0 0.0
          %4057 = vmatpush1.msra.mxu0 %v3946
          %4058 = vmatprep.subr.mxu0 0.0
          %4059 = vmatpush1.msra.mxu0 %v3947
          %4060 = vmatprep.subr.mxu0 0.0
          %4061 = vmatpush1.msra.mxu0 %v3948
          %4062 = vmatprep.subr.mxu0 0.0
          %4063 = vmatpush1.msra.mxu0 0.0
          %4064 = vmatprep.subr.mxu0 0.0
          %4065 = vmatpush1.msra.mxu0 0.0
          %4066 = vmatprep.subr.mxu0 0.0
          %4067 = vmatpush1.msra.mxu0 0.0
          %4068 = vmatprep.subr.mxu0 0.0
          %4069 = vmatpush1.msra.mxu0 0.0
          %4070 = vmatprep.subr.mxu0 0.0
          %4071 = vmatpush1.msra.mxu0 0.0
          %4072 = vmatprep.subr.mxu0 0.0
          %4073 = vmatpush1.msra.mxu0 0.0
          %4074 = vmatprep.subr.mxu0 0.0
          %4075 = vmatpush1.msra.mxu0 0.0
          %4076 = vmatprep.subr.mxu0 0.0
          %4077 = vmatpush1.msra.mxu0 0.0
          %4078 = vmatprep.subr.mxu0 0.0
          %4079 = vmatpush1.msra.mxu0 0.0
          %4080 = vmatprep.subr.mxu0 0.0
          %4081 = vmatpush1.msra.mxu0 0.0
          %4082 = vmatprep.subr.mxu0 0.0
          %4083 = vmatpush1.msra.mxu0 0.0
          %4084 = vmatprep.subr.mxu0 0.0
          %4085 = vmatpush1.msra.mxu0 0.0
          %4086 = vmatprep.subr.mxu0 0.0
          %4087 = vmatpush1.msra.mxu0 0.0
          %4088 = vmatprep.subr.mxu0 0.0
          %4089 = vmatpush1.msra.mxu0 0.0
          %4090 = vmatprep.subr.mxu0 0.0
          %4091 = vmatpush1.msra.mxu0 0.0
          %4092 = vmatprep.subr.mxu0 0.0
          %4093 = vmatpush1.msra.mxu0 0.0
          %4094 = vmatprep.mubr.f32.mxu0 0.0
          %4095 = vmatmul.mubr.f32.gmra.mrb[0].mxu0 %v3932
          %v4096 = vpop.f32.mrb[0].mxu0
          %v4097 = vadd.f32 %v4027, %v4096
          %v4098 = vpop.f32.mrb[0].mxu0
          %4099 = vdwg.mxu0
          %v4100 = vld [vmem:[%s17] sm:$0x1]
          %v4102 = vlaneseq
          %v4103 = vshrl.u32 %v4102, 7
          %v4104 = vsub.s32 0, %v4103
          %v4105 = vrot.slane %v4100, %v4104
          %v4107 = vadd.f32 %v4097, %v4105
          %4108 = vst [vmem:[#allocation10] sm:$0xff] %v4107
          %v4109 = vld [vmem:[%s13] sm:$0xff]
          %v4110 = vld [vmem:[%s14] sm:$0xff]
          %4112 = vset.pattern.permute.xlu0 0
          %4113 = vperm.xlu0 %4112, %v4110
          %v4114 = vpop.permute.xlu0 %4113
          %4116 = vmatprep.subr.mxu0 0.0
          %4117 = vmatpush1.msra.mxu0 %v3839
          %4118 = vmatprep.subr.mxu0 0.0
          %4119 = vmatpush1.msra.mxu0 %v3840
          %4120 = vmatprep.subr.mxu0 0.0
          %4121 = vmatpush1.msra.mxu0 %v3841
          %4122 = vmatprep.subr.mxu0 0.0
          %4123 = vmatpush1.msra.mxu0 %v3842
          %4124 = vmatprep.subr.mxu0 0.0
          %4125 = vmatpush1.msra.mxu0 %v3843
          %4126 = vmatprep.subr.mxu0 0.0
          %4127 = vmatpush1.msra.mxu0 %v3844
          %4128 = vmatprep.subr.mxu0 0.0
          %4129 = vmatpush1.msra.mxu0 %v3845
          %4130 = vmatprep.subr.mxu0 0.0
          %4131 = vmatpush1.msra.mxu0 %v3846
          %4132 = vmatprep.subr.mxu0 0.0
          %4133 = vmatpush1.msra.mxu0 %v3847
          %4134 = vmatprep.subr.mxu0 0.0
          %4135 = vmatpush1.msra.mxu0 %v3848
          %4136 = vmatprep.subr.mxu0 0.0
          %4137 = vmatpush1.msra.mxu0 %v3849
          %4138 = vmatprep.subr.mxu0 0.0
          %4139 = vmatpush1.msra.mxu0 %v3850
          %4140 = vmatprep.subr.mxu0 0.0
          %4141 = vmatpush1.msra.mxu0 %v3851
          %4142 = vmatprep.subr.mxu0 0.0
          %4143 = vmatpush1.msra.mxu0 %v3852
          %4144 = vmatprep.subr.mxu0 0.0
          %4145 = vmatpush1.msra.mxu0 %v3853
          %4146 = vmatprep.subr.mxu0 0.0
          %4147 = vmatpush1.msra.mxu0 %v3854
          %4148 = vmatprep.subr.mxu0 0.0
          %4149 = vmatpush1.msra.mxu0 0.0
          %4150 = vmatprep.subr.mxu0 0.0
          %4151 = vmatpush1.msra.mxu0 0.0
          %4152 = vmatprep.subr.mxu0 0.0
          %4153 = vmatpush1.msra.mxu0 0.0
          %4154 = vmatprep.subr.mxu0 0.0
          %4155 = vmatpush1.msra.mxu0 0.0
          %4156 = vmatprep.subr.mxu0 0.0
          %4157 = vmatpush1.msra.mxu0 0.0
          %4158 = vmatprep.subr.mxu0 0.0
          %4159 = vmatpush1.msra.mxu0 0.0
          %4160 = vmatprep.subr.mxu0 0.0
          %4161 = vmatpush1.msra.mxu0 0.0
          %4162 = vmatprep.subr.mxu0 0.0
          %4163 = vmatpush1.msra.mxu0 0.0
          %4164 = vmatprep.subr.mxu0 0.0
          %4165 = vmatpush1.msra.mxu0 0.0
          %4166 = vmatprep.subr.mxu0 0.0
          %4167 = vmatpush1.msra.mxu0 0.0
          %4168 = vmatprep.subr.mxu0 0.0
          %4169 = vmatpush1.msra.mxu0 0.0
          %4170 = vmatprep.subr.mxu0 0.0
          %4171 = vmatpush1.msra.mxu0 0.0
          %4172 = vmatprep.subr.mxu0 0.0
          %4173 = vmatpush1.msra.mxu0 0.0
          %4174 = vmatprep.subr.mxu0 0.0
          %4175 = vmatpush1.msra.mxu0 0.0
          %4176 = vmatprep.subr.mxu0 0.0
          %4177 = vmatpush1.msra.mxu0 0.0
          %4178 = vmatprep.subr.mxu0 0.0
          %4179 = vmatpush1.msra.mxu0 0.0
          %4180 = vmatprep.mubr.f32.mxu0 0.0
          %4181 = vmatmul.mubr.f32.gmra.mrb[0].mxu0 %v4109
          %v4182 = vpop.f32.mrb[0].mxu0
          %v4183 = vadd.f32 %v4114, %v4182
          %v4184 = vpop.f32.mrb[0].mxu0
          %4185 = vdwg.mxu0
          %s4186 = scalar_lea.vmem %s12, 8
          %v4187 = vld [vmem:[%s4186] sm:$0xff]
          %v4188 = vld [vmem:[%s15] sm:$0xff]
          %v4189 = vld [vmem:[%s15 + $0x8] sm:$0xff]
          %v4190 = vld [vmem:[%s15 + $0x10] sm:$0xff]
          %v4191 = vld [vmem:[%s15 + $0x18] sm:$0xff]
          %v4192 = vld [vmem:[%s15 + $0x20] sm:$0xff]
          %v4193 = vld [vmem:[%s15 + $0x28] sm:$0xff]
          %v4194 = vld [vmem:[%s15 + $0x30] sm:$0xff]
          %v4195 = vld [vmem:[%s15 + $0x38] sm:$0xff]
          %v4196 = vld [vmem:[%s15 + $0x40] sm:$0xff]
          %v4197 = vld [vmem:[%s15 + $0x48] sm:$0xff]
          %v4198 = vld [vmem:[%s15 + $0x50] sm:$0xff]
          %v4199 = vld [vmem:[%s15 + $0x58] sm:$0xff]
          %v4200 = vld [vmem:[%s15 + $0x60] sm:$0xff]
          %v4201 = vld [vmem:[%s15 + $0x68] sm:$0xff]
          %v4202 = vld [vmem:[%s15 + $0x70] sm:$0xff]
          %v4203 = vld [vmem:[%s15 + $0x78] sm:$0xff]
          %v4204 = vld [vmem:[%s16] sm:$0xff]
          %v4205 = vld [vmem:[%s16 + $0x8] sm:$0xff]
          %v4206 = vld [vmem:[%s16 + $0x10] sm:$0xff]
          %v4207 = vld [vmem:[%s16 + $0x18] sm:$0xff]
          %v4208 = vld [vmem:[%s16 + $0x20] sm:$0xff]
          %v4209 = vld [vmem:[%s16 + $0x28] sm:$0xff]
          %v4210 = vld [vmem:[%s16 + $0x30] sm:$0xff]
          %v4211 = vld [vmem:[%s16 + $0x38] sm:$0xff]
          %v4213 = vsel %vm3511, %v4183, 0
          %4215 = vmatprep.subr.mxu0 0.0
          %4216 = vmatpush1.msra.mxu0 %v4204
          %4217 = vmatprep.subr.mxu0 0.0
          %4218 = vmatpush1.msra.mxu0 %v4205
          %4219 = vmatprep.subr.mxu0 0.0
          %4220 = vmatpush1.msra.mxu0 %v4206
          %4221 = vmatprep.subr.mxu0 0.0
          %4222 = vmatpush1.msra.mxu0 %v4207
          %4223 = vmatprep.subr.mxu0 0.0
          %4224 = vmatpush1.msra.mxu0 %v4208
          %4225 = vmatprep.subr.mxu0 0.0
          %4226 = vmatpush1.msra.mxu0 %v4209
          %4227 = vmatprep.subr.mxu0 0.0
          %4228 = vmatpush1.msra.mxu0 %v4210
          %4229 = vmatprep.subr.mxu0 0.0
          %4230 = vmatpush1.msra.mxu0 %v4211
          %4231 = vmatprep.subr.mxu0 0.0
          %4232 = vmatpush1.msra.mxu0 0.0
          %4233 = vmatprep.subr.mxu0 0.0
          %4234 = vmatpush1.msra.mxu0 0.0
          %4235 = vmatprep.subr.mxu0 0.0
          %4236 = vmatpush1.msra.mxu0 0.0
          %4237 = vmatprep.subr.mxu0 0.0
          %4238 = vmatpush1.msra.mxu0 0.0
          %4239 = vmatprep.subr.mxu0 0.0
          %4240 = vmatpush1.msra.mxu0 0.0
          %4241 = vmatprep.subr.mxu0 0.0
          %4242 = vmatpush1.msra.mxu0 0.0
          %4243 = vmatprep.subr.mxu0 0.0
          %4244 = vmatpush1.msra.mxu0 0.0
          %4245 = vmatprep.subr.mxu0 0.0
          %4246 = vmatpush1.msra.mxu0 0.0
          %4247 = vmatprep.subr.mxu0 0.0
          %4248 = vmatpush1.msra.mxu0 0.0
          %4249 = vmatprep.subr.mxu0 0.0
          %4250 = vmatpush1.msra.mxu0 0.0
          %4251 = vmatprep.subr.mxu0 0.0
          %4252 = vmatpush1.msra.mxu0 0.0
          %4253 = vmatprep.subr.mxu0 0.0
          %4254 = vmatpush1.msra.mxu0 0.0
          %4255 = vmatprep.subr.mxu0 0.0
          %4256 = vmatpush1.msra.mxu0 0.0
          %4257 = vmatprep.subr.mxu0 0.0
          %4258 = vmatpush1.msra.mxu0 0.0
          %4259 = vmatprep.subr.mxu0 0.0
          %4260 = vmatpush1.msra.mxu0 0.0
          %4261 = vmatprep.subr.mxu0 0.0
          %4262 = vmatpush1.msra.mxu0 0.0
          %4263 = vmatprep.subr.mxu0 0.0
          %4264 = vmatpush1.msra.mxu0 0.0
          %4265 = vmatprep.subr.mxu0 0.0
          %4266 = vmatpush1.msra.mxu0 0.0
          %4267 = vmatprep.subr.mxu0 0.0
          %4268 = vmatpush1.msra.mxu0 0.0
          %4269 = vmatprep.subr.mxu0 0.0
          %4270 = vmatpush1.msra.mxu0 0.0
          %4271 = vmatprep.subr.mxu0 0.0
          %4272 = vmatpush1.msra.mxu0 0.0
          %4273 = vmatprep.subr.mxu0 0.0
          %4274 = vmatpush1.msra.mxu0 0.0
          %4275 = vmatprep.subr.mxu0 0.0
          %4276 = vmatpush1.msra.mxu0 0.0
          %4277 = vmatprep.subr.mxu0 0.0
          %4278 = vmatpush1.msra.mxu0 0.0
          %4279 = vmatprep.mubr.f32.mxu0 0.0
          %4280 = vmatmul.mubr.f32.gmra.mrb[0].mxu0 %v4213
          %v4281 = vpop.f32.mrb[0].mxu0
          %v4282 = vadd.f32 0.0, %v4281
          %v4283 = vpop.f32.mrb[0].mxu0
          %4284 = vdwg.mxu0
          %4285 = vmatprep.subr.mxu0 0.0
          %4286 = vmatpush1.msra.mxu0 %v4188
          %4287 = vmatprep.subr.mxu0 0.0
          %4288 = vmatpush1.msra.mxu0 %v4189
          %4289 = vmatprep.subr.mxu0 0.0
          %4290 = vmatpush1.msra.mxu0 %v4190
          %4291 = vmatprep.subr.mxu0 0.0
          %4292 = vmatpush1.msra.mxu0 %v4191
          %4293 = vmatprep.subr.mxu0 0.0
          %4294 = vmatpush1.msra.mxu0 %v4192
          %4295 = vmatprep.subr.mxu0 0.0
          %4296 = vmatpush1.msra.mxu0 %v4193
          %4297 = vmatprep.subr.mxu0 0.0
          %4298 = vmatpush1.msra.mxu0 %v4194
          %4299 = vmatprep.subr.mxu0 0.0
          %4300 = vmatpush1.msra.mxu0 %v4195
          %4301 = vmatprep.subr.mxu0 0.0
          %4302 = vmatpush1.msra.mxu0 %v4196
          %4303 = vmatprep.subr.mxu0 0.0
          %4304 = vmatpush1.msra.mxu0 %v4197
          %4305 = vmatprep.subr.mxu0 0.0
          %4306 = vmatpush1.msra.mxu0 %v4198
          %4307 = vmatprep.subr.mxu0 0.0
          %4308 = vmatpush1.msra.mxu0 %v4199
          %4309 = vmatprep.subr.mxu0 0.0
          %4310 = vmatpush1.msra.mxu0 %v4200
          %4311 = vmatprep.subr.mxu0 0.0
          %4312 = vmatpush1.msra.mxu0 %v4201
          %4313 = vmatprep.subr.mxu0 0.0
          %4314 = vmatpush1.msra.mxu0 %v4202
          %4315 = vmatprep.subr.mxu0 0.0
          %4316 = vmatpush1.msra.mxu0 %v4203
          %4317 = vmatprep.subr.mxu0 0.0
          %4318 = vmatpush1.msra.mxu0 0.0
          %4319 = vmatprep.subr.mxu0 0.0
          %4320 = vmatpush1.msra.mxu0 0.0
          %4321 = vmatprep.subr.mxu0 0.0
          %4322 = vmatpush1.msra.mxu0 0.0
          %4323 = vmatprep.subr.mxu0 0.0
          %4324 = vmatpush1.msra.mxu0 0.0
          %4325 = vmatprep.subr.mxu0 0.0
          %4326 = vmatpush1.msra.mxu0 0.0
          %4327 = vmatprep.subr.mxu0 0.0
          %4328 = vmatpush1.msra.mxu0 0.0
          %4329 = vmatprep.subr.mxu0 0.0
          %4330 = vmatpush1.msra.mxu0 0.0
          %4331 = vmatprep.subr.mxu0 0.0
          %4332 = vmatpush1.msra.mxu0 0.0
          %4333 = vmatprep.subr.mxu0 0.0
          %4334 = vmatpush1.msra.mxu0 0.0
          %4335 = vmatprep.subr.mxu0 0.0
          %4336 = vmatpush1.msra.mxu0 0.0
          %4337 = vmatprep.subr.mxu0 0.0
          %4338 = vmatpush1.msra.mxu0 0.0
          %4339 = vmatprep.subr.mxu0 0.0
          %4340 = vmatpush1.msra.mxu0 0.0
          %4341 = vmatprep.subr.mxu0 0.0
          %4342 = vmatpush1.msra.mxu0 0.0
          %4343 = vmatprep.subr.mxu0 0.0
          %4344 = vmatpush1.msra.mxu0 0.0
          %4345 = vmatprep.subr.mxu0 0.0
          %4346 = vmatpush1.msra.mxu0 0.0
          %4347 = vmatprep.subr.mxu0 0.0
          %4348 = vmatpush1.msra.mxu0 0.0
          %4349 = vmatprep.mubr.f32.mxu0 0.0
          %4350 = vmatmul.mubr.f32.gmra.mrb[0].mxu0 %v4187
          %v4351 = vpop.f32.mrb[0].mxu0
          %v4352 = vadd.f32 %v4282, %v4351
          %v4353 = vpop.f32.mrb[0].mxu0
          %4354 = vdwg.mxu0
          %v4355 = vld [vmem:[%s17] sm:$0x1]
          %v4357 = vlaneseq
          %v4358 = vshrl.u32 %v4357, 7
          %v4359 = vsub.s32 0, %v4358
          %v4360 = vrot.slane %v4355, %v4359
          %v4362 = vadd.f32 %v4352, %v4360
          %s4363 = scalar_lea.vmem [#allocation10], 8
          %4364 = vst [vmem:[%s4363] sm:$0xff] %v4362
        $region132: #{graph_encoder_forward.1} parent=91 // pred_fallthru
          _
        // Predicated region
        $region133: #{graph_encoder_forward.1} parent=91 // pred_check
          %p4365 = pneg %p438
        $region134: #{graph_encoder_forward.1} parent=91 // pred_check_branch
          %4367 = sbr.rel (%p4365) target = $region136
        $region135: #{graph_encoder_forward.1} parent=91 // pred_region
          %s4369 = ssub.s32 256, 256
          %4370 = vsyncadd [#allocation11], %s4369
          %s4371 = sshll.u32 [#allocation10], 4
          %s4372 = int_to_ptr.vmem [resolvable:$true] %s4371
          %4377 = dma.vmem_to_hbm [thread:$0]  %s4372, 256, %s18, [#allocation11], 128, 128, 8
        $region136: #{graph_encoder_forward.1} parent=91 // pred_fallthru
          _
        // Predicated region
        $region137: #{graph_encoder_forward.1} parent=91 // pred_check
          %p4378 = pneg %p438
        $region138: #{graph_encoder_forward.1} parent=91 // pred_check_branch
          %4380 = sbr.rel (%p4378) target = $region140
        $region139: #{graph_encoder_forward.1} parent=91 // pred_region
          %4381 = dma.done [#allocation11], 256
        $region140: #{graph_encoder_forward.1} parent=91 // pred_fallthru
          _
      $region92: #{graph_encoder_forward.1} parent=5 // pred_fallthru
        _
      %p4382 = scmp.le.s32.totalorder 2, %s25
      // Predicated region
      $region141: #{graph_encoder_forward.1} parent=5 // pred_check
        %p4383 = pneg %p4382
      $region142: #{graph_encoder_forward.1} parent=5 // pred_check_branch
        %4385 = sbr.rel (%p4383) target = $region144
      $region143: #{graph_encoder_forward.1} parent=5 // pred_region
        %s4386 = ssub.s32 %s25, 2
      $region144: #{graph_encoder_forward.1} parent=5 // pred_fallthru
        _
    $region6: #{graph_encoder_forward.1} parent=1 // loop_footer
      %s29 = sadd.s32 1, %s25
    $region7: #{graph_encoder_forward.1} parent=1 // loop_footer_branch
      %24 = sbr.rel target = $region3
    $region8: #{graph_encoder_forward.1} parent=1 // loop_exit
      _
    %4387 = vsyncpa [#allocation11], 1
    %s4388 = scalar_lea.sflag [#allocation11], 1
    %4389 = vsyncpa %s4388, 1

</llo_original>
